<compile_context>
chip_gen: v7x
topology: tpu7x:2x2x1
jax: 0.10.0
libtpu: 0.0.40
codegen_flags: <defaults>
</compile_context>

<pallas_src>
import functools
import math

import jax
import jax.numpy as jnp
from jax import lax
from jax.experimental import pallas as pl
from jax.experimental.pallas import tpu as pltpu

LANE = 128                       # TPU lane width (min last-dim tile)
SUBLANE_BF16 = 16                # bf16 sublane packing granularity
TM_TARGET = 256                  # M-tile target; never forced to full padded M
VMEM_BUDGET = 6 * 1024 * 1024    # double-buffered operand + acc budget per step
EPS = 1e-5


def _round_up(x, m):
    return (x + m - 1) // m * m


def _choose_tiles(M, K, Np):
    """Pick (tm, tn, tk) for the fused GEMM.

    tn is maximized first (lane-dense stores; fewest re-fetches of the large,
    16x-expanded im2col lhs), then tk (fewest K grid steps), under a conservative
    double-buffered VMEM budget.  tm tracks M up to TM_TARGET and is split when
    the output grid would otherwise collapse to a single block (megacore)."""
    tm = min(TM_TARGET, _round_up(M, SUBLANE_BF16))
    tn, tk = 128, 128
    for tn_c in (512, 256, 128):
        if Np % tn_c:
            continue
        found = False
        for tk_c in (2048, 1024, 512, 256, 128):
            if K % tk_c:
                continue
            vmem = (2 * (tm * tk_c * 2 + tk_c * tn_c * 2 + tm * tn_c * 4)
                    + tm * tn_c * 4)
            if vmem <= VMEM_BUDGET:
                tn, tk, found = tn_c, tk_c, True
                break
        if found:
            break
    # If both M and N grids collapse to one block, split M so v7x's two
    # TensorCores each get an output block (no-op elsewhere; alignment kept).
    if pl.cdiv(M, tm) == 1 and Np // tn == 1 and tm >= 2 * SUBLANE_BF16:
        tm = _round_up(pl.cdiv(tm, 2), SUBLANE_BF16)
    return tm, tn, tk


# ----------------------------------------------------------------------------
# Pallas kernel: bf16 GEMM (f32 accumulator) + per-channel shift + optional LeakyReLU.
# BN scale is pre-folded into the weights, so the epilogue is add + select only.
# ----------------------------------------------------------------------------
def _gemm_shift_act_kernel(x_ref, w_ref, t_ref, o_ref, acc_ref, *, apply_lrelu):
    k = pl.program_id(2)

    @pl.when(k == 0)
    def _():
        acc_ref[...] = jnp.zeros_like(acc_ref)

    acc_ref[...] += jnp.dot(x_ref[...], w_ref[...],
                            preferred_element_type=jnp.float32)

    @pl.when(k == pl.num_programs(2) - 1)
    def _():
        y = acc_ref[...] + t_ref[...]
        if apply_lrelu:
            y = jnp.where(y >= 0, y, 0.2 * y)
        o_ref[...] = y.astype(o_ref.dtype)


def fused_gemm(cols, w_packed, shift, *, apply_lrelu, out_dtype):
    """out[m, n] = act( (cols @ w_packed)[m, n] + shift[n] )

    cols:     (M, K)   bf16, K % 128 == 0  (M left ragged; no padding copy)
    w_packed: (K, Np)  bf16, Np % 128 == 0 (BN scale already folded in)
    shift:    (1, Np)  f32
    """
    M, K = cols.shape
    K2, Np = w_packed.shape
    assert K == K2 and K % LANE == 0 and Np % LANE == 0

    tm, tn, tk = _choose_tiles(M, K, Np)
    grid = (pl.cdiv(M, tm), Np // tn, K // tk)

    kernel = functools.partial(_gemm_shift_act_kernel, apply_lrelu=apply_lrelu)

    return pl.pallas_call(
        kernel,
        out_shape=jax.ShapeDtypeStruct((M, Np), out_dtype),
        grid_spec=pltpu.PrefetchScalarGridSpec(
            num_scalar_prefetch=0,
            grid=grid,
            in_specs=[
                pl.BlockSpec((tm, tk), lambda i, j, k: (i, k)),
                pl.BlockSpec((tk, tn), lambda i, j, k: (k, j)),
                pl.BlockSpec((1, tn), lambda i, j, k: (0, j)),
            ],
            out_specs=pl.BlockSpec((tm, tn), lambda i, j, k: (i, j)),
            scratch_shapes=[pltpu.VMEM((tm, tn), jnp.float32)],
        ),
        compiler_params=pltpu.CompilerParams(
            dimension_semantics=("parallel", "parallel", "arbitrary")),
    )(cols, w_packed, shift)


# ----------------------------------------------------------------------------
# Glue: im2col patch extraction (data movement only; runs in bf16).
# ----------------------------------------------------------------------------
def im2col(x, kh, kw, stride, pad):
    N, H, W, C = x.shape
    xp = jnp.pad(x, ((0, 0), (pad, pad), (pad, pad), (0, 0)))
    OH = (H + 2 * pad - kh) // stride + 1
    OW = (W + 2 * pad - kw) // stride + 1
    patches = []
    for i in range(kh):
        for j in range(kw):
            patches.append(
                lax.slice(xp, (0, i, j, 0),
                          (N, i + stride * (OH - 1) + 1,
                           j + stride * (OW - 1) + 1, C),
                          (1, stride, stride, 1)))
    cols = jnp.concatenate(patches, axis=-1)          # (N, OH, OW, kh*kw*C)
    return cols.reshape(N * OH * OW, kh * kw * C), OH, OW


# ----------------------------------------------------------------------------
# Parameters: raw (f32, PyTorch-equivalent) + one-time packed/padded bf16 prep.
# ----------------------------------------------------------------------------
def init_params(key, ndf, n_layers):
    """Raw f32 parameters matching NLayerDiscriminator(ndf, n_layers, BatchNorm2d)."""
    kw = 4
    keys = iter(jax.random.split(key, 8 * (n_layers + 1)))
    layers = []
    nf_mult = 1
    for n in range(1, n_layers + 1):
        nf_mult_prev, nf_mult = nf_mult, min(2 ** n, 8)
        cin, cout = ndf * nf_mult_prev, ndf * nf_mult
        layers.append(dict(
            w=0.05 * jax.random.normal(next(keys), (kw, kw, cin, cout), jnp.float32),
            gamma=1.0 + 0.1 * jax.random.normal(next(keys), (cout,), jnp.float32),
            beta=0.1 * jax.random.normal(next(keys), (cout,), jnp.float32),
            mean=0.1 * jax.random.normal(next(keys), (cout,), jnp.float32),
            var=jnp.abs(1.0 + 0.1 * jax.random.normal(next(keys), (cout,), jnp.float32)),
        ))
    layers.append(dict(  # final Conv2d(ndf*nf_mult, 1, k=4, s=1, p=1, bias=True)
        w=0.05 * jax.random.normal(next(keys), (kw, kw, ndf * nf_mult, 1), jnp.float32),
        b=0.1 * jax.random.normal(next(keys), (1,), jnp.float32),
    ))
    return layers


def prepare_params(raw, eps=EPS):
    """One-time prep: fold inference-mode BN scale into the weights, pad channels to
    lane multiples, flatten to (K, Np) and cast to bf16.  Done once, not per forward."""
    prepped = []
    for idx, layer in enumerate(raw):
        w = layer["w"]                                   # (kh, kw, cin, cout) f32
        kh, kw_, cin, cout = w.shape
        cin_pad = _round_up(cin, SUBLANE_BF16) if idx == 0 else prepped[-1]["np_out"]
        np_out = _round_up(cout, LANE)
        if "gamma" in layer:                             # conv + BN (+ LeakyReLU)
            s = layer["gamma"] / jnp.sqrt(layer["var"] + eps)
            t = layer["beta"] - layer["mean"] * s
            w_f = w * s                                  # fold BN scale into weights
            lrelu, stride = True, 2
        else:                                            # final conv (bias, no act)
            t = layer["b"]
            w_f = w
            lrelu, stride = False, 1
        w_pad = jnp.zeros((kh, kw_, cin_pad, np_out), jnp.float32)
        w_pad = w_pad.at[:, :, :cin, :cout].set(w_f)
        t_pad = jnp.zeros((1, np_out), jnp.float32).at[0, :cout].set(t)
        prepped.append(dict(
            w=w_pad.reshape(kh * kw_ * cin_pad, np_out).astype(jnp.bfloat16),
            t=t_pad, np_out=np_out, cin_pad=cin_pad, cout=cout,
            lrelu=lrelu, stride=stride, k=kh))
    return prepped


# ----------------------------------------------------------------------------
# Forward pass (Pallas) and XLA references.
# ----------------------------------------------------------------------------
def discriminator_forward(feat_nhwc, prepped):
    """NLayerDiscriminator forward.  feat_nhwc: (N, H, W, ndf) f32."""
    N, H, W, C = feat_nhwc.shape
    cin0 = prepped[0]["cin_pad"]
    x = feat_nhwc
    if cin0 != C:
        x = jnp.pad(x, ((0, 0), (0, 0), (0, 0), (0, cin0 - C)))
    x = x.astype(jnp.bfloat16)     # bf16 activations end-to-end (f32 accumulation)
    for idx, layer in enumerate(prepped):
        last = idx == len(prepped) - 1
        cols, OH, OW = im2col(x, layer["k"], layer["k"], stride=layer["stride"], pad=1)
        out = fused_gemm(cols, layer["w"], layer["t"],
                         apply_lrelu=layer["lrelu"],
                         out_dtype=jnp.float32 if last else jnp.bfloat16)
        x = out.reshape(N, OH, OW, layer["np_out"])  # channels stay lane-padded
    return x[..., :prepped[-1]["cout"]]              # (N, OH, OW, 1)


def make_positional_encoding_2d(d_model, height, width):
    """pe buffer of PositionalEncoding2D, returned as (H, W, C); dim = d_model // 2."""
    assert d_model % 4 == 0
    half = d_model // 2
    pe = jnp.zeros((d_model, height, width), jnp.float32)
    div_term = jnp.exp(jnp.arange(0.0, half, 2.0) * -(math.log(10000.0) / half))
    pw = jnp.arange(0.0, width)[:, None] * div_term    # (W, half//2)
    ph = jnp.arange(0.0, height)[:, None] * div_term   # (H, half//2)
    pe = pe.at[0:half:2].set(jnp.broadcast_to(jnp.sin(pw).T[:, None, :], (half // 2, height, width)))
    pe = pe.at[1:half:2].set(jnp.broadcast_to(jnp.cos(pw).T[:, None, :], (half // 2, height, width)))
    pe = pe.at[half::2].set(jnp.broadcast_to(jnp.sin(ph).T[:, :, None], (half // 2, height, width)))
    pe = pe.at[half + 1::2].set(jnp.broadcast_to(jnp.cos(ph).T[:, :, None], (half // 2, height, width)))
    return jnp.transpose(pe, (1, 2, 0)), half


def reference_bf16(feat_nhwc, raw, eps=EPS):
    """XLA reference with the SAME numerics as the Pallas path (bf16 operands,
    f32 accumulation, BN scale folded into weights, bf16 hidden activations)."""
    def conv(x, w, stride):
        return lax.conv_general_dilated(
            x, w, (stride, stride), [(1, 1), (1, 1)],
            dimension_numbers=("NHWC", "HWIO", "NHWC"),
            preferred_element_type=jnp.float32)
    x = feat_nhwc.astype(jnp.bfloat16)
    for layer in raw[:-1]:
        s = layer["gamma"] / jnp.sqrt(layer["var"] + eps)
        t = layer["beta"] - layer["mean"] * s
        y = conv(x, (layer["w"] * s).astype(jnp.bfloat16), 2) + t
        x = jnp.where(y >= 0, y, 0.2 * y).astype(jnp.bfloat16)
    return conv(x, raw[-1]["w"].astype(jnp.bfloat16), 1) + raw[-1]["b"]


def reference_f32(feat_nhwc, raw, eps=EPS):
    """Pure-f32 reference of the original module math (BN inference mode)."""
    def conv(x, w, stride):
        return lax.conv_general_dilated(
            x, w, (stride, stride), [(1, 1), (1, 1)],
            dimension_numbers=("NHWC", "HWIO", "NHWC"))
    x = feat_nhwc
    for layer in raw[:-1]:
        y = conv(x, layer["w"], 2)
        s = layer["gamma"] / jnp.sqrt(layer["var"] + eps)
        y = y * s + (layer["beta"] - layer["mean"] * s)
        x = jnp.where(y >= 0, y, 0.2 * y)
    return conv(x, raw[-1]["w"], 1) + raw[-1]["b"]


if __name__ == "__main__":
    # Scaled-down Discriminator: real model uses d_model=256 per stream
    # (concat feat = 512 = ndf), n_layers_D=2.  Here d_model=8 -> feat channels 16 = ndf.
    d_model, n_layers = 8, 2
    ndf = 2 * d_model
    N, H, W = 2, 30, 30      # H=W=30 -> layer-1 M=450: exercises the ragged-M tile path

    key = jax.random.PRNGKey(0)
    kx, kc, kp = jax.random.split(key, 3)
    x_nchw = jax.random.normal(kx, (N, d_model, H, W), jnp.float32)
    cond_nchw = jax.random.normal(kc, (N, d_model, H, W), jnp.float32)

    raw = init_params(kp, ndf, n_layers)
    prepped = prepare_params(raw)
    pe_hwc, dim = make_positional_encoding_2d(d_model, H, W)

    def add_position2d(x_nhwc):
        # TODO(synk): Dropout(p=0.1) of PositionalEncoding2D is inference-mode identity.
        return x_nhwc * math.sqrt(dim) + pe_hwc[None]

    def make_feat(x, cond):  # NCHW -> NHWC, positional encoding, channel concat
        x = jnp.transpose(x, (0, 2, 3, 1))
        cond = jnp.transpose(cond, (0, 2, 3, 1))
        return jnp.concatenate([add_position2d(x), add_position2d(cond)], axis=-1)

    @jax.jit
    def forward(x, cond):
        return discriminator_forward(make_feat(x, cond), prepped)

    out = jax.block_until_ready(forward(x_nchw, cond_nchw))

    feat = make_feat(x_nchw, cond_nchw)
    ref_b = reference_bf16(feat, raw)
    ref_f = reference_f32(feat, raw)

    assert out.shape == ref_f.shape == (N, 6, 6, 1), out.shape
    err_b = float(jnp.max(jnp.abs(out - ref_b)))
    err_f = float(jnp.max(jnp.abs(out - ref_f)))
    # Tight check vs an XLA path with identical (bf16 operand / f32 accum) numerics.
    assert jnp.allclose(out, ref_b, atol=1e-2, rtol=1e-2), err_b
    # Loose check vs the pure-f32 module math (bf16 quantization tolerance).
    assert jnp.allclose(out, ref_f, atol=2.5e-1, rtol=5e-2), err_f

    _ = jnp.transpose(out, (0, 3, 1, 2))  # NCHW view, (2, 1, 6, 6) like PyTorch
    print("KERNEL_OK")
</pallas_src>

<mosaic_0001>
module attributes {stable_mosaic.version = 11 : i64} {
  func.func @_gemm_shift_act_kernel(%arg0: i32, %arg1: i32, %arg2: i32, %arg3: memref<256x256xbf16, #tpu.memory_space<vmem>>, %arg4: memref<256x128xbf16, #tpu.memory_space<vmem>>, %arg5: memref<1x128xf32, #tpu.memory_space<vmem>>, %arg6: memref<256x128xbf16, #tpu.memory_space<vmem>>, %arg7: memref<256x128xf32, #tpu.memory_space<vmem>>) attributes {dimension_semantics = [#tpu.dimension_semantics<parallel>, #tpu.dimension_semantics<parallel>, #tpu.dimension_semantics<arbitrary>], iteration_bounds = array<i64: 2, 1, 1>, scalar_prefetch = 0 : i64, scratch_operands = 1 : i64, tpu.core_type = #tpu.core_type<tc>, window_params = [{transform_indices = @transform_0, window_bounds = array<i64: 256, 256>}, {transform_indices = @transform_1, window_bounds = array<i64: 256, 128>}, {transform_indices = @transform_2, window_bounds = array<i64: 1, 128>}, {transform_indices = @transform_3, window_bounds = array<i64: 256, 128>}]} {
    %c0_i32 = arith.constant 0 : i32
    %0 = arith.cmpi eq, %arg2, %c0_i32 : i32
    %1 = arith.extui %0 : i1 to i32
    %c0_i32_0 = arith.constant 0 : i32
    %2 = arith.cmpi ne, %1, %c0_i32_0 : i32
    scf.if %2 {
      %cst_10 = arith.constant 0.000000e+00 : f32
      %12 = vector.broadcast %cst_10 : f32 to vector<256x128xf32>
      %c0_11 = arith.constant 0 : index
      %c0_12 = arith.constant 0 : index
      %13 = vector.load %arg7[%c0_11, %c0_12] : memref<256x128xf32, #tpu.memory_space<vmem>>, vector<256x128xf32>
      tpu.vector_store %arg7[%c0_11, %c0_12], %12 {strides = array<i32>} : memref<256x128xf32, #tpu.memory_space<vmem>>, vector<256x128xf32>,
    } else {
    }
    %c0 = arith.constant 0 : index
    %c0_1 = arith.constant 0 : index
    %3 = vector.load %arg7[%c0, %c0_1] : memref<256x128xf32, #tpu.memory_space<vmem>>, vector<256x128xf32>
    %c0_2 = arith.constant 0 : index
    %c0_3 = arith.constant 0 : index
    %4 = vector.load %arg3[%c0_2, %c0_3] : memref<256x256xbf16, #tpu.memory_space<vmem>>, vector<256x256xbf16>
    %c0_4 = arith.constant 0 : index
    %c0_5 = arith.constant 0 : index
    %5 = vector.load %arg4[%c0_4, %c0_5] : memref<256x128xbf16, #tpu.memory_space<vmem>>, vector<256x128xbf16>
    %cst = arith.constant dense<0.000000e+00> : vector<256x128xf32>
    %6 = tpu.matmul %4, %5, %cst {dimension_numbers = #tpu.dot_dimension_numbers<[1], [0], [0], [1], [0, 0, 1, 1], [], []>} : vector<256x256xbf16>, vector<256x128xbf16>, vector<256x128xf32> -> vector<256x128xf32>
    %7 = arith.addf %3, %6 : vector<256x128xf32>
    %c0_6 = arith.constant 0 : index
    %c0_7 = arith.constant 0 : index
    %8 = vector.load %arg7[%c0_6, %c0_7] : memref<256x128xf32, #tpu.memory_space<vmem>>, vector<256x128xf32>
    tpu.vector_store %arg7[%c0_6, %c0_7], %7 {strides = array<i32>} : memref<256x128xf32, #tpu.memory_space<vmem>>, vector<256x128xf32>,
    %c0_i32_8 = arith.constant 0 : i32
    %9 = arith.cmpi eq, %arg2, %c0_i32_8 : i32
    %10 = arith.extui %9 : i1 to i32
    %c0_i32_9 = arith.constant 0 : i32
    %11 = arith.cmpi ne, %10, %c0_i32_9 : i32
    scf.if %11 {
      %c0_10 = arith.constant 0 : index
      %c0_11 = arith.constant 0 : index
      %12 = vector.load %arg7[%c0_10, %c0_11] : memref<256x128xf32, #tpu.memory_space<vmem>>, vector<256x128xf32>
      %c0_12 = arith.constant 0 : index
      %c0_13 = arith.constant 0 : index
      %13 = vector.load %arg5[%c0_12, %c0_13] : memref<1x128xf32, #tpu.memory_space<vmem>>, vector<1x128xf32>
      %14 = vector.broadcast %13 : vector<1x128xf32> to vector<256x128xf32>
      %15 = arith.addf %12, %14 : vector<256x128xf32>
      %cst_14 = arith.constant 0.000000e+00 : f32
      %16 = vector.broadcast %cst_14 : f32 to vector<256x128xf32>
      %17 = arith.cmpf oge, %15, %16 : vector<256x128xf32>
      %cst_15 = arith.constant 2.000000e-01 : f32
      %18 = vector.broadcast %cst_15 : f32 to vector<256x128xf32>
      %19 = arith.mulf %18, %15 : vector<256x128xf32>
      %20 = arith.select %17, %15, %19 : vector<256x128xi1>, vector<256x128xf32>
      %21 = arith.truncf %20 : vector<256x128xf32> to vector<256x128xbf16>
      %c0_16 = arith.constant 0 : index
      %c0_17 = arith.constant 0 : index
      %22 = vector.load %arg6[%c0_16, %c0_17] : memref<256x128xbf16, #tpu.memory_space<vmem>>, vector<256x128xbf16>
      tpu.vector_store %arg6[%c0_16, %c0_17], %21 {strides = array<i32>} : memref<256x128xbf16, #tpu.memory_space<vmem>>, vector<256x128xbf16>,
    } else {
    }
    return
  }
  func.func @transform_0(%arg0: i32, %arg1: i32, %arg2: i32) -> (i32, i32) {
    %c0_i32 = arith.constant 0 : i32
    return %arg0, %arg2 : i32, i32
  }
  func.func @transform_1(%arg0: i32, %arg1: i32, %arg2: i32) -> (i32, i32) {
    %c0_i32 = arith.constant 0 : i32
    return %arg2, %arg1 : i32, i32
  }
  func.func @transform_2(%arg0: i32, %arg1: i32, %arg2: i32) -> (i32, i32) {
    %c0_i32 = arith.constant 0 : i32
    %c0_i32_0 = arith.constant 0 : i32
    return %c0_i32, %arg1 : i32, i32
  }
  func.func @transform_3(%arg0: i32, %arg1: i32, %arg2: i32) -> (i32, i32) {
    %c0_i32 = arith.constant 0 : i32
    return %arg0, %arg1 : i32, i32
  }
}

module attributes {stable_mosaic.version = 11 : i64} {
  func.func @_gemm_shift_act_kernel(%arg0: i32, %arg1: i32, %arg2: i32, %arg3: memref<64x2048xbf16, #tpu.memory_space<vmem>>, %arg4: memref<2048x128xbf16, #tpu.memory_space<vmem>>, %arg5: memref<1x128xf32, #tpu.memory_space<vmem>>, %arg6: memref<64x128xbf16, #tpu.memory_space<vmem>>, %arg7: memref<64x128xf32, #tpu.memory_space<vmem>>) attributes {dimension_semantics = [#tpu.dimension_semantics<parallel>, #tpu.dimension_semantics<parallel>, #tpu.dimension_semantics<arbitrary>], iteration_bounds = array<i64: 2, 1, 1>, scalar_prefetch = 0 : i64, scratch_operands = 1 : i64, tpu.core_type = #tpu.core_type<tc>, window_params = [{transform_indices = @transform_0, window_bounds = array<i64: 64, 2048>}, {transform_indices = @transform_1, window_bounds = array<i64: 2048, 128>}, {transform_indices = @transform_2, window_bounds = array<i64: 1, 128>}, {transform_indices = @transform_3, window_bounds = array<i64: 64, 128>}]} {
    %c0_i32 = arith.constant 0 : i32
    %0 = arith.cmpi eq, %arg2, %c0_i32 : i32
    %1 = arith.extui %0 : i1 to i32
    %c0_i32_0 = arith.constant 0 : i32
    %2 = arith.cmpi ne, %1, %c0_i32_0 : i32
    scf.if %2 {
      %cst_10 = arith.constant 0.000000e+00 : f32
      %12 = vector.broadcast %cst_10 : f32 to vector<64x128xf32>
      %c0_11 = arith.constant 0 : index
      %c0_12 = arith.constant 0 : index
      %13 = vector.load %arg7[%c0_11, %c0_12] : memref<64x128xf32, #tpu.memory_space<vmem>>, vector<64x128xf32>
      tpu.vector_store %arg7[%c0_11, %c0_12], %12 {strides = array<i32>} : memref<64x128xf32, #tpu.memory_space<vmem>>, vector<64x128xf32>,
    } else {
    }
    %c0 = arith.constant 0 : index
    %c0_1 = arith.constant 0 : index
    %3 = vector.load %arg7[%c0, %c0_1] : memref<64x128xf32, #tpu.memory_space<vmem>>, vector<64x128xf32>
    %c0_2 = arith.constant 0 : index
    %c0_3 = arith.constant 0 : index
    %4 = vector.load %arg3[%c0_2, %c0_3] : memref<64x2048xbf16, #tpu.memory_space<vmem>>, vector<64x2048xbf16>
    %c0_4 = arith.constant 0 : index
    %c0_5 = arith.constant 0 : index
    %5 = vector.load %arg4[%c0_4, %c0_5] : memref<2048x128xbf16, #tpu.memory_space<vmem>>, vector<2048x128xbf16>
    %cst = arith.constant dense<0.000000e+00> : vector<64x128xf32>
    %6 = tpu.matmul %4, %5, %cst {dimension_numbers = #tpu.dot_dimension_numbers<[1], [0], [0], [1], [0, 0, 1, 1], [], []>} : vector<64x2048xbf16>, vector<2048x128xbf16>, vector<64x128xf32> -> vector<64x128xf32>
    %7 = arith.addf %3, %6 : vector<64x128xf32>
    %c0_6 = arith.constant 0 : index
    %c0_7 = arith.constant 0 : index
    %8 = vector.load %arg7[%c0_6, %c0_7] : memref<64x128xf32, #tpu.memory_space<vmem>>, vector<64x128xf32>
    tpu.vector_store %arg7[%c0_6, %c0_7], %7 {strides = array<i32>} : memref<64x128xf32, #tpu.memory_space<vmem>>, vector<64x128xf32>,
    %c0_i32_8 = arith.constant 0 : i32
    %9 = arith.cmpi eq, %arg2, %c0_i32_8 : i32
    %10 = arith.extui %9 : i1 to i32
    %c0_i32_9 = arith.constant 0 : i32
    %11 = arith.cmpi ne, %10, %c0_i32_9 : i32
    scf.if %11 {
      %c0_10 = arith.constant 0 : index
      %c0_11 = arith.constant 0 : index
      %12 = vector.load %arg7[%c0_10, %c0_11] : memref<64x128xf32, #tpu.memory_space<vmem>>, vector<64x128xf32>
      %c0_12 = arith.constant 0 : index
      %c0_13 = arith.constant 0 : index
      %13 = vector.load %arg5[%c0_12, %c0_13] : memref<1x128xf32, #tpu.memory_space<vmem>>, vector<1x128xf32>
      %14 = vector.broadcast %13 : vector<1x128xf32> to vector<64x128xf32>
      %15 = arith.addf %12, %14 : vector<64x128xf32>
      %cst_14 = arith.constant 0.000000e+00 : f32
      %16 = vector.broadcast %cst_14 : f32 to vector<64x128xf32>
      %17 = arith.cmpf oge, %15, %16 : vector<64x128xf32>
      %cst_15 = arith.constant 2.000000e-01 : f32
      %18 = vector.broadcast %cst_15 : f32 to vector<64x128xf32>
      %19 = arith.mulf %18, %15 : vector<64x128xf32>
      %20 = arith.select %17, %15, %19 : vector<64x128xi1>, vector<64x128xf32>
      %21 = arith.truncf %20 : vector<64x128xf32> to vector<64x128xbf16>
      %c0_16 = arith.constant 0 : index
      %c0_17 = arith.constant 0 : index
      %22 = vector.load %arg6[%c0_16, %c0_17] : memref<64x128xbf16, #tpu.memory_space<vmem>>, vector<64x128xbf16>
      tpu.vector_store %arg6[%c0_16, %c0_17], %21 {strides = array<i32>} : memref<64x128xbf16, #tpu.memory_space<vmem>>, vector<64x128xbf16>,
    } else {
    }
    return
  }
  func.func @transform_0(%arg0: i32, %arg1: i32, %arg2: i32) -> (i32, i32) {
    %c0_i32 = arith.constant 0 : i32
    return %arg0, %arg2 : i32, i32
  }
  func.func @transform_1(%arg0: i32, %arg1: i32, %arg2: i32) -> (i32, i32) {
    %c0_i32 = arith.constant 0 : i32
    return %arg2, %arg1 : i32, i32
  }
  func.func @transform_2(%arg0: i32, %arg1: i32, %arg2: i32) -> (i32, i32) {
    %c0_i32 = arith.constant 0 : i32
    %c0_i32_0 = arith.constant 0 : i32
    return %c0_i32, %arg1 : i32, i32
  }
  func.func @transform_3(%arg0: i32, %arg1: i32, %arg2: i32) -> (i32, i32) {
    %c0_i32 = arith.constant 0 : i32
    return %arg0, %arg1 : i32, i32
  }
}

module attributes {stable_mosaic.version = 11 : i64} {
  func.func @_gemm_shift_act_kernel(%arg0: i32, %arg1: i32, %arg2: i32, %arg3: memref<48x2048xbf16, #tpu.memory_space<vmem>>, %arg4: memref<2048x128xbf16, #tpu.memory_space<vmem>>, %arg5: memref<1x128xf32, #tpu.memory_space<vmem>>, %arg6: memref<48x128xf32, #tpu.memory_space<vmem>>, %arg7: memref<48x128xf32, #tpu.memory_space<vmem>>) attributes {dimension_semantics = [#tpu.dimension_semantics<parallel>, #tpu.dimension_semantics<parallel>, #tpu.dimension_semantics<arbitrary>], iteration_bounds = array<i64: 2, 1, 1>, scalar_prefetch = 0 : i64, scratch_operands = 1 : i64, tpu.core_type = #tpu.core_type<tc>, window_params = [{transform_indices = @transform_0, window_bounds = array<i64: 48, 2048>}, {transform_indices = @transform_1, window_bounds = array<i64: 2048, 128>}, {transform_indices = @transform_2, window_bounds = array<i64: 1, 128>}, {transform_indices = @transform_3, window_bounds = array<i64: 48, 128>}]} {
    %c0_i32 = arith.constant 0 : i32
    %0 = arith.cmpi eq, %arg2, %c0_i32 : i32
    %1 = arith.extui %0 : i1 to i32
    %c0_i32_0 = arith.constant 0 : i32
    %2 = arith.cmpi ne, %1, %c0_i32_0 : i32
    scf.if %2 {
      %cst_10 = arith.constant 0.000000e+00 : f32
      %12 = vector.broadcast %cst_10 : f32 to vector<48x128xf32>
      %c0_11 = arith.constant 0 : index
      %c0_12 = arith.constant 0 : index
      %13 = vector.load %arg7[%c0_11, %c0_12] : memref<48x128xf32, #tpu.memory_space<vmem>>, vector<48x128xf32>
      tpu.vector_store %arg7[%c0_11, %c0_12], %12 {strides = array<i32>} : memref<48x128xf32, #tpu.memory_space<vmem>>, vector<48x128xf32>,
    } else {
    }
    %c0 = arith.constant 0 : index
    %c0_1 = arith.constant 0 : index
    %3 = vector.load %arg7[%c0, %c0_1] : memref<48x128xf32, #tpu.memory_space<vmem>>, vector<48x128xf32>
    %c0_2 = arith.constant 0 : index
    %c0_3 = arith.constant 0 : index
    %4 = vector.load %arg3[%c0_2, %c0_3] : memref<48x2048xbf16, #tpu.memory_space<vmem>>, vector<48x2048xbf16>
    %c0_4 = arith.constant 0 : index
    %c0_5 = arith.constant 0 : index
    %5 = vector.load %arg4[%c0_4, %c0_5] : memref<2048x128xbf16, #tpu.memory_space<vmem>>, vector<2048x128xbf16>
    %cst = arith.constant dense<0.000000e+00> : vector<48x128xf32>
    %6 = tpu.matmul %4, %5, %cst {dimension_numbers = #tpu.dot_dimension_numbers<[1], [0], [0], [1], [0, 0, 1, 1], [], []>} : vector<48x2048xbf16>, vector<2048x128xbf16>, vector<48x128xf32> -> vector<48x128xf32>
    %7 = arith.addf %3, %6 : vector<48x128xf32>
    %c0_6 = arith.constant 0 : index
    %c0_7 = arith.constant 0 : index
    %8 = vector.load %arg7[%c0_6, %c0_7] : memref<48x128xf32, #tpu.memory_space<vmem>>, vector<48x128xf32>
    tpu.vector_store %arg7[%c0_6, %c0_7], %7 {strides = array<i32>} : memref<48x128xf32, #tpu.memory_space<vmem>>, vector<48x128xf32>,
    %c0_i32_8 = arith.constant 0 : i32
    %9 = arith.cmpi eq, %arg2, %c0_i32_8 : i32
    %10 = arith.extui %9 : i1 to i32
    %c0_i32_9 = arith.constant 0 : i32
    %11 = arith.cmpi ne, %10, %c0_i32_9 : i32
    scf.if %11 {
      %c0_10 = arith.constant 0 : index
      %c0_11 = arith.constant 0 : index
      %12 = vector.load %arg7[%c0_10, %c0_11] : memref<48x128xf32, #tpu.memory_space<vmem>>, vector<48x128xf32>
      %c0_12 = arith.constant 0 : index
      %c0_13 = arith.constant 0 : index
      %13 = vector.load %arg5[%c0_12, %c0_13] : memref<1x128xf32, #tpu.memory_space<vmem>>, vector<1x128xf32>
      %14 = vector.broadcast %13 : vector<1x128xf32> to vector<48x128xf32>
      %15 = arith.addf %12, %14 : vector<48x128xf32>
      %c0_14 = arith.constant 0 : index
      %c0_15 = arith.constant 0 : index
      %16 = vector.load %arg6[%c0_14, %c0_15] : memref<48x128xf32, #tpu.memory_space<vmem>>, vector<48x128xf32>
      tpu.vector_store %arg6[%c0_14, %c0_15], %15 {strides = array<i32>} : memref<48x128xf32, #tpu.memory_space<vmem>>, vector<48x128xf32>,
    } else {
    }
    return
  }
  func.func @transform_0(%arg0: i32, %arg1: i32, %arg2: i32) -> (i32, i32) {
    %c0_i32 = arith.constant 0 : i32
    return %arg0, %arg2 : i32, i32
  }
  func.func @transform_1(%arg0: i32, %arg1: i32, %arg2: i32) -> (i32, i32) {
    %c0_i32 = arith.constant 0 : i32
    return %arg2, %arg1 : i32, i32
  }
  func.func @transform_2(%arg0: i32, %arg1: i32, %arg2: i32) -> (i32, i32) {
    %c0_i32 = arith.constant 0 : i32
    %c0_i32_0 = arith.constant 0 : i32
    return %c0_i32, %arg1 : i32, i32
  }
  func.func @transform_3(%arg0: i32, %arg1: i32, %arg2: i32) -> (i32, i32) {
    %c0_i32 = arith.constant 0 : i32
    return %arg0, %arg1 : i32, i32
  }
}

</mosaic_0001>

<llo_original>
// kernel: forward.3
$region0: #{forward.3}
  #allocation0 [shape = 'u32[]', space=smem, size = 0x4, offset = 0x4, fixed_abs, tag = 'smem constant byte address 0x4 - core index']
  #allocation1 [shape = 'u32[144,128]{1,0:T(1,128)}', space=vmem, size = 0x12000, scoped, tag = 'internal scratch']
  #allocation2 [shape = 'f32[256,128]{1,0:T(8,128)}', space=vmem, size = 0x20000, scoped, tag = 'scratch operand']
  %s0 = inlined_call_operand.vmem [shape: bf16[450,256], index: 0, kind: input, shape index: {}]
  %s1 = inlined_call_operand.vmem [shape: bf16[256,128], index: 1, kind: input, shape index: {}]
  %s2 = inlined_call_operand.vmem [shape: f32[1,128], index: 2, kind: input, shape index: {}]
  %s3 = inlined_call_operand.vmem [shape: bf16[450,128], index: 3, kind: output, shape index: {}]
  %s4 = sld [smem:[#allocation0]]
  $region97: #{forward.3} parent=0
    _
  %s6 = ssub.s32 1, %s4
  %s7 = scalar_select 0, %s6, %s4
  $region1: #{forward.3} parent=0
    #allocation3 [shape = 'u8[131072]{0}', space=vmem, size = 0x20000, scoped, tag = 'output window, operand 0']
    loop: start=0, step=1, limit=4
    $region2: #{forward.3} parent=1 // loop_pre_header
      _
    $region3: #{forward.3} parent=1 // loop_header
      %s9 = sphi 0, %s13
      %p10 = scmp.ge.s32.totalorder %s9, 4
      %s16 = sphi 0, %s35
      %s17 = sphi 0, %s31
      %s18 = sphi 0, %s27
      %s19 = sphi 0, %s16
      %s20 = sphi 0, %s17
      %s21 = sphi 0, %s18
      %s22 = sphi 0, %s19
      %s23 = sphi 0, %s20
      %s24 = sphi 0, %s21
      %s40 = sphi 0, %s42
      %s43 = sphi 0, %s40
      %s44 = sphi 0, %s43
      %s60 = sphi 0, %s44
      %s68 = sphi 0, %s70
      %s71 = sphi 0, %s68
      %s72 = sphi 0, %s71
      %s88 = sphi 0, %s72
      %s94 = sphi 0, %s96
      %s97 = sphi 0, %s94
      %s98 = sphi 0, %s97
      %s114 = sphi 0, %s98
      %s122 = sphi 0, %s124
      %s125 = sphi 0, %s122
      %s126 = sphi 0, %s125
      %s142 = sphi 0, %s126
    $region4: #{forward.3} parent=1 // loop_header_branch
      %12 = sbr.rel (%p10) target = $region8
    $region5: #{forward.3} parent=1 // loop_body
      %s14 = ssub.s32 %s9, 1
      %s15 = ssub.s32 %s9, 2
      %s25 = sadd.s32 1, %s18
      %p26 = scmp.ge.s32.totalorder %s25, 1
      %s27 = scalar_select %p26, 0, %s25
      %s28 = sadd.s32 1, %s17
      %s29 = scalar_select %p26, %s28, %s17
      %p30 = scmp.ge.s32.totalorder %s29, 1
      %s31 = scalar_select %p30, 0, %s29
      %s32 = sadd.s32 1, %s16
      %s33 = scalar_select %p30, %s32, %s16
      %p34 = scmp.ge.s32.totalorder %s33, 2
      %s35 = scalar_select %p34, 0, %s33
      %s36 = ssub.s32 %s16, %s35
      %s37 = ssub.s32 %s18, %s27
      %s38 = sor.u32 %s36, %s37
      %p39 = scmp.eq.s32.totalorder %s38, 0
      %s41 = sadd.s32 %s40, 1
      %s42 = scalar_select %p39, %s40, %s41
      %p45 = pneg %p39
      %p46 = scmp.eq.s32.totalorder %s9, 1
      %p47 = por %p45, %p46
      %p48 = scmp.ne.s32.totalorder %s40, %s43
      %p49 = scmp.eq.s32.totalorder %s9, 0
      %p50 = por %p48, %p49
      %p51 = scmp.ne.s32.totalorder %s40, %s43
      %p52 = scmp.eq.s32.totalorder %s14, 1
      %p53 = por %p51, %p52
      %p54 = scmp.ne.s32.totalorder %s43, %s44
      %p55 = scmp.eq.s32.totalorder %s14, 0
      %p56 = por %p54, %p55
      %p57 = scmp.ne.s32.totalorder %s43, %s44
      %p58 = scmp.eq.s32.totalorder %s15, 1
      %p59 = por %p57, %p58
      %p61 = scmp.ne.s32.totalorder %s44, %s60
      %p62 = scmp.eq.s32.totalorder %s15, 0
      %p63 = por %p61, %p62
      %s64 = ssub.s32 %s18, %s27
      %s65 = ssub.s32 %s17, %s31
      %s66 = sor.u32 %s64, %s65
      %p67 = scmp.eq.s32.totalorder %s66, 0
      %s69 = sadd.s32 %s68, 1
      %s70 = scalar_select %p67, %s68, %s69
      %p73 = pneg %p67
      %p74 = scmp.eq.s32.totalorder %s9, 1
      %p75 = por %p73, %p74
      %p76 = scmp.ne.s32.totalorder %s68, %s71
      %p77 = scmp.eq.s32.totalorder %s9, 0
      %p78 = por %p76, %p77
      %p79 = scmp.ne.s32.totalorder %s68, %s71
      %p80 = scmp.eq.s32.totalorder %s14, 1
      %p81 = por %p79, %p80
      %p82 = scmp.ne.s32.totalorder %s71, %s72
      %p83 = scmp.eq.s32.totalorder %s14, 0
      %p84 = por %p82, %p83
      %p85 = scmp.ne.s32.totalorder %s71, %s72
      %p86 = scmp.eq.s32.totalorder %s15, 1
      %p87 = por %p85, %p86
      %p89 = scmp.ne.s32.totalorder %s72, %s88
      %p90 = scmp.eq.s32.totalorder %s15, 0
      %p91 = por %p89, %p90
      %s92 = ssub.s32 %s17, %s31
      %p93 = scmp.eq.s32.totalorder %s92, 0
      %s95 = sadd.s32 %s94, 1
      %s96 = scalar_select %p93, %s94, %s95
      %p99 = pneg %p93
      %p100 = scmp.eq.s32.totalorder %s9, 1
      %p101 = por %p99, %p100
      %p102 = scmp.ne.s32.totalorder %s94, %s97
      %p103 = scmp.eq.s32.totalorder %s9, 0
      %p104 = por %p102, %p103
      %p105 = scmp.ne.s32.totalorder %s94, %s97
      %p106 = scmp.eq.s32.totalorder %s14, 1
      %p107 = por %p105, %p106
      %p108 = scmp.ne.s32.totalorder %s97, %s98
      %p109 = scmp.eq.s32.totalorder %s14, 0
      %p110 = por %p108, %p109
      %p111 = scmp.ne.s32.totalorder %s97, %s98
      %p112 = scmp.eq.s32.totalorder %s15, 1
      %p113 = por %p111, %p112
      %p115 = scmp.ne.s32.totalorder %s98, %s114
      %p116 = scmp.eq.s32.totalorder %s15, 0
      %p117 = por %p115, %p116
      %s118 = ssub.s32 %s16, %s35
      %s119 = ssub.s32 %s17, %s31
      %s120 = sor.u32 %s118, %s119
      %p121 = scmp.eq.s32.totalorder %s120, 0
      %s123 = sadd.s32 %s122, 1
      %s124 = scalar_select %p121, %s122, %s123
      %p127 = pneg %p121
      %p128 = scmp.eq.s32.totalorder %s9, 1
      %p129 = por %p127, %p128
      %p130 = scmp.ne.s32.totalorder %s122, %s125
      %p131 = scmp.eq.s32.totalorder %s9, 0
      %p132 = por %p130, %p131
      %p133 = scmp.ne.s32.totalorder %s122, %s125
      %p134 = scmp.eq.s32.totalorder %s14, 1
      %p135 = por %p133, %p134
      %p136 = scmp.ne.s32.totalorder %s125, %s126
      %p137 = scmp.eq.s32.totalorder %s14, 0
      %p138 = por %p136, %p137
      %p139 = scmp.ne.s32.totalorder %s125, %s126
      %p140 = scmp.eq.s32.totalorder %s15, 1
      %p141 = por %p139, %p140
      %p143 = scmp.ne.s32.totalorder %s126, %s142
      %p144 = scmp.eq.s32.totalorder %s15, 0
      %p145 = por %p143, %p144
      %p146 = scmp.le.s32.totalorder 1, %s9
      %p147 = scmp.lt.s32.totalorder %s9, 3
      %p148 = pnand %p146, %p147
      %p149 = pneg %p148
      // Predicated region
      $region9: #{forward.3} parent=5 // pred_check
        _
      $region10: #{forward.3} parent=5 // pred_check_branch
        %151 = sbr.rel (%p148) target = $region12
      $region11: #{forward.3} parent=5 // pred_region
        %s152 = ssub.s32 %s9, 1
        // Predicated region
        $region13: #{forward.3} parent=11 // pred_check
          %p153 = pneg %p84
        $region14: #{forward.3} parent=11 // pred_check_branch
          %155 = sbr.rel (%p153) target = $region16
        $region15: #{forward.3} parent=11 // pred_region
          %s156 = smul.u32 32, %s21
          %p157 = scmp.lt.s32.totalorder %s156, 31
          %s158 = scalar_select %p157, %s156, 31
          %p159 = scmp.lt.s32.totalorder %s20, 0
          %s160 = scalar_select %p159, %s20, 0
          %s161 = sadd.s32 %s160, %s158
          %s162 = smul.addr %s161, 4
          %s163 = scalar_lea.vmem %s1, %s162
          %s164 = smul.u32 32, %s21
        $region16: #{forward.3} parent=11 // pred_fallthru
          _
        // Predicated region
        $region17: #{forward.3} parent=11 // pred_check
          %p165 = pneg %p110
        $region18: #{forward.3} parent=11 // pred_check_branch
          %167 = sbr.rel (%p165) target = $region20
        $region19: #{forward.3} parent=11 // pred_region
          %p168 = scmp.lt.s32.totalorder %s20, 0
          %s169 = scalar_select %p168, %s20, 0
          %s170 = scalar_lea.vmem %s2, %s169
        $region20: #{forward.3} parent=11 // pred_fallthru
          _
      $region12: #{forward.3} parent=5 // pred_fallthru
        _
      %p171 = scmp.lt.s32.totalorder %s9, 2
      // Predicated region
      $region21: #{forward.3} parent=5 // pred_check
        %p172 = pneg %p171
      $region22: #{forward.3} parent=5 // pred_check_branch
        %174 = sbr.rel (%p172) target = $region24
      $region23: #{forward.3} parent=5 // pred_region
        // Predicated region
        $region25: #{forward.3} parent=23 // pred_check
          %p175 = pneg %p50
        $region26: #{forward.3} parent=23 // pred_check_branch
          %177 = sbr.rel (%p175) target = $region28
        $region27: #{forward.3} parent=23 // pred_region
          %s178 = smul.u32 32, %s16
          %s179 = smul.u32 2, %s18
          %s180 = ssub.s32 57, %s178
          %p181 = scmp.lt.s32.totalorder %s180, 32
          %s182 = scalar_select %p181, %s180, 32
          %s183 = smul.u32 64, %s182
          %s184 = smul.u32 %s183, 2
          %p185 = scmp.lt.s32.totalorder %s178, 56
          %s186 = scalar_select %p185, %s178, 56
          %p187 = scmp.lt.s32.totalorder %s179, 1
          %s188 = scalar_select %p187, %s179, 1
          %s189 = smul.addr %s186, 2
          %s190 = sadd.s32 %s188, %s189
          %s191 = smul.addr %s190, 4
          %s192 = scalar_lea.vmem %s0, %s191
          %s193 = smul.u32 32, %s16
          %s194 = smul.u32 2, %s18
          %s195 = ssub.s32 57, %s193
          %p196 = scmp.lt.s32.totalorder %s195, 32
          %s197 = scalar_select %p196, %s195, 32
          %s198 = smul.u32 64, %s197
          %s199 = smul.u32 %s198, 2
        $region28: #{forward.3} parent=23 // pred_fallthru
          _
      $region24: #{forward.3} parent=5 // pred_fallthru
        _
      %p200 = scmp.le.s32.totalorder 1, %s9
      %p201 = scmp.lt.s32.totalorder %s9, 3
      %p202 = pnand %p200, %p201
      %p203 = pneg %p202
      // Predicated region
      $region29: #{forward.3} parent=5 // pred_check
        _
      $region30: #{forward.3} parent=5 // pred_check_branch
        %205 = sbr.rel (%p202) target = $region32
      $region31: #{forward.3} parent=5 // pred_region
        %s206 = ssub.s32 %s9, 1
        %s207 = smul.u32 32, %s19
        %s208 = smul.u32 2, %s21
        %s209 = ssub.s32 57, %s207
        %p210 = scmp.lt.s32.totalorder %s209, 32
        %s211 = scalar_select %p210, %s209, 32
        %s212 = smul.u32 64, %s211
        %s213 = smul.u32 %s212, 2
        %p214 = scmp.lt.s32.totalorder %s207, 56
        %s215 = scalar_select %p214, %s207, 56
        %p216 = scmp.lt.s32.totalorder %s208, 1
        %s217 = scalar_select %p216, %s208, 1
        %s218 = smul.addr %s215, 2
        %s219 = sadd.s32 %s217, %s218
        %s220 = smul.addr %s219, 4
        %s221 = scalar_lea.vmem %s0, %s220
        %p222 = pneg %p56
        %p223 = pneg %p53
        %s224 = smul.u32 32, %s21
        %p225 = scmp.lt.s32.totalorder %s224, 31
        %s226 = scalar_select %p225, %s224, 31
        %p227 = scmp.lt.s32.totalorder %s20, 0
        %s228 = scalar_select %p227, %s20, 0
        %s229 = sadd.s32 %s228, %s226
        %s230 = smul.addr %s229, 4
        %s231 = scalar_lea.vmem %s1, %s230
        %p232 = pneg %p84
        %p233 = pneg %p81
        %p234 = scmp.lt.s32.totalorder %s20, 0
        %s235 = scalar_select %p234, %s20, 0
        %s236 = scalar_lea.vmem %s2, %s235
        %p237 = pneg %p110
        %p238 = pneg %p107
        %p239 = pneg %p138
        %p240 = pneg %p135
        %s241 = sand.u32 %s125, 1
        %s242 = sand.u32 %s125, 1
        %s243 = smul.addr %s242, 128
        %s244 = scalar_lea.vmem [#allocation3], %s243
        %s245 = smul.u32 32, %s19
        %s246 = smul.u32 2, %s21
        %s247 = ssub.s32 57, %s245
        %p248 = scmp.lt.s32.totalorder %s247, 32
        %s249 = scalar_select %p248, %s247, 32
        %s250 = smul.u32 64, %s249
        %s251 = smul.u32 %s250, 2
        %p252 = scmp.lt.s32.totalorder %s245, 56
        %s253 = scalar_select %p252, %s245, 56
        %p254 = scmp.lt.s32.totalorder %s246, 1
        %s255 = scalar_select %p254, %s246, 1
        %s256 = smul.addr %s253, 2
        %s257 = sadd.s32 %s255, %s256
        %s258 = smul.addr %s257, 4
        %s259 = scalar_lea.vmem %s0, %s258
        %s260 = smul.u32 32, %s19
        %s261 = smul.u32 2, %s21
        %s262 = ssub.s32 57, %s260
        %p263 = scmp.lt.s32.totalorder %s262, 32
        %s264 = scalar_select %p263, %s262, 32
        %s265 = smul.u32 64, %s264
        %s266 = smul.u32 %s265, 2
        %s267 = smul.u32 32, %s21
        %p268 = scmp.lt.s32.totalorder %s267, 31
        %s269 = scalar_select %p268, %s267, 31
        %p270 = scmp.lt.s32.totalorder %s20, 0
        %s271 = scalar_select %p270, %s20, 0
        %s272 = sadd.s32 %s271, %s269
        %s273 = smul.addr %s272, 4
        %s274 = scalar_lea.vmem %s1, %s273
        %s275 = smul.u32 32, %s21
        %p276 = scmp.lt.s32.totalorder %s20, 0
        %s277 = scalar_select %p276, %s20, 0
        %s278 = scalar_lea.vmem %s2, %s277
        %s279 = smul.u32 32, %s19
        %s280 = ssub.s32 57, %s279
        %p281 = scmp.lt.s32.totalorder %s280, 32
        %s282 = scalar_select %p281, %s280, 32
        %s283 = smul.u32 64, %s282
        %p285 = scmp.eq.s32.totalorder %s21, 0
        // Predicated region
        $region33: #{forward.3} parent=31 // pred_check
          %p286 = pneg %p285
        $region34: #{forward.3} parent=31 // pred_check_branch
          %288 = sbr.rel (%p286) target = $region36
        $region35: #{forward.3} parent=31 // pred_region
          %289 = vst [vmem:[#allocation2] sm:$0xff] 0.0
          %290 = vst [vmem:[#allocation2 + $0x8] sm:$0xff] 0.0
          %291 = vst [vmem:[#allocation2 + $0x10] sm:$0xff] 0.0
          %292 = vst [vmem:[#allocation2 + $0x18] sm:$0xff] 0.0
          %293 = vst [vmem:[#allocation2 + $0x20] sm:$0xff] 0.0
          %294 = vst [vmem:[#allocation2 + $0x28] sm:$0xff] 0.0
          %295 = vst [vmem:[#allocation2 + $0x30] sm:$0xff] 0.0
          %296 = vst [vmem:[#allocation2 + $0x38] sm:$0xff] 0.0
          %297 = vst [vmem:[#allocation2 + $0x40] sm:$0xff] 0.0
          %298 = vst [vmem:[#allocation2 + $0x48] sm:$0xff] 0.0
          %299 = vst [vmem:[#allocation2 + $0x50] sm:$0xff] 0.0
          %300 = vst [vmem:[#allocation2 + $0x58] sm:$0xff] 0.0
          %301 = vst [vmem:[#allocation2 + $0x60] sm:$0xff] 0.0
          %302 = vst [vmem:[#allocation2 + $0x68] sm:$0xff] 0.0
          %303 = vst [vmem:[#allocation2 + $0x70] sm:$0xff] 0.0
          %304 = vst [vmem:[#allocation2 + $0x78] sm:$0xff] 0.0
          %305 = vst [vmem:[#allocation2 + $0x80] sm:$0xff] 0.0
          %306 = vst [vmem:[#allocation2 + $0x88] sm:$0xff] 0.0
          %307 = vst [vmem:[#allocation2 + $0x90] sm:$0xff] 0.0
          %308 = vst [vmem:[#allocation2 + $0x98] sm:$0xff] 0.0
          %309 = vst [vmem:[#allocation2 + $0xa0] sm:$0xff] 0.0
          %310 = vst [vmem:[#allocation2 + $0xa8] sm:$0xff] 0.0
          %311 = vst [vmem:[#allocation2 + $0xb0] sm:$0xff] 0.0
          %312 = vst [vmem:[#allocation2 + $0xb8] sm:$0xff] 0.0
          %313 = vst [vmem:[#allocation2 + $0xc0] sm:$0xff] 0.0
          %314 = vst [vmem:[#allocation2 + $0xc8] sm:$0xff] 0.0
          %315 = vst [vmem:[#allocation2 + $0xd0] sm:$0xff] 0.0
          %316 = vst [vmem:[#allocation2 + $0xd8] sm:$0xff] 0.0
          %317 = vst [vmem:[#allocation2 + $0xe0] sm:$0xff] 0.0
          %318 = vst [vmem:[#allocation2 + $0xe8] sm:$0xff] 0.0
          %319 = vst [vmem:[#allocation2 + $0xf0] sm:$0xff] 0.0
          %320 = vst [vmem:[#allocation2 + $0xf8] sm:$0xff] 0.0
        $region36: #{forward.3} parent=31 // pred_fallthru
          _
        %v321 = vld [vmem:[#allocation2] sm:$0xff]
        %v322 = vld [vmem:[#allocation2 + $0x8] sm:$0xff]
        %v323 = vld [vmem:[#allocation2 + $0x10] sm:$0xff]
        %v324 = vld [vmem:[#allocation2 + $0x18] sm:$0xff]
        %v325 = vld [vmem:[#allocation2 + $0x20] sm:$0xff]
        %v326 = vld [vmem:[#allocation2 + $0x28] sm:$0xff]
        %v327 = vld [vmem:[#allocation2 + $0x30] sm:$0xff]
        %v328 = vld [vmem:[#allocation2 + $0x38] sm:$0xff]
        %v329 = vld [vmem:[#allocation2 + $0x40] sm:$0xff]
        %v330 = vld [vmem:[#allocation2 + $0x48] sm:$0xff]
        %v331 = vld [vmem:[#allocation2 + $0x50] sm:$0xff]
        %v332 = vld [vmem:[#allocation2 + $0x58] sm:$0xff]
        %v333 = vld [vmem:[#allocation2 + $0x60] sm:$0xff]
        %v334 = vld [vmem:[#allocation2 + $0x68] sm:$0xff]
        %v335 = vld [vmem:[#allocation2 + $0x70] sm:$0xff]
        %v336 = vld [vmem:[#allocation2 + $0x78] sm:$0xff]
        %v337 = vld [vmem:[#allocation2 + $0x80] sm:$0xff]
        %v338 = vld [vmem:[#allocation2 + $0x88] sm:$0xff]
        %v339 = vld [vmem:[#allocation2 + $0x90] sm:$0xff]
        %v340 = vld [vmem:[#allocation2 + $0x98] sm:$0xff]
        %v341 = vld [vmem:[#allocation2 + $0xa0] sm:$0xff]
        %v342 = vld [vmem:[#allocation2 + $0xa8] sm:$0xff]
        %v343 = vld [vmem:[#allocation2 + $0xb0] sm:$0xff]
        %v344 = vld [vmem:[#allocation2 + $0xb8] sm:$0xff]
        %v345 = vld [vmem:[#allocation2 + $0xc0] sm:$0xff]
        %v346 = vld [vmem:[#allocation2 + $0xc8] sm:$0xff]
        %v347 = vld [vmem:[#allocation2 + $0xd0] sm:$0xff]
        %v348 = vld [vmem:[#allocation2 + $0xd8] sm:$0xff]
        %v349 = vld [vmem:[#allocation2 + $0xe0] sm:$0xff]
        %v350 = vld [vmem:[#allocation2 + $0xe8] sm:$0xff]
        %v351 = vld [vmem:[#allocation2 + $0xf0] sm:$0xff]
        %v352 = vld [vmem:[#allocation2 + $0xf8] sm:$0xff]
        %v353 = vld [vmem:[%s259] sm:$0xff]
        %v354 = vld [vmem:[%s259 + $0x8] sm:$0xff]
        %v355 = vld [vmem:[%s259 + $0x10] sm:$0xff]
        %v356 = vld [vmem:[%s259 + $0x18] sm:$0xff]
        %v357 = vld [vmem:[%s259 + $0x20] sm:$0xff]
        %v358 = vld [vmem:[%s259 + $0x28] sm:$0xff]
        %v359 = vld [vmem:[%s259 + $0x30] sm:$0xff]
        %v360 = vld [vmem:[%s259 + $0x38] sm:$0xff]
        %v361 = vld [vmem:[%s259 + $0x40] sm:$0xff]
        %v362 = vld [vmem:[%s259 + $0x48] sm:$0xff]
        %v363 = vld [vmem:[%s259 + $0x50] sm:$0xff]
        %v364 = vld [vmem:[%s259 + $0x58] sm:$0xff]
        %v365 = vld [vmem:[%s259 + $0x60] sm:$0xff]
        %v366 = vld [vmem:[%s259 + $0x68] sm:$0xff]
        %v367 = vld [vmem:[%s259 + $0x70] sm:$0xff]
        %v368 = vld [vmem:[%s259 + $0x78] sm:$0xff]
        %v369 = vld [vmem:[%s259 + $0x80] sm:$0xff]
        %v370 = vld [vmem:[%s259 + $0x88] sm:$0xff]
        %v371 = vld [vmem:[%s259 + $0x90] sm:$0xff]
        %v372 = vld [vmem:[%s259 + $0x98] sm:$0xff]
        %v373 = vld [vmem:[%s259 + $0xa0] sm:$0xff]
        %v374 = vld [vmem:[%s259 + $0xa8] sm:$0xff]
        %v375 = vld [vmem:[%s259 + $0xb0] sm:$0xff]
        %v376 = vld [vmem:[%s259 + $0xb8] sm:$0xff]
        %v377 = vld [vmem:[%s259 + $0xc0] sm:$0xff]
        %v378 = vld [vmem:[%s259 + $0xc8] sm:$0xff]
        %v379 = vld [vmem:[%s259 + $0xd0] sm:$0xff]
        %v380 = vld [vmem:[%s259 + $0xd8] sm:$0xff]
        %v381 = vld [vmem:[%s259 + $0xe0] sm:$0xff]
        %v382 = vld [vmem:[%s259 + $0xe8] sm:$0xff]
        %v383 = vld [vmem:[%s259 + $0xf0] sm:$0xff]
        %v384 = vld [vmem:[%s259 + $0xf8] sm:$0xff]
        %v385 = vld [vmem:[%s274] sm:$0xf]
        %v386 = vld [vmem:[%s274 + $0x4] sm:$0xf]
        %v387 = vld [vmem:[%s274 + $0x8] sm:$0xf]
        %v388 = vld [vmem:[%s274 + $0xc] sm:$0xf]
        %v389 = vld [vmem:[%s274 + $0x10] sm:$0xf]
        %v390 = vld [vmem:[%s274 + $0x14] sm:$0xf]
        %v391 = vld [vmem:[%s274 + $0x18] sm:$0xf]
        %v392 = vld [vmem:[%s274 + $0x1c] sm:$0xf]
        %v393 = vld [vmem:[%s274 + $0x20] sm:$0xf]
        %v394 = vld [vmem:[%s274 + $0x24] sm:$0xf]
        %v395 = vld [vmem:[%s274 + $0x28] sm:$0xf]
        %v396 = vld [vmem:[%s274 + $0x2c] sm:$0xf]
        %v397 = vld [vmem:[%s274 + $0x30] sm:$0xf]
        %v398 = vld [vmem:[%s274 + $0x34] sm:$0xf]
        %v399 = vld [vmem:[%s274 + $0x38] sm:$0xf]
        %v400 = vld [vmem:[%s274 + $0x3c] sm:$0xf]
        %v401 = vld [vmem:[%s274 + $0x40] sm:$0xf]
        %v402 = vld [vmem:[%s274 + $0x44] sm:$0xf]
        %v403 = vld [vmem:[%s274 + $0x48] sm:$0xf]
        %v404 = vld [vmem:[%s274 + $0x4c] sm:$0xf]
        %v405 = vld [vmem:[%s274 + $0x50] sm:$0xf]
        %v406 = vld [vmem:[%s274 + $0x54] sm:$0xf]
        %v407 = vld [vmem:[%s274 + $0x58] sm:$0xf]
        %v408 = vld [vmem:[%s274 + $0x5c] sm:$0xf]
        %v409 = vld [vmem:[%s274 + $0x60] sm:$0xf]
        %v410 = vld [vmem:[%s274 + $0x64] sm:$0xf]
        %v411 = vld [vmem:[%s274 + $0x68] sm:$0xf]
        %v412 = vld [vmem:[%s274 + $0x6c] sm:$0xf]
        %v413 = vld [vmem:[%s274 + $0x70] sm:$0xf]
        %v414 = vld [vmem:[%s274 + $0x74] sm:$0xf]
        %v415 = vld [vmem:[%s274 + $0x78] sm:$0xf]
        %v416 = vld [vmem:[%s274 + $0x7c] sm:$0xf]
        %v449 = vunpack.c.l.b16 %v353
        %v450 = vunpack.c.h.b16 %v353
        %v451 = vunpack.c.l.b16 %v354
        %v452 = vunpack.c.h.b16 %v354
        %v453 = vunpack.c.l.b16 %v355
        %v454 = vunpack.c.h.b16 %v355
        %v455 = vunpack.c.l.b16 %v356
        %v456 = vunpack.c.h.b16 %v356
        %v457 = vunpack.c.l.b16 %v357
        %v458 = vunpack.c.h.b16 %v357
        %v459 = vunpack.c.l.b16 %v358
        %v460 = vunpack.c.h.b16 %v358
        %v461 = vunpack.c.l.b16 %v359
        %v462 = vunpack.c.h.b16 %v359
        %v463 = vunpack.c.l.b16 %v360
        %v464 = vunpack.c.h.b16 %v360
        %v465 = vunpack.c.l.b16 %v361
        %v466 = vunpack.c.h.b16 %v361
        %v467 = vunpack.c.l.b16 %v362
        %v468 = vunpack.c.h.b16 %v362
        %v469 = vunpack.c.l.b16 %v363
        %v470 = vunpack.c.h.b16 %v363
        %v471 = vunpack.c.l.b16 %v364
        %v472 = vunpack.c.h.b16 %v364
        %v473 = vunpack.c.l.b16 %v365
        %v474 = vunpack.c.h.b16 %v365
        %v475 = vunpack.c.l.b16 %v366
        %v476 = vunpack.c.h.b16 %v366
        %v477 = vunpack.c.l.b16 %v367
        %v478 = vunpack.c.h.b16 %v367
        %v479 = vunpack.c.l.b16 %v368
        %v480 = vunpack.c.h.b16 %v368
        %v481 = vunpack.c.l.b16 %v369
        %v482 = vunpack.c.h.b16 %v369
        %v483 = vunpack.c.l.b16 %v370
        %v484 = vunpack.c.h.b16 %v370
        %v485 = vunpack.c.l.b16 %v371
        %v486 = vunpack.c.h.b16 %v371
        %v487 = vunpack.c.l.b16 %v372
        %v488 = vunpack.c.h.b16 %v372
        %v489 = vunpack.c.l.b16 %v373
        %v490 = vunpack.c.h.b16 %v373
        %v491 = vunpack.c.l.b16 %v374
        %v492 = vunpack.c.h.b16 %v374
        %v493 = vunpack.c.l.b16 %v375
        %v494 = vunpack.c.h.b16 %v375
        %v495 = vunpack.c.l.b16 %v376
        %v496 = vunpack.c.h.b16 %v376
        %v497 = vunpack.c.l.b16 %v377
        %v498 = vunpack.c.h.b16 %v377
        %v499 = vunpack.c.l.b16 %v378
        %v500 = vunpack.c.h.b16 %v378
        %v501 = vunpack.c.l.b16 %v379
        %v502 = vunpack.c.h.b16 %v379
        %v503 = vunpack.c.l.b16 %v380
        %v504 = vunpack.c.h.b16 %v380
        %v505 = vunpack.c.l.b16 %v381
        %v506 = vunpack.c.h.b16 %v381
        %v507 = vunpack.c.l.b16 %v382
        %v508 = vunpack.c.h.b16 %v382
        %v509 = vunpack.c.l.b16 %v383
        %v510 = vunpack.c.h.b16 %v383
        %v511 = vunpack.c.l.b16 %v384
        %v512 = vunpack.c.h.b16 %v384
        %v513 = vpack.c.b16 %v451, %v449
        %v514 = vpack.c.b16 %v452, %v450
        %v515 = vpack.c.b16 %v455, %v453
        %v516 = vpack.c.b16 %v456, %v454
        %v517 = vpack.c.b16 %v459, %v457
        %v518 = vpack.c.b16 %v460, %v458
        %v519 = vpack.c.b16 %v463, %v461
        %v520 = vpack.c.b16 %v464, %v462
        %v521 = vpack.c.b16 %v467, %v465
        %v522 = vpack.c.b16 %v468, %v466
        %v523 = vpack.c.b16 %v471, %v469
        %v524 = vpack.c.b16 %v472, %v470
        %v525 = vpack.c.b16 %v475, %v473
        %v526 = vpack.c.b16 %v476, %v474
        %v527 = vpack.c.b16 %v479, %v477
        %v528 = vpack.c.b16 %v480, %v478
        %v529 = vpack.c.b16 %v483, %v481
        %v530 = vpack.c.b16 %v484, %v482
        %v531 = vpack.c.b16 %v487, %v485
        %v532 = vpack.c.b16 %v488, %v486
        %v533 = vpack.c.b16 %v491, %v489
        %v534 = vpack.c.b16 %v492, %v490
        %v535 = vpack.c.b16 %v495, %v493
        %v536 = vpack.c.b16 %v496, %v494
        %v537 = vpack.c.b16 %v499, %v497
        %v538 = vpack.c.b16 %v500, %v498
        %v539 = vpack.c.b16 %v503, %v501
        %v540 = vpack.c.b16 %v504, %v502
        %v541 = vpack.c.b16 %v507, %v505
        %v542 = vpack.c.b16 %v508, %v506
        %v543 = vpack.c.b16 %v511, %v509
        %v544 = vpack.c.b16 %v512, %v510
        %v609 = vunpack.c.l.b16 %v385
        %v610 = vunpack.c.l.b16 %v386
        %v611 = vunpack.c.l.b16 %v387
        %v612 = vunpack.c.l.b16 %v388
        %v613 = vunpack.c.l.b16 %v389
        %v614 = vunpack.c.l.b16 %v390
        %v615 = vunpack.c.l.b16 %v391
        %v616 = vunpack.c.l.b16 %v392
        %v617 = vunpack.c.l.b16 %v393
        %v618 = vunpack.c.l.b16 %v394
        %v619 = vunpack.c.l.b16 %v395
        %v620 = vunpack.c.l.b16 %v396
        %v621 = vunpack.c.l.b16 %v397
        %v622 = vunpack.c.l.b16 %v398
        %v623 = vunpack.c.l.b16 %v399
        %v624 = vunpack.c.l.b16 %v400
        %v625 = vunpack.c.l.b16 %v401
        %v626 = vunpack.c.l.b16 %v402
        %v627 = vunpack.c.l.b16 %v403
        %v628 = vunpack.c.l.b16 %v404
        %v629 = vunpack.c.l.b16 %v405
        %v630 = vunpack.c.l.b16 %v406
        %v631 = vunpack.c.l.b16 %v407
        %v632 = vunpack.c.l.b16 %v408
        %v633 = vunpack.c.l.b16 %v409
        %v634 = vunpack.c.l.b16 %v410
        %v635 = vunpack.c.l.b16 %v411
        %v636 = vunpack.c.l.b16 %v412
        %v637 = vunpack.c.l.b16 %v413
        %v638 = vunpack.c.l.b16 %v414
        %v639 = vunpack.c.l.b16 %v415
        %v640 = vunpack.c.l.b16 %v416
        %v641 = vpack.c.b16 %v610, %v609
        %v642 = vpack.c.b16 %v612, %v611
        %v643 = vpack.c.b16 %v614, %v613
        %v644 = vpack.c.b16 %v616, %v615
        %v645 = vpack.c.b16 %v618, %v617
        %v646 = vpack.c.b16 %v620, %v619
        %v647 = vpack.c.b16 %v622, %v621
        %v648 = vpack.c.b16 %v624, %v623
        %v649 = vpack.c.b16 %v626, %v625
        %v650 = vpack.c.b16 %v628, %v627
        %v651 = vpack.c.b16 %v630, %v629
        %v652 = vpack.c.b16 %v632, %v631
        %v653 = vpack.c.b16 %v634, %v633
        %v654 = vpack.c.b16 %v636, %v635
        %v655 = vpack.c.b16 %v638, %v637
        %v656 = vpack.c.b16 %v640, %v639
        %673 = vmatprep.subr.bf16.mxu0 0
        %674 = vmatpush1.bf16.msra.mxu0 %v641
        %675 = vmatprep.subr.bf16.mxu0 0
        %676 = vmatpush1.bf16.msra.mxu0 %v642
        %677 = vmatprep.subr.bf16.mxu0 0
        %678 = vmatpush1.bf16.msra.mxu0 %v643
        %679 = vmatprep.subr.bf16.mxu0 0
        %680 = vmatpush1.bf16.msra.mxu0 %v644
        %681 = vmatprep.subr.bf16.mxu0 0
        %682 = vmatpush1.bf16.msra.mxu0 %v645
        %683 = vmatprep.subr.bf16.mxu0 0
        %684 = vmatpush1.bf16.msra.mxu0 %v646
        %685 = vmatprep.subr.bf16.mxu0 0
        %686 = vmatpush1.bf16.msra.mxu0 %v647
        %687 = vmatprep.subr.bf16.mxu0 0
        %688 = vmatpush1.bf16.msra.mxu0 %v648
        %689 = vmatprep.subr.bf16.mxu0 0
        %690 = vmatpush1.bf16.msra.mxu0 %v649
        %691 = vmatprep.subr.bf16.mxu0 0
        %692 = vmatpush1.bf16.msra.mxu0 %v650
        %693 = vmatprep.subr.bf16.mxu0 0
        %694 = vmatpush1.bf16.msra.mxu0 %v651
        %695 = vmatprep.subr.bf16.mxu0 0
        %696 = vmatpush1.bf16.msra.mxu0 %v652
        %697 = vmatprep.subr.bf16.mxu0 0
        %698 = vmatpush1.bf16.msra.mxu0 %v653
        %699 = vmatprep.subr.bf16.mxu0 0
        %700 = vmatpush1.bf16.msra.mxu0 %v654
        %701 = vmatprep.subr.bf16.mxu0 0
        %702 = vmatpush1.bf16.msra.mxu0 %v655
        %703 = vmatprep.subr.bf16.mxu0 0
        %704 = vmatpush1.bf16.msra.mxu0 %v656
        %705 = vmatprep.mubr.bf16.mxu0 %v514
        %706 = vmatmul.mubr.bf16.gmra.mrb[0].mxu0 %v513
        %v707 = vpop.f32.mrb[0].mxu0
        %v708 = vadd.f32 0.0, %v707
        %v709 = vpop.f32.mrb[0].mxu0
        %v710 = vpop.f32.mrb[0].mxu0
        %v711 = vadd.f32 0.0, %v710
        %v712 = vpop.f32.mrb[0].mxu0
        %713 = vmatprep.mubr.bf16.mxu0 %v516
        %714 = vmatmul.mubr.bf16.gmra.mrb[0].mxu0 %v515
        %v715 = vpop.f32.mrb[0].mxu0
        %v716 = vadd.f32 0.0, %v715
        %v717 = vpop.f32.mrb[0].mxu0
        %v718 = vpop.f32.mrb[0].mxu0
        %v719 = vadd.f32 0.0, %v718
        %v720 = vpop.f32.mrb[0].mxu0
        %721 = vmatprep.mubr.bf16.mxu0 %v518
        %722 = vmatmul.mubr.bf16.gmra.mrb[0].mxu0 %v517
        %v723 = vpop.f32.mrb[0].mxu0
        %v724 = vadd.f32 0.0, %v723
        %v725 = vpop.f32.mrb[0].mxu0
        %v726 = vpop.f32.mrb[0].mxu0
        %v727 = vadd.f32 0.0, %v726
        %v728 = vpop.f32.mrb[0].mxu0
        %729 = vmatprep.mubr.bf16.mxu0 %v520
        %730 = vmatmul.mubr.bf16.gmra.mrb[0].mxu0 %v519
        %v731 = vpop.f32.mrb[0].mxu0
        %v732 = vadd.f32 0.0, %v731
        %v733 = vpop.f32.mrb[0].mxu0
        %v734 = vpop.f32.mrb[0].mxu0
        %v735 = vadd.f32 0.0, %v734
        %v736 = vpop.f32.mrb[0].mxu0
        %737 = vmatprep.mubr.bf16.mxu0 %v522
        %738 = vmatmul.mubr.bf16.gmra.mrb[0].mxu0 %v521
        %v739 = vpop.f32.mrb[0].mxu0
        %v740 = vadd.f32 0.0, %v739
        %v741 = vpop.f32.mrb[0].mxu0
        %v742 = vpop.f32.mrb[0].mxu0
        %v743 = vadd.f32 0.0, %v742
        %v744 = vpop.f32.mrb[0].mxu0
        %745 = vmatprep.mubr.bf16.mxu0 %v524
        %746 = vmatmul.mubr.bf16.gmra.mrb[0].mxu0 %v523
        %v747 = vpop.f32.mrb[0].mxu0
        %v748 = vadd.f32 0.0, %v747
        %v749 = vpop.f32.mrb[0].mxu0
        %v750 = vpop.f32.mrb[0].mxu0
        %v751 = vadd.f32 0.0, %v750
        %v752 = vpop.f32.mrb[0].mxu0
        %753 = vmatprep.mubr.bf16.mxu0 %v526
        %754 = vmatmul.mubr.bf16.gmra.mrb[0].mxu0 %v525
        %v755 = vpop.f32.mrb[0].mxu0
        %v756 = vadd.f32 0.0, %v755
        %v757 = vpop.f32.mrb[0].mxu0
        %v758 = vpop.f32.mrb[0].mxu0
        %v759 = vadd.f32 0.0, %v758
        %v760 = vpop.f32.mrb[0].mxu0
        %761 = vmatprep.mubr.bf16.mxu0 %v528
        %762 = vmatmul.mubr.bf16.gmra.mrb[0].mxu0 %v527
        %v763 = vpop.f32.mrb[0].mxu0
        %v764 = vadd.f32 0.0, %v763
        %v765 = vpop.f32.mrb[0].mxu0
        %v766 = vpop.f32.mrb[0].mxu0
        %v767 = vadd.f32 0.0, %v766
        %v768 = vpop.f32.mrb[0].mxu0
        %769 = vmatprep.mubr.bf16.mxu0 %v530
        %770 = vmatmul.mubr.bf16.gmra.mrb[0].mxu0 %v529
        %v771 = vpop.f32.mrb[0].mxu0
        %v772 = vadd.f32 0.0, %v771
        %v773 = vpop.f32.mrb[0].mxu0
        %v774 = vpop.f32.mrb[0].mxu0
        %v775 = vadd.f32 0.0, %v774
        %v776 = vpop.f32.mrb[0].mxu0
        %777 = vmatprep.mubr.bf16.mxu0 %v532
        %778 = vmatmul.mubr.bf16.gmra.mrb[0].mxu0 %v531
        %v779 = vpop.f32.mrb[0].mxu0
        %v780 = vadd.f32 0.0, %v779
        %v781 = vpop.f32.mrb[0].mxu0
        %v782 = vpop.f32.mrb[0].mxu0
        %v783 = vadd.f32 0.0, %v782
        %v784 = vpop.f32.mrb[0].mxu0
        %785 = vmatprep.mubr.bf16.mxu0 %v534
        %786 = vmatmul.mubr.bf16.gmra.mrb[0].mxu0 %v533
        %v787 = vpop.f32.mrb[0].mxu0
        %v788 = vadd.f32 0.0, %v787
        %v789 = vpop.f32.mrb[0].mxu0
        %v790 = vpop.f32.mrb[0].mxu0
        %v791 = vadd.f32 0.0, %v790
        %v792 = vpop.f32.mrb[0].mxu0
        %793 = vmatprep.mubr.bf16.mxu0 %v536
        %794 = vmatmul.mubr.bf16.gmra.mrb[0].mxu0 %v535
        %v795 = vpop.f32.mrb[0].mxu0
        %v796 = vadd.f32 0.0, %v795
        %v797 = vpop.f32.mrb[0].mxu0
        %v798 = vpop.f32.mrb[0].mxu0
        %v799 = vadd.f32 0.0, %v798
        %v800 = vpop.f32.mrb[0].mxu0
        %801 = vmatprep.mubr.bf16.mxu0 %v538
        %802 = vmatmul.mubr.bf16.gmra.mrb[0].mxu0 %v537
        %v803 = vpop.f32.mrb[0].mxu0
        %v804 = vadd.f32 0.0, %v803
        %v805 = vpop.f32.mrb[0].mxu0
        %v806 = vpop.f32.mrb[0].mxu0
        %v807 = vadd.f32 0.0, %v806
        %v808 = vpop.f32.mrb[0].mxu0
        %809 = vmatprep.mubr.bf16.mxu0 %v540
        %810 = vmatmul.mubr.bf16.gmra.mrb[0].mxu0 %v539
        %v811 = vpop.f32.mrb[0].mxu0
        %v812 = vadd.f32 0.0, %v811
        %v813 = vpop.f32.mrb[0].mxu0
        %v814 = vpop.f32.mrb[0].mxu0
        %v815 = vadd.f32 0.0, %v814
        %v816 = vpop.f32.mrb[0].mxu0
        %817 = vmatprep.mubr.bf16.mxu0 %v542
        %818 = vmatmul.mubr.bf16.gmra.mrb[0].mxu0 %v541
        %v819 = vpop.f32.mrb[0].mxu0
        %v820 = vadd.f32 0.0, %v819
        %v821 = vpop.f32.mrb[0].mxu0
        %v822 = vpop.f32.mrb[0].mxu0
        %v823 = vadd.f32 0.0, %v822
        %v824 = vpop.f32.mrb[0].mxu0
        %825 = vmatprep.mubr.bf16.mxu0 %v544
        %826 = vmatmul.mubr.bf16.gmra.mrb[0].mxu0 %v543
        %v827 = vpop.f32.mrb[0].mxu0
        %v828 = vadd.f32 0.0, %v827
        %v829 = vpop.f32.mrb[0].mxu0
        %v830 = vpop.f32.mrb[0].mxu0
        %v831 = vadd.f32 0.0, %v830
        %v832 = vpop.f32.mrb[0].mxu0
        %833 = vdwg.mxu0
        %v834 = vadd.f32 %v321, %v708
        %v835 = vadd.f32 %v322, %v711
        %v836 = vadd.f32 %v323, %v716
        %v837 = vadd.f32 %v324, %v719
        %v838 = vadd.f32 %v325, %v724
        %v839 = vadd.f32 %v326, %v727
        %v840 = vadd.f32 %v327, %v732
        %v841 = vadd.f32 %v328, %v735
        %v842 = vadd.f32 %v329, %v740
        %v843 = vadd.f32 %v330, %v743
        %v844 = vadd.f32 %v331, %v748
        %v845 = vadd.f32 %v332, %v751
        %v846 = vadd.f32 %v333, %v756
        %v847 = vadd.f32 %v334, %v759
        %v848 = vadd.f32 %v335, %v764
        %v849 = vadd.f32 %v336, %v767
        %v850 = vadd.f32 %v337, %v772
        %v851 = vadd.f32 %v338, %v775
        %v852 = vadd.f32 %v339, %v780
        %v853 = vadd.f32 %v340, %v783
        %v854 = vadd.f32 %v341, %v788
        %v855 = vadd.f32 %v342, %v791
        %v856 = vadd.f32 %v343, %v796
        %v857 = vadd.f32 %v344, %v799
        %v858 = vadd.f32 %v345, %v804
        %v859 = vadd.f32 %v346, %v807
        %v860 = vadd.f32 %v347, %v812
        %v861 = vadd.f32 %v348, %v815
        %v862 = vadd.f32 %v349, %v820
        %v863 = vadd.f32 %v350, %v823
        %v864 = vadd.f32 %v351, %v828
        %v865 = vadd.f32 %v352, %v831
        %866 = vst [vmem:[#allocation2] sm:$0xff] %v834
        %867 = vst [vmem:[#allocation2 + $0x8] sm:$0xff] %v835
        %868 = vst [vmem:[#allocation2 + $0x10] sm:$0xff] %v836
        %869 = vst [vmem:[#allocation2 + $0x18] sm:$0xff] %v837
        %870 = vst [vmem:[#allocation2 + $0x20] sm:$0xff] %v838
        %871 = vst [vmem:[#allocation2 + $0x28] sm:$0xff] %v839
        %872 = vst [vmem:[#allocation2 + $0x30] sm:$0xff] %v840
        %873 = vst [vmem:[#allocation2 + $0x38] sm:$0xff] %v841
        %874 = vst [vmem:[#allocation2 + $0x40] sm:$0xff] %v842
        %875 = vst [vmem:[#allocation2 + $0x48] sm:$0xff] %v843
        %876 = vst [vmem:[#allocation2 + $0x50] sm:$0xff] %v844
        %877 = vst [vmem:[#allocation2 + $0x58] sm:$0xff] %v845
        %878 = vst [vmem:[#allocation2 + $0x60] sm:$0xff] %v846
        %879 = vst [vmem:[#allocation2 + $0x68] sm:$0xff] %v847
        %880 = vst [vmem:[#allocation2 + $0x70] sm:$0xff] %v848
        %881 = vst [vmem:[#allocation2 + $0x78] sm:$0xff] %v849
        %882 = vst [vmem:[#allocation2 + $0x80] sm:$0xff] %v850
        %883 = vst [vmem:[#allocation2 + $0x88] sm:$0xff] %v851
        %884 = vst [vmem:[#allocation2 + $0x90] sm:$0xff] %v852
        %885 = vst [vmem:[#allocation2 + $0x98] sm:$0xff] %v853
        %886 = vst [vmem:[#allocation2 + $0xa0] sm:$0xff] %v854
        %887 = vst [vmem:[#allocation2 + $0xa8] sm:$0xff] %v855
        %888 = vst [vmem:[#allocation2 + $0xb0] sm:$0xff] %v856
        %889 = vst [vmem:[#allocation2 + $0xb8] sm:$0xff] %v857
        %890 = vst [vmem:[#allocation2 + $0xc0] sm:$0xff] %v858
        %891 = vst [vmem:[#allocation2 + $0xc8] sm:$0xff] %v859
        %892 = vst [vmem:[#allocation2 + $0xd0] sm:$0xff] %v860
        %893 = vst [vmem:[#allocation2 + $0xd8] sm:$0xff] %v861
        %894 = vst [vmem:[#allocation2 + $0xe0] sm:$0xff] %v862
        %895 = vst [vmem:[#allocation2 + $0xe8] sm:$0xff] %v863
        %896 = vst [vmem:[#allocation2 + $0xf0] sm:$0xff] %v864
        %897 = vst [vmem:[#allocation2 + $0xf8] sm:$0xff] %v865
        // Predicated region
        $region37: #{forward.3} parent=31 // pred_check
          %p898 = pneg %p285
        $region38: #{forward.3} parent=31 // pred_check_branch
          %900 = sbr.rel (%p898) target = $region40
        $region39: #{forward.3} parent=31 // pred_region
          %v901 = vld [vmem:[#allocation2] sm:$0xff]
          %v902 = vld [vmem:[#allocation2 + $0x8] sm:$0xff]
          %v903 = vld [vmem:[#allocation2 + $0x10] sm:$0xff]
          %v904 = vld [vmem:[#allocation2 + $0x18] sm:$0xff]
          %v905 = vld [vmem:[#allocation2 + $0x20] sm:$0xff]
          %v906 = vld [vmem:[#allocation2 + $0x28] sm:$0xff]
          %v907 = vld [vmem:[#allocation2 + $0x30] sm:$0xff]
          %v908 = vld [vmem:[#allocation2 + $0x38] sm:$0xff]
          %v909 = vld [vmem:[#allocation2 + $0x40] sm:$0xff]
          %v910 = vld [vmem:[#allocation2 + $0x48] sm:$0xff]
          %v911 = vld [vmem:[#allocation2 + $0x50] sm:$0xff]
          %v912 = vld [vmem:[#allocation2 + $0x58] sm:$0xff]
          %v913 = vld [vmem:[#allocation2 + $0x60] sm:$0xff]
          %v914 = vld [vmem:[#allocation2 + $0x68] sm:$0xff]
          %v915 = vld [vmem:[#allocation2 + $0x70] sm:$0xff]
          %v916 = vld [vmem:[#allocation2 + $0x78] sm:$0xff]
          %v917 = vld [vmem:[#allocation2 + $0x80] sm:$0xff]
          %v918 = vld [vmem:[#allocation2 + $0x88] sm:$0xff]
          %v919 = vld [vmem:[#allocation2 + $0x90] sm:$0xff]
          %v920 = vld [vmem:[#allocation2 + $0x98] sm:$0xff]
          %v921 = vld [vmem:[#allocation2 + $0xa0] sm:$0xff]
          %v922 = vld [vmem:[#allocation2 + $0xa8] sm:$0xff]
          %v923 = vld [vmem:[#allocation2 + $0xb0] sm:$0xff]
          %v924 = vld [vmem:[#allocation2 + $0xb8] sm:$0xff]
          %v925 = vld [vmem:[#allocation2 + $0xc0] sm:$0xff]
          %v926 = vld [vmem:[#allocation2 + $0xc8] sm:$0xff]
          %v927 = vld [vmem:[#allocation2 + $0xd0] sm:$0xff]
          %v928 = vld [vmem:[#allocation2 + $0xd8] sm:$0xff]
          %v929 = vld [vmem:[#allocation2 + $0xe0] sm:$0xff]
          %v930 = vld [vmem:[#allocation2 + $0xe8] sm:$0xff]
          %v931 = vld [vmem:[#allocation2 + $0xf0] sm:$0xff]
          %v932 = vld [vmem:[#allocation2 + $0xf8] sm:$0xff]
          %v933 = vld [vmem:[%s278] sm:$0x1]
          %v935 = vlaneseq
          %v936 = vshrl.u32 %v935, 7
          %v937 = vsub.s32 0, %v936
          %v938 = vrot.slane %v933, %v937
          %v940 = vadd.f32 %v901, %v938
          %v941 = vadd.f32 %v902, %v938
          %v942 = vadd.f32 %v903, %v938
          %v943 = vadd.f32 %v904, %v938
          %v944 = vadd.f32 %v905, %v938
          %v945 = vadd.f32 %v906, %v938
          %v946 = vadd.f32 %v907, %v938
          %v947 = vadd.f32 %v908, %v938
          %v948 = vadd.f32 %v909, %v938
          %v949 = vadd.f32 %v910, %v938
          %v950 = vadd.f32 %v911, %v938
          %v951 = vadd.f32 %v912, %v938
          %v952 = vadd.f32 %v913, %v938
          %v953 = vadd.f32 %v914, %v938
          %v954 = vadd.f32 %v915, %v938
          %v955 = vadd.f32 %v916, %v938
          %v956 = vadd.f32 %v917, %v938
          %v957 = vadd.f32 %v918, %v938
          %v958 = vadd.f32 %v919, %v938
          %v959 = vadd.f32 %v920, %v938
          %v960 = vadd.f32 %v921, %v938
          %v961 = vadd.f32 %v922, %v938
          %v962 = vadd.f32 %v923, %v938
          %v963 = vadd.f32 %v924, %v938
          %v964 = vadd.f32 %v925, %v938
          %v965 = vadd.f32 %v926, %v938
          %v966 = vadd.f32 %v927, %v938
          %v967 = vadd.f32 %v928, %v938
          %v968 = vadd.f32 %v929, %v938
          %v969 = vadd.f32 %v930, %v938
          %v970 = vadd.f32 %v931, %v938
          %v971 = vadd.f32 %v932, %v938
          %vm972 = vcmp.ge.f32.partialorder %v940, 0.0
          %vm973 = vcmp.ge.f32.partialorder %v941, 0.0
          %vm974 = vcmp.ge.f32.partialorder %v942, 0.0
          %vm975 = vcmp.ge.f32.partialorder %v943, 0.0
          %vm976 = vcmp.ge.f32.partialorder %v944, 0.0
          %vm977 = vcmp.ge.f32.partialorder %v945, 0.0
          %vm978 = vcmp.ge.f32.partialorder %v946, 0.0
          %vm979 = vcmp.ge.f32.partialorder %v947, 0.0
          %vm980 = vcmp.ge.f32.partialorder %v948, 0.0
          %vm981 = vcmp.ge.f32.partialorder %v949, 0.0
          %vm982 = vcmp.ge.f32.partialorder %v950, 0.0
          %vm983 = vcmp.ge.f32.partialorder %v951, 0.0
          %vm984 = vcmp.ge.f32.partialorder %v952, 0.0
          %vm985 = vcmp.ge.f32.partialorder %v953, 0.0
          %vm986 = vcmp.ge.f32.partialorder %v954, 0.0
          %vm987 = vcmp.ge.f32.partialorder %v955, 0.0
          %vm988 = vcmp.ge.f32.partialorder %v956, 0.0
          %vm989 = vcmp.ge.f32.partialorder %v957, 0.0
          %vm990 = vcmp.ge.f32.partialorder %v958, 0.0
          %vm991 = vcmp.ge.f32.partialorder %v959, 0.0
          %vm992 = vcmp.ge.f32.partialorder %v960, 0.0
          %vm993 = vcmp.ge.f32.partialorder %v961, 0.0
          %vm994 = vcmp.ge.f32.partialorder %v962, 0.0
          %vm995 = vcmp.ge.f32.partialorder %v963, 0.0
          %vm996 = vcmp.ge.f32.partialorder %v964, 0.0
          %vm997 = vcmp.ge.f32.partialorder %v965, 0.0
          %vm998 = vcmp.ge.f32.partialorder %v966, 0.0
          %vm999 = vcmp.ge.f32.partialorder %v967, 0.0
          %vm1000 = vcmp.ge.f32.partialorder %v968, 0.0
          %vm1001 = vcmp.ge.f32.partialorder %v969, 0.0
          %vm1002 = vcmp.ge.f32.partialorder %v970, 0.0
          %vm1003 = vcmp.ge.f32.partialorder %v971, 0.0
          %v1004 = vmul.f32 %v940, 0.2
          %v1005 = vmul.f32 %v941, 0.2
          %v1006 = vmul.f32 %v942, 0.2
          %v1007 = vmul.f32 %v943, 0.2
          %v1008 = vmul.f32 %v944, 0.2
          %v1009 = vmul.f32 %v945, 0.2
          %v1010 = vmul.f32 %v946, 0.2
          %v1011 = vmul.f32 %v947, 0.2
          %v1012 = vmul.f32 %v948, 0.2
          %v1013 = vmul.f32 %v949, 0.2
          %v1014 = vmul.f32 %v950, 0.2
          %v1015 = vmul.f32 %v951, 0.2
          %v1016 = vmul.f32 %v952, 0.2
          %v1017 = vmul.f32 %v953, 0.2
          %v1018 = vmul.f32 %v954, 0.2
          %v1019 = vmul.f32 %v955, 0.2
          %v1020 = vmul.f32 %v956, 0.2
          %v1021 = vmul.f32 %v957, 0.2
          %v1022 = vmul.f32 %v958, 0.2
          %v1023 = vmul.f32 %v959, 0.2
          %v1024 = vmul.f32 %v960, 0.2
          %v1025 = vmul.f32 %v961, 0.2
          %v1026 = vmul.f32 %v962, 0.2
          %v1027 = vmul.f32 %v963, 0.2
          %v1028 = vmul.f32 %v964, 0.2
          %v1029 = vmul.f32 %v965, 0.2
          %v1030 = vmul.f32 %v966, 0.2
          %v1031 = vmul.f32 %v967, 0.2
          %v1032 = vmul.f32 %v968, 0.2
          %v1033 = vmul.f32 %v969, 0.2
          %v1034 = vmul.f32 %v970, 0.2
          %v1035 = vmul.f32 %v971, 0.2
          %v1036 = vsel %vm972, %v940, %v1004
          %v1037 = vsel %vm973, %v941, %v1005
          %v1038 = vsel %vm974, %v942, %v1006
          %v1039 = vsel %vm975, %v943, %v1007
          %v1040 = vsel %vm976, %v944, %v1008
          %v1041 = vsel %vm977, %v945, %v1009
          %v1042 = vsel %vm978, %v946, %v1010
          %v1043 = vsel %vm979, %v947, %v1011
          %v1044 = vsel %vm980, %v948, %v1012
          %v1045 = vsel %vm981, %v949, %v1013
          %v1046 = vsel %vm982, %v950, %v1014
          %v1047 = vsel %vm983, %v951, %v1015
          %v1048 = vsel %vm984, %v952, %v1016
          %v1049 = vsel %vm985, %v953, %v1017
          %v1050 = vsel %vm986, %v954, %v1018
          %v1051 = vsel %vm987, %v955, %v1019
          %v1052 = vsel %vm988, %v956, %v1020
          %v1053 = vsel %vm989, %v957, %v1021
          %v1054 = vsel %vm990, %v958, %v1022
          %v1055 = vsel %vm991, %v959, %v1023
          %v1056 = vsel %vm992, %v960, %v1024
          %v1057 = vsel %vm993, %v961, %v1025
          %v1058 = vsel %vm994, %v962, %v1026
          %v1059 = vsel %vm995, %v963, %v1027
          %v1060 = vsel %vm996, %v964, %v1028
          %v1061 = vsel %vm997, %v965, %v1029
          %v1062 = vsel %vm998, %v966, %v1030
          %v1063 = vsel %vm999, %v967, %v1031
          %v1064 = vsel %vm1000, %v968, %v1032
          %v1065 = vsel %vm1001, %v969, %v1033
          %v1066 = vsel %vm1002, %v970, %v1034
          %v1067 = vsel %vm1003, %v971, %v1035
          %v1068 = vpack.c.bf16 %v1037, %v1036
          %v1069 = vpack.c.bf16 %v1039, %v1038
          %v1070 = vpack.c.bf16 %v1041, %v1040
          %v1071 = vpack.c.bf16 %v1043, %v1042
          %v1072 = vpack.c.bf16 %v1045, %v1044
          %v1073 = vpack.c.bf16 %v1047, %v1046
          %v1074 = vpack.c.bf16 %v1049, %v1048
          %v1075 = vpack.c.bf16 %v1051, %v1050
          %v1076 = vpack.c.bf16 %v1053, %v1052
          %v1077 = vpack.c.bf16 %v1055, %v1054
          %v1078 = vpack.c.bf16 %v1057, %v1056
          %v1079 = vpack.c.bf16 %v1059, %v1058
          %v1080 = vpack.c.bf16 %v1061, %v1060
          %v1081 = vpack.c.bf16 %v1063, %v1062
          %v1082 = vpack.c.bf16 %v1065, %v1064
          %v1083 = vpack.c.bf16 %v1067, %v1066
          %v1100 = vunpack.c.l.b16 %v1068
          %v1101 = vunpack.c.h.b16 %v1068
          %v1102 = vunpack.c.l.b16 %v1069
          %v1103 = vunpack.c.h.b16 %v1069
          %v1104 = vunpack.c.l.b16 %v1070
          %v1105 = vunpack.c.h.b16 %v1070
          %v1106 = vunpack.c.l.b16 %v1071
          %v1107 = vunpack.c.h.b16 %v1071
          %v1108 = vunpack.c.l.b16 %v1072
          %v1109 = vunpack.c.h.b16 %v1072
          %v1110 = vunpack.c.l.b16 %v1073
          %v1111 = vunpack.c.h.b16 %v1073
          %v1112 = vunpack.c.l.b16 %v1074
          %v1113 = vunpack.c.h.b16 %v1074
          %v1114 = vunpack.c.l.b16 %v1075
          %v1115 = vunpack.c.h.b16 %v1075
          %v1116 = vunpack.c.l.b16 %v1076
          %v1117 = vunpack.c.h.b16 %v1076
          %v1118 = vunpack.c.l.b16 %v1077
          %v1119 = vunpack.c.h.b16 %v1077
          %v1120 = vunpack.c.l.b16 %v1078
          %v1121 = vunpack.c.h.b16 %v1078
          %v1122 = vunpack.c.l.b16 %v1079
          %v1123 = vunpack.c.h.b16 %v1079
          %v1124 = vunpack.c.l.b16 %v1080
          %v1125 = vunpack.c.h.b16 %v1080
          %v1126 = vunpack.c.l.b16 %v1081
          %v1127 = vunpack.c.h.b16 %v1081
          %v1128 = vunpack.c.l.b16 %v1082
          %v1129 = vunpack.c.h.b16 %v1082
          %v1130 = vunpack.c.l.b16 %v1083
          %v1131 = vunpack.c.h.b16 %v1083
          %v1132 = vpack.c.b16 %v1100, %v1100
          %v1133 = vpack.c.b16 %v1101, %v1101
          %v1134 = vpack.c.b16 %v1102, %v1102
          %v1135 = vpack.c.b16 %v1103, %v1103
          %v1136 = vpack.c.b16 %v1104, %v1104
          %v1137 = vpack.c.b16 %v1105, %v1105
          %v1138 = vpack.c.b16 %v1106, %v1106
          %v1139 = vpack.c.b16 %v1107, %v1107
          %v1140 = vpack.c.b16 %v1108, %v1108
          %v1141 = vpack.c.b16 %v1109, %v1109
          %v1142 = vpack.c.b16 %v1110, %v1110
          %v1143 = vpack.c.b16 %v1111, %v1111
          %v1144 = vpack.c.b16 %v1112, %v1112
          %v1145 = vpack.c.b16 %v1113, %v1113
          %v1146 = vpack.c.b16 %v1114, %v1114
          %v1147 = vpack.c.b16 %v1115, %v1115
          %v1148 = vpack.c.b16 %v1116, %v1116
          %v1149 = vpack.c.b16 %v1117, %v1117
          %v1150 = vpack.c.b16 %v1118, %v1118
          %v1151 = vpack.c.b16 %v1119, %v1119
          %v1152 = vpack.c.b16 %v1120, %v1120
          %v1153 = vpack.c.b16 %v1121, %v1121
          %v1154 = vpack.c.b16 %v1122, %v1122
          %v1155 = vpack.c.b16 %v1123, %v1123
          %v1156 = vpack.c.b16 %v1124, %v1124
          %v1157 = vpack.c.b16 %v1125, %v1125
          %v1158 = vpack.c.b16 %v1126, %v1126
          %v1159 = vpack.c.b16 %v1127, %v1127
          %v1160 = vpack.c.b16 %v1128, %v1128
          %v1161 = vpack.c.b16 %v1129, %v1129
          %v1162 = vpack.c.b16 %v1130, %v1130
          %v1163 = vpack.c.b16 %v1131, %v1131
          %1196 = vst [vmem:[%s244] sm:$0xf] %v1132
          %1197 = vst [vmem:[%s244 + $0x4] sm:$0xf] %v1133
          %1198 = vst [vmem:[%s244 + $0x8] sm:$0xf] %v1134
          %1199 = vst [vmem:[%s244 + $0xc] sm:$0xf] %v1135
          %1200 = vst [vmem:[%s244 + $0x10] sm:$0xf] %v1136
          %1201 = vst [vmem:[%s244 + $0x14] sm:$0xf] %v1137
          %1202 = vst [vmem:[%s244 + $0x18] sm:$0xf] %v1138
          %1203 = vst [vmem:[%s244 + $0x1c] sm:$0xf] %v1139
          %1204 = vst [vmem:[%s244 + $0x20] sm:$0xf] %v1140
          %1205 = vst [vmem:[%s244 + $0x24] sm:$0xf] %v1141
          %1206 = vst [vmem:[%s244 + $0x28] sm:$0xf] %v1142
          %1207 = vst [vmem:[%s244 + $0x2c] sm:$0xf] %v1143
          %1208 = vst [vmem:[%s244 + $0x30] sm:$0xf] %v1144
          %1209 = vst [vmem:[%s244 + $0x34] sm:$0xf] %v1145
          %1210 = vst [vmem:[%s244 + $0x38] sm:$0xf] %v1146
          %1211 = vst [vmem:[%s244 + $0x3c] sm:$0xf] %v1147
          %1212 = vst [vmem:[%s244 + $0x40] sm:$0xf] %v1148
          %1213 = vst [vmem:[%s244 + $0x44] sm:$0xf] %v1149
          %1214 = vst [vmem:[%s244 + $0x48] sm:$0xf] %v1150
          %1215 = vst [vmem:[%s244 + $0x4c] sm:$0xf] %v1151
          %1216 = vst [vmem:[%s244 + $0x50] sm:$0xf] %v1152
          %1217 = vst [vmem:[%s244 + $0x54] sm:$0xf] %v1153
          %1218 = vst [vmem:[%s244 + $0x58] sm:$0xf] %v1154
          %1219 = vst [vmem:[%s244 + $0x5c] sm:$0xf] %v1155
          %1220 = vst [vmem:[%s244 + $0x60] sm:$0xf] %v1156
          %1221 = vst [vmem:[%s244 + $0x64] sm:$0xf] %v1157
          %1222 = vst [vmem:[%s244 + $0x68] sm:$0xf] %v1158
          %1223 = vst [vmem:[%s244 + $0x6c] sm:$0xf] %v1159
          %1224 = vst [vmem:[%s244 + $0x70] sm:$0xf] %v1160
          %1225 = vst [vmem:[%s244 + $0x74] sm:$0xf] %v1161
          %1226 = vst [vmem:[%s244 + $0x78] sm:$0xf] %v1162
          %1227 = vst [vmem:[%s244 + $0x7c] sm:$0xf] %v1163
        $region40: #{forward.3} parent=31 // pred_fallthru
          _
        %s1228 = sand.u32 %s125, 1
        %s1229 = sand.u32 %s125, 1
        %s1230 = smul.addr %s1229, 128
        %s1231 = scalar_lea.vmem [#allocation3], %s1230
        // Predicated region
        $region41: #{forward.3} parent=31 // pred_check
          %p1232 = pneg %p135
        $region42: #{forward.3} parent=31 // pred_check_branch
          %1234 = sbr.rel (%p1232) target = $region44
        $region43: #{forward.3} parent=31 // pred_region
          %s1235 = smul.u32 32, %s19
          %s1236 = ssub.s32 57, %s1235
          %p1237 = scmp.lt.s32.totalorder %s1236, 32
          %s1238 = scalar_select %p1237, %s1236, 32
          %s1239 = smul.u32 64, %s1238
          %p1240 = scmp.ne.s32.totalorder 0, %s1239
          %s1241 = sadd.s32 %s20, %s1235
          %s1242 = smul.addr %s1241, 4
          %s1243 = scalar_lea.vmem %s3, %s1242
          // Predicated region
          $region45: #{forward.3} parent=43 // pred_check
            %p1244 = pneg %p1240
          $region46: #{forward.3} parent=43 // pred_check_branch
            %1246 = sbr.rel (%p1244) target = $region48
          $region47: #{forward.3} parent=43 // pred_region
            // Predicated region
            $region49: #{forward.3} parent=47 // pred_check
              _
            $region50: #{forward.3} parent=47 // pred_check_branch
              %1248 = sbr.rel target = $region52
            $region51: #{forward.3} parent=47 // pred_region
              // Predicated region
              $region71: #{forward.3} parent=51 // pred_check
                _
              $region72: #{forward.3} parent=51 // pred_check_branch
                %1359 = sbr.rel (0) target = $region74
              $region73: #{forward.3} parent=51 // pred_region
                %s1361 = sshrl.u32 %s1238, 5
                // While loop
                $region75: #{forward.3} parent=73 // loop_pre_header
                  _
                $region76: #{forward.3} parent=73 // loop_header
                  %s1363 = sphi 0, %s1365
                  %p1364 = scmp.ge.s32.totalorder %s1363, %s1361
                  %s1368 = sphi 0, %s1437
                  %s1369 = sphi %s1231, %s1440
                  %s1370 = sphi %s1243, %s1441
                $region77: #{forward.3} parent=73 // loop_header_branch
                  %1367 = sbr.rel (%p1364) target = $region81
                $region78: #{forward.3} parent=73 // loop_body
                  %v1371 = vld [vmem:[%s1369] sm:$0xf]
                  %1372 = vst [vmem:[%s1370] sm:$0xf] %v1371
                  %v1373 = vld [vmem:[%s1369 + $0x4] sm:$0xf]
                  %1374 = vst [vmem:[%s1370 + $0x4] sm:$0xf] %v1373
                  %v1375 = vld [vmem:[%s1369 + $0x8] sm:$0xf]
                  %1376 = vst [vmem:[%s1370 + $0x8] sm:$0xf] %v1375
                  %v1377 = vld [vmem:[%s1369 + $0xc] sm:$0xf]
                  %1378 = vst [vmem:[%s1370 + $0xc] sm:$0xf] %v1377
                  %v1379 = vld [vmem:[%s1369 + $0x10] sm:$0xf]
                  %1380 = vst [vmem:[%s1370 + $0x10] sm:$0xf] %v1379
                  %v1381 = vld [vmem:[%s1369 + $0x14] sm:$0xf]
                  %1382 = vst [vmem:[%s1370 + $0x14] sm:$0xf] %v1381
                  %v1383 = vld [vmem:[%s1369 + $0x18] sm:$0xf]
                  %1384 = vst [vmem:[%s1370 + $0x18] sm:$0xf] %v1383
                  %v1385 = vld [vmem:[%s1369 + $0x1c] sm:$0xf]
                  %1386 = vst [vmem:[%s1370 + $0x1c] sm:$0xf] %v1385
                  %v1387 = vld [vmem:[%s1369 + $0x20] sm:$0xf]
                  %1388 = vst [vmem:[%s1370 + $0x20] sm:$0xf] %v1387
                  %v1389 = vld [vmem:[%s1369 + $0x24] sm:$0xf]
                  %1390 = vst [vmem:[%s1370 + $0x24] sm:$0xf] %v1389
                  %v1391 = vld [vmem:[%s1369 + $0x28] sm:$0xf]
                  %1392 = vst [vmem:[%s1370 + $0x28] sm:$0xf] %v1391
                  %v1393 = vld [vmem:[%s1369 + $0x2c] sm:$0xf]
                  %1394 = vst [vmem:[%s1370 + $0x2c] sm:$0xf] %v1393
                  %v1395 = vld [vmem:[%s1369 + $0x30] sm:$0xf]
                  %1396 = vst [vmem:[%s1370 + $0x30] sm:$0xf] %v1395
                  %v1397 = vld [vmem:[%s1369 + $0x34] sm:$0xf]
                  %1398 = vst [vmem:[%s1370 + $0x34] sm:$0xf] %v1397
                  %v1399 = vld [vmem:[%s1369 + $0x38] sm:$0xf]
                  %1400 = vst [vmem:[%s1370 + $0x38] sm:$0xf] %v1399
                  %v1401 = vld [vmem:[%s1369 + $0x3c] sm:$0xf]
                  %1402 = vst [vmem:[%s1370 + $0x3c] sm:$0xf] %v1401
                  %v1403 = vld [vmem:[%s1369 + $0x40] sm:$0xf]
                  %1404 = vst [vmem:[%s1370 + $0x40] sm:$0xf] %v1403
                  %v1405 = vld [vmem:[%s1369 + $0x44] sm:$0xf]
                  %1406 = vst [vmem:[%s1370 + $0x44] sm:$0xf] %v1405
                  %v1407 = vld [vmem:[%s1369 + $0x48] sm:$0xf]
                  %1408 = vst [vmem:[%s1370 + $0x48] sm:$0xf] %v1407
                  %v1409 = vld [vmem:[%s1369 + $0x4c] sm:$0xf]
                  %1410 = vst [vmem:[%s1370 + $0x4c] sm:$0xf] %v1409
                  %v1411 = vld [vmem:[%s1369 + $0x50] sm:$0xf]
                  %1412 = vst [vmem:[%s1370 + $0x50] sm:$0xf] %v1411
                  %v1413 = vld [vmem:[%s1369 + $0x54] sm:$0xf]
                  %1414 = vst [vmem:[%s1370 + $0x54] sm:$0xf] %v1413
                  %v1415 = vld [vmem:[%s1369 + $0x58] sm:$0xf]
                  %1416 = vst [vmem:[%s1370 + $0x58] sm:$0xf] %v1415
                  %v1417 = vld [vmem:[%s1369 + $0x5c] sm:$0xf]
                  %1418 = vst [vmem:[%s1370 + $0x5c] sm:$0xf] %v1417
                  %v1419 = vld [vmem:[%s1369 + $0x60] sm:$0xf]
                  %1420 = vst [vmem:[%s1370 + $0x60] sm:$0xf] %v1419
                  %v1421 = vld [vmem:[%s1369 + $0x64] sm:$0xf]
                  %1422 = vst [vmem:[%s1370 + $0x64] sm:$0xf] %v1421
                  %v1423 = vld [vmem:[%s1369 + $0x68] sm:$0xf]
                  %1424 = vst [vmem:[%s1370 + $0x68] sm:$0xf] %v1423
                  %v1425 = vld [vmem:[%s1369 + $0x6c] sm:$0xf]
                  %1426 = vst [vmem:[%s1370 + $0x6c] sm:$0xf] %v1425
                  %v1427 = vld [vmem:[%s1369 + $0x70] sm:$0xf]
                  %1428 = vst [vmem:[%s1370 + $0x70] sm:$0xf] %v1427
                  %v1429 = vld [vmem:[%s1369 + $0x74] sm:$0xf]
                  %1430 = vst [vmem:[%s1370 + $0x74] sm:$0xf] %v1429
                  %v1431 = vld [vmem:[%s1369 + $0x78] sm:$0xf]
                  %1432 = vst [vmem:[%s1370 + $0x78] sm:$0xf] %v1431
                  %v1433 = vld [vmem:[%s1369 + $0x7c] sm:$0xf]
                  %1434 = vst [vmem:[%s1370 + $0x7c] sm:$0xf] %v1433
                  %s1435 = sadd.s32 1, %s1368
                  %p1436 = scmp.ge.s32.totalorder %s1435, %s1361
                  %s1437 = scalar_select %p1436, 0, %s1435
                  %s1438 = smul.u32 %s1437, 128
                  %s1439 = smul.u32 %s1437, 128
                  %s1440 = scalar_lea.vmem %s1231, %s1438 [#allocation3]
                  %s1441 = scalar_lea.vmem %s1243, %s1439
                $region79: #{forward.3} parent=73 // loop_footer
                  %s1365 = sadd.s32 %s1363, 1
                $region80: #{forward.3} parent=73 // loop_footer_branch
                  %1362 = sbr.rel target = $region76
                $region81: #{forward.3} parent=73 // loop_exit
                  _
                %s1442 = sshrl.u32 %s1238, 5
                %s1443 = sand.u32 %s1238, 31
                %s1444 = smul.u32 %s1442, 32
                %s1445 = smul.u32 4, %s1444
                %s1446 = scalar_lea.vmem %s1231, %s1445 [#allocation3]
                %s1447 = smul.u32 4, %s1444
                %s1448 = scalar_lea.vmem %s1243, %s1447
                // While loop
                $region82: #{forward.3} parent=73 // loop_pre_header
                  _
                $region83: #{forward.3} parent=73 // loop_header
                  %s1450 = sphi 0, %s1452
                  %p1451 = scmp.ge.s32.totalorder %s1450, %s1443
                  %s1455 = sphi 0, %s1462
                  %s1456 = sphi %s1446, %s1465
                  %s1457 = sphi %s1448, %s1466
                $region84: #{forward.3} parent=73 // loop_header_branch
                  %1454 = sbr.rel (%p1451) target = $region88
                $region85: #{forward.3} parent=73 // loop_body
                  %v1458 = vld [vmem:[%s1456] sm:$0xf]
                  %1459 = vst [vmem:[%s1457] sm:$0xf] %v1458
                  %s1460 = sadd.s32 1, %s1455
                  %p1461 = scmp.ge.s32.totalorder %s1460, %s1443
                  %s1462 = scalar_select %p1461, 0, %s1460
                  %s1463 = smul.u32 %s1462, 4
                  %s1464 = smul.u32 %s1462, 4
                  %s1465 = scalar_lea.vmem %s1446, %s1463 [#allocation3]
                  %s1466 = scalar_lea.vmem %s1448, %s1464
                $region86: #{forward.3} parent=73 // loop_footer
                  %s1452 = sadd.s32 %s1450, 1
                $region87: #{forward.3} parent=73 // loop_footer_branch
                  %1449 = sbr.rel target = $region83
                $region88: #{forward.3} parent=73 // loop_exit
                  _
              $region74: #{forward.3} parent=51 // pred_fallthru
                _
            $region52: #{forward.3} parent=47 // pred_fallthru
              _
            // Predicated region
            $region53: #{forward.3} parent=47 // pred_check
              _
            $region54: #{forward.3} parent=47 // pred_check_branch
              %1250 = sbr.rel (0) target = $region56
            $region55: #{forward.3} parent=47 // pred_region
              %s1252 = sshrl.u32 %s1238, 5
              // While loop
              $region57: #{forward.3} parent=55 // loop_pre_header
                _
              $region58: #{forward.3} parent=55 // loop_header
                %s1254 = sphi 0, %s1256
                %p1255 = scmp.ge.s32.totalorder %s1254, %s1252
                %s1259 = sphi 0, %s1328
                %s1260 = sphi %s1231, %s1331
                %s1261 = sphi %s1243, %s1332
              $region59: #{forward.3} parent=55 // loop_header_branch
                %1258 = sbr.rel (%p1255) target = $region63
              $region60: #{forward.3} parent=55 // loop_body
                %v1262 = vld [vmem:[%s1260] sm:$0xf]
                %1263 = vst [vmem:[%s1261] sm:$0xf] %v1262
                %v1264 = vld [vmem:[%s1260 + $0x4] sm:$0xf]
                %1265 = vst [vmem:[%s1261 + $0x4] sm:$0xf] %v1264
                %v1266 = vld [vmem:[%s1260 + $0x8] sm:$0xf]
                %1267 = vst [vmem:[%s1261 + $0x8] sm:$0xf] %v1266
                %v1268 = vld [vmem:[%s1260 + $0xc] sm:$0xf]
                %1269 = vst [vmem:[%s1261 + $0xc] sm:$0xf] %v1268
                %v1270 = vld [vmem:[%s1260 + $0x10] sm:$0xf]
                %1271 = vst [vmem:[%s1261 + $0x10] sm:$0xf] %v1270
                %v1272 = vld [vmem:[%s1260 + $0x14] sm:$0xf]
                %1273 = vst [vmem:[%s1261 + $0x14] sm:$0xf] %v1272
                %v1274 = vld [vmem:[%s1260 + $0x18] sm:$0xf]
                %1275 = vst [vmem:[%s1261 + $0x18] sm:$0xf] %v1274
                %v1276 = vld [vmem:[%s1260 + $0x1c] sm:$0xf]
                %1277 = vst [vmem:[%s1261 + $0x1c] sm:$0xf] %v1276
                %v1278 = vld [vmem:[%s1260 + $0x20] sm:$0xf]
                %1279 = vst [vmem:[%s1261 + $0x20] sm:$0xf] %v1278
                %v1280 = vld [vmem:[%s1260 + $0x24] sm:$0xf]
                %1281 = vst [vmem:[%s1261 + $0x24] sm:$0xf] %v1280
                %v1282 = vld [vmem:[%s1260 + $0x28] sm:$0xf]
                %1283 = vst [vmem:[%s1261 + $0x28] sm:$0xf] %v1282
                %v1284 = vld [vmem:[%s1260 + $0x2c] sm:$0xf]
                %1285 = vst [vmem:[%s1261 + $0x2c] sm:$0xf] %v1284
                %v1286 = vld [vmem:[%s1260 + $0x30] sm:$0xf]
                %1287 = vst [vmem:[%s1261 + $0x30] sm:$0xf] %v1286
                %v1288 = vld [vmem:[%s1260 + $0x34] sm:$0xf]
                %1289 = vst [vmem:[%s1261 + $0x34] sm:$0xf] %v1288
                %v1290 = vld [vmem:[%s1260 + $0x38] sm:$0xf]
                %1291 = vst [vmem:[%s1261 + $0x38] sm:$0xf] %v1290
                %v1292 = vld [vmem:[%s1260 + $0x3c] sm:$0xf]
                %1293 = vst [vmem:[%s1261 + $0x3c] sm:$0xf] %v1292
                %v1294 = vld [vmem:[%s1260 + $0x40] sm:$0xf]
                %1295 = vst [vmem:[%s1261 + $0x40] sm:$0xf] %v1294
                %v1296 = vld [vmem:[%s1260 + $0x44] sm:$0xf]
                %1297 = vst [vmem:[%s1261 + $0x44] sm:$0xf] %v1296
                %v1298 = vld [vmem:[%s1260 + $0x48] sm:$0xf]
                %1299 = vst [vmem:[%s1261 + $0x48] sm:$0xf] %v1298
                %v1300 = vld [vmem:[%s1260 + $0x4c] sm:$0xf]
                %1301 = vst [vmem:[%s1261 + $0x4c] sm:$0xf] %v1300
                %v1302 = vld [vmem:[%s1260 + $0x50] sm:$0xf]
                %1303 = vst [vmem:[%s1261 + $0x50] sm:$0xf] %v1302
                %v1304 = vld [vmem:[%s1260 + $0x54] sm:$0xf]
                %1305 = vst [vmem:[%s1261 + $0x54] sm:$0xf] %v1304
                %v1306 = vld [vmem:[%s1260 + $0x58] sm:$0xf]
                %1307 = vst [vmem:[%s1261 + $0x58] sm:$0xf] %v1306
                %v1308 = vld [vmem:[%s1260 + $0x5c] sm:$0xf]
                %1309 = vst [vmem:[%s1261 + $0x5c] sm:$0xf] %v1308
                %v1310 = vld [vmem:[%s1260 + $0x60] sm:$0xf]
                %1311 = vst [vmem:[%s1261 + $0x60] sm:$0xf] %v1310
                %v1312 = vld [vmem:[%s1260 + $0x64] sm:$0xf]
                %1313 = vst [vmem:[%s1261 + $0x64] sm:$0xf] %v1312
                %v1314 = vld [vmem:[%s1260 + $0x68] sm:$0xf]
                %1315 = vst [vmem:[%s1261 + $0x68] sm:$0xf] %v1314
                %v1316 = vld [vmem:[%s1260 + $0x6c] sm:$0xf]
                %1317 = vst [vmem:[%s1261 + $0x6c] sm:$0xf] %v1316
                %v1318 = vld [vmem:[%s1260 + $0x70] sm:$0xf]
                %1319 = vst [vmem:[%s1261 + $0x70] sm:$0xf] %v1318
                %v1320 = vld [vmem:[%s1260 + $0x74] sm:$0xf]
                %1321 = vst [vmem:[%s1261 + $0x74] sm:$0xf] %v1320
                %v1322 = vld [vmem:[%s1260 + $0x78] sm:$0xf]
                %1323 = vst [vmem:[%s1261 + $0x78] sm:$0xf] %v1322
                %v1324 = vld [vmem:[%s1260 + $0x7c] sm:$0xf]
                %1325 = vst [vmem:[%s1261 + $0x7c] sm:$0xf] %v1324
                %s1326 = sadd.s32 1, %s1259
                %p1327 = scmp.ge.s32.totalorder %s1326, %s1252
                %s1328 = scalar_select %p1327, 0, %s1326
                %s1329 = smul.u32 %s1328, 128
                %s1330 = smul.u32 %s1328, 128
                %s1331 = scalar_lea.vmem %s1231, %s1329 [#allocation3]
                %s1332 = scalar_lea.vmem %s1243, %s1330
              $region61: #{forward.3} parent=55 // loop_footer
                %s1256 = sadd.s32 %s1254, 1
              $region62: #{forward.3} parent=55 // loop_footer_branch
                %1253 = sbr.rel target = $region58
              $region63: #{forward.3} parent=55 // loop_exit
                _
              %s1333 = sshrl.u32 %s1238, 5
              %s1334 = sand.u32 %s1238, 31
              %s1335 = smul.u32 %s1333, 32
              %s1336 = smul.u32 4, %s1335
              %s1337 = scalar_lea.vmem %s1231, %s1336 [#allocation3]
              %s1338 = smul.u32 4, %s1335
              %s1339 = scalar_lea.vmem %s1243, %s1338
              // While loop
              $region64: #{forward.3} parent=55 // loop_pre_header
                _
              $region65: #{forward.3} parent=55 // loop_header
                %s1341 = sphi 0, %s1343
                %p1342 = scmp.ge.s32.totalorder %s1341, %s1334
                %s1346 = sphi 0, %s1353
                %s1347 = sphi %s1337, %s1356
                %s1348 = sphi %s1339, %s1357
              $region66: #{forward.3} parent=55 // loop_header_branch
                %1345 = sbr.rel (%p1342) target = $region70
              $region67: #{forward.3} parent=55 // loop_body
                %v1349 = vld [vmem:[%s1347] sm:$0xf]
                %1350 = vst [vmem:[%s1348] sm:$0xf] %v1349
                %s1351 = sadd.s32 1, %s1346
                %p1352 = scmp.ge.s32.totalorder %s1351, %s1334
                %s1353 = scalar_select %p1352, 0, %s1351
                %s1354 = smul.u32 %s1353, 4
                %s1355 = smul.u32 %s1353, 4
                %s1356 = scalar_lea.vmem %s1337, %s1354 [#allocation3]
                %s1357 = scalar_lea.vmem %s1339, %s1355
              $region68: #{forward.3} parent=55 // loop_footer
                %s1343 = sadd.s32 %s1341, 1
              $region69: #{forward.3} parent=55 // loop_footer_branch
                %1340 = sbr.rel target = $region65
              $region70: #{forward.3} parent=55 // loop_exit
                _
            $region56: #{forward.3} parent=47 // pred_fallthru
              _
          $region48: #{forward.3} parent=43 // pred_fallthru
            _
          %1467 = vnop
        $region44: #{forward.3} parent=31 // pred_fallthru
          _
      $region32: #{forward.3} parent=5 // pred_fallthru
        _
      %p1468 = scmp.le.s32.totalorder 2, %s9
      // Predicated region
      $region89: #{forward.3} parent=5 // pred_check
        %p1469 = pneg %p1468
      $region90: #{forward.3} parent=5 // pred_check_branch
        %1471 = sbr.rel (%p1469) target = $region92
      $region91: #{forward.3} parent=5 // pred_region
        %s1472 = ssub.s32 %s9, 2
        // Predicated region
        $region93: #{forward.3} parent=91 // pred_check
          %p1473 = pneg %p141
        $region94: #{forward.3} parent=91 // pred_check_branch
          %1475 = sbr.rel (%p1473) target = $region96
        $region95: #{forward.3} parent=91 // pred_region
          %s1476 = sand.u32 %s126, 1
          %s1477 = sand.u32 %s126, 1
          %s1478 = smul.addr %s1477, 128
          %s1479 = scalar_lea.vmem [#allocation3], %s1478
        $region96: #{forward.3} parent=91 // pred_fallthru
          _
      $region92: #{forward.3} parent=5 // pred_fallthru
        _
    $region6: #{forward.3} parent=1 // loop_footer
      %s13 = sadd.s32 1, %s9
    $region7: #{forward.3} parent=1 // loop_footer_branch
      %8 = sbr.rel target = $region3
    $region8: #{forward.3} parent=1 // loop_exit
      _

// kernel: forward.4
$region0: #{forward.4}
  #allocation0 [shape = 'u32[]', space=smem, size = 0x4, offset = 0x4, fixed_abs, tag = 'smem constant byte address 0x4 - core index']
  #allocation1 [shape = 'u32[144,128]{1,0:T(1,128)}', space=vmem, size = 0x12000, scoped, tag = 'internal scratch']
  #allocation2 [shape = 'f32[64,128]{1,0:T(8,128)}', space=vmem, size = 0x8000, scoped, tag = 'scratch operand']
  %s0 = inlined_call_operand.vmem [shape: bf16[98,2048], index: 0, kind: input, shape index: {}]
  %s1 = inlined_call_operand.vmem [shape: bf16[2048,128], index: 1, kind: input, shape index: {}]
  %s2 = inlined_call_operand.vmem [shape: f32[1,128], index: 2, kind: input, shape index: {}]
  %s3 = inlined_call_operand.vmem [shape: bf16[98,128], index: 3, kind: output, shape index: {}]
  %s4 = sld [smem:[#allocation0]]
  $region97: #{forward.4} parent=0
    _
  %s6 = ssub.s32 1, %s4
  %s7 = scalar_select 0, %s6, %s4
  $region1: #{forward.4} parent=0
    #allocation3 [shape = 'u8[32768]{0}', space=vmem, size = 0x8000, scoped, tag = 'output window, operand 0']
    loop: start=0, step=1, limit=4
    $region2: #{forward.4} parent=1 // loop_pre_header
      _
    $region3: #{forward.4} parent=1 // loop_header
      %s9 = sphi 0, %s13
      %p10 = scmp.ge.s32.totalorder %s9, 4
      %s16 = sphi 0, %s35
      %s17 = sphi 0, %s31
      %s18 = sphi 0, %s27
      %s19 = sphi 0, %s16
      %s20 = sphi 0, %s17
      %s21 = sphi 0, %s18
      %s22 = sphi 0, %s19
      %s23 = sphi 0, %s20
      %s24 = sphi 0, %s21
      %s40 = sphi 0, %s42
      %s43 = sphi 0, %s40
      %s44 = sphi 0, %s43
      %s60 = sphi 0, %s44
      %s68 = sphi 0, %s70
      %s71 = sphi 0, %s68
      %s72 = sphi 0, %s71
      %s88 = sphi 0, %s72
      %s94 = sphi 0, %s96
      %s97 = sphi 0, %s94
      %s98 = sphi 0, %s97
      %s114 = sphi 0, %s98
      %s122 = sphi 0, %s124
      %s125 = sphi 0, %s122
      %s126 = sphi 0, %s125
      %s142 = sphi 0, %s126
    $region4: #{forward.4} parent=1 // loop_header_branch
      %12 = sbr.rel (%p10) target = $region8
    $region5: #{forward.4} parent=1 // loop_body
      %s14 = ssub.s32 %s9, 1
      %s15 = ssub.s32 %s9, 2
      %s25 = sadd.s32 1, %s18
      %p26 = scmp.ge.s32.totalorder %s25, 1
      %s27 = scalar_select %p26, 0, %s25
      %s28 = sadd.s32 1, %s17
      %s29 = scalar_select %p26, %s28, %s17
      %p30 = scmp.ge.s32.totalorder %s29, 1
      %s31 = scalar_select %p30, 0, %s29
      %s32 = sadd.s32 1, %s16
      %s33 = scalar_select %p30, %s32, %s16
      %p34 = scmp.ge.s32.totalorder %s33, 2
      %s35 = scalar_select %p34, 0, %s33
      %s36 = ssub.s32 %s16, %s35
      %s37 = ssub.s32 %s18, %s27
      %s38 = sor.u32 %s36, %s37
      %p39 = scmp.eq.s32.totalorder %s38, 0
      %s41 = sadd.s32 %s40, 1
      %s42 = scalar_select %p39, %s40, %s41
      %p45 = pneg %p39
      %p46 = scmp.eq.s32.totalorder %s9, 1
      %p47 = por %p45, %p46
      %p48 = scmp.ne.s32.totalorder %s40, %s43
      %p49 = scmp.eq.s32.totalorder %s9, 0
      %p50 = por %p48, %p49
      %p51 = scmp.ne.s32.totalorder %s40, %s43
      %p52 = scmp.eq.s32.totalorder %s14, 1
      %p53 = por %p51, %p52
      %p54 = scmp.ne.s32.totalorder %s43, %s44
      %p55 = scmp.eq.s32.totalorder %s14, 0
      %p56 = por %p54, %p55
      %p57 = scmp.ne.s32.totalorder %s43, %s44
      %p58 = scmp.eq.s32.totalorder %s15, 1
      %p59 = por %p57, %p58
      %p61 = scmp.ne.s32.totalorder %s44, %s60
      %p62 = scmp.eq.s32.totalorder %s15, 0
      %p63 = por %p61, %p62
      %s64 = ssub.s32 %s18, %s27
      %s65 = ssub.s32 %s17, %s31
      %s66 = sor.u32 %s64, %s65
      %p67 = scmp.eq.s32.totalorder %s66, 0
      %s69 = sadd.s32 %s68, 1
      %s70 = scalar_select %p67, %s68, %s69
      %p73 = pneg %p67
      %p74 = scmp.eq.s32.totalorder %s9, 1
      %p75 = por %p73, %p74
      %p76 = scmp.ne.s32.totalorder %s68, %s71
      %p77 = scmp.eq.s32.totalorder %s9, 0
      %p78 = por %p76, %p77
      %p79 = scmp.ne.s32.totalorder %s68, %s71
      %p80 = scmp.eq.s32.totalorder %s14, 1
      %p81 = por %p79, %p80
      %p82 = scmp.ne.s32.totalorder %s71, %s72
      %p83 = scmp.eq.s32.totalorder %s14, 0
      %p84 = por %p82, %p83
      %p85 = scmp.ne.s32.totalorder %s71, %s72
      %p86 = scmp.eq.s32.totalorder %s15, 1
      %p87 = por %p85, %p86
      %p89 = scmp.ne.s32.totalorder %s72, %s88
      %p90 = scmp.eq.s32.totalorder %s15, 0
      %p91 = por %p89, %p90
      %s92 = ssub.s32 %s17, %s31
      %p93 = scmp.eq.s32.totalorder %s92, 0
      %s95 = sadd.s32 %s94, 1
      %s96 = scalar_select %p93, %s94, %s95
      %p99 = pneg %p93
      %p100 = scmp.eq.s32.totalorder %s9, 1
      %p101 = por %p99, %p100
      %p102 = scmp.ne.s32.totalorder %s94, %s97
      %p103 = scmp.eq.s32.totalorder %s9, 0
      %p104 = por %p102, %p103
      %p105 = scmp.ne.s32.totalorder %s94, %s97
      %p106 = scmp.eq.s32.totalorder %s14, 1
      %p107 = por %p105, %p106
      %p108 = scmp.ne.s32.totalorder %s97, %s98
      %p109 = scmp.eq.s32.totalorder %s14, 0
      %p110 = por %p108, %p109
      %p111 = scmp.ne.s32.totalorder %s97, %s98
      %p112 = scmp.eq.s32.totalorder %s15, 1
      %p113 = por %p111, %p112
      %p115 = scmp.ne.s32.totalorder %s98, %s114
      %p116 = scmp.eq.s32.totalorder %s15, 0
      %p117 = por %p115, %p116
      %s118 = ssub.s32 %s16, %s35
      %s119 = ssub.s32 %s17, %s31
      %s120 = sor.u32 %s118, %s119
      %p121 = scmp.eq.s32.totalorder %s120, 0
      %s123 = sadd.s32 %s122, 1
      %s124 = scalar_select %p121, %s122, %s123
      %p127 = pneg %p121
      %p128 = scmp.eq.s32.totalorder %s9, 1
      %p129 = por %p127, %p128
      %p130 = scmp.ne.s32.totalorder %s122, %s125
      %p131 = scmp.eq.s32.totalorder %s9, 0
      %p132 = por %p130, %p131
      %p133 = scmp.ne.s32.totalorder %s122, %s125
      %p134 = scmp.eq.s32.totalorder %s14, 1
      %p135 = por %p133, %p134
      %p136 = scmp.ne.s32.totalorder %s125, %s126
      %p137 = scmp.eq.s32.totalorder %s14, 0
      %p138 = por %p136, %p137
      %p139 = scmp.ne.s32.totalorder %s125, %s126
      %p140 = scmp.eq.s32.totalorder %s15, 1
      %p141 = por %p139, %p140
      %p143 = scmp.ne.s32.totalorder %s126, %s142
      %p144 = scmp.eq.s32.totalorder %s15, 0
      %p145 = por %p143, %p144
      %p146 = scmp.le.s32.totalorder 1, %s9
      %p147 = scmp.lt.s32.totalorder %s9, 3
      %p148 = pnand %p146, %p147
      %p149 = pneg %p148
      // Predicated region
      $region9: #{forward.4} parent=5 // pred_check
        _
      $region10: #{forward.4} parent=5 // pred_check_branch
        %151 = sbr.rel (%p148) target = $region12
      $region11: #{forward.4} parent=5 // pred_region
        %s152 = ssub.s32 %s9, 1
        // Predicated region
        $region13: #{forward.4} parent=11 // pred_check
          %p153 = pneg %p84
        $region14: #{forward.4} parent=11 // pred_check_branch
          %155 = sbr.rel (%p153) target = $region16
        $region15: #{forward.4} parent=11 // pred_region
          %s156 = smul.u32 256, %s21
          %p157 = scmp.lt.s32.totalorder %s156, 255
          %s158 = scalar_select %p157, %s156, 255
          %p159 = scmp.lt.s32.totalorder %s20, 0
          %s160 = scalar_select %p159, %s20, 0
          %s161 = sadd.s32 %s160, %s158
          %s162 = smul.addr %s161, 4
          %s163 = scalar_lea.vmem %s1, %s162
          %s164 = smul.u32 256, %s21
        $region16: #{forward.4} parent=11 // pred_fallthru
          _
        // Predicated region
        $region17: #{forward.4} parent=11 // pred_check
          %p165 = pneg %p110
        $region18: #{forward.4} parent=11 // pred_check_branch
          %167 = sbr.rel (%p165) target = $region20
        $region19: #{forward.4} parent=11 // pred_region
          %p168 = scmp.lt.s32.totalorder %s20, 0
          %s169 = scalar_select %p168, %s20, 0
          %s170 = scalar_lea.vmem %s2, %s169
        $region20: #{forward.4} parent=11 // pred_fallthru
          _
      $region12: #{forward.4} parent=5 // pred_fallthru
        _
      %p171 = scmp.lt.s32.totalorder %s9, 2
      // Predicated region
      $region21: #{forward.4} parent=5 // pred_check
        %p172 = pneg %p171
      $region22: #{forward.4} parent=5 // pred_check_branch
        %174 = sbr.rel (%p172) target = $region24
      $region23: #{forward.4} parent=5 // pred_region
        // Predicated region
        $region25: #{forward.4} parent=23 // pred_check
          %p175 = pneg %p50
        $region26: #{forward.4} parent=23 // pred_check_branch
          %177 = sbr.rel (%p175) target = $region28
        $region27: #{forward.4} parent=23 // pred_region
          %s178 = smul.u32 8, %s16
          %s179 = smul.u32 16, %s18
          %s180 = ssub.s32 13, %s178
          %p181 = scmp.lt.s32.totalorder %s180, 8
          %s182 = scalar_select %p181, %s180, 8
          %s183 = smul.u32 64, %s182
          %s184 = smul.u32 %s183, 16
          %p185 = scmp.lt.s32.totalorder %s178, 12
          %s186 = scalar_select %p185, %s178, 12
          %p187 = scmp.lt.s32.totalorder %s179, 15
          %s188 = scalar_select %p187, %s179, 15
          %s189 = smul.addr %s186, 16
          %s190 = sadd.s32 %s188, %s189
          %s191 = smul.addr %s190, 4
          %s192 = scalar_lea.vmem %s0, %s191
          %s193 = smul.u32 8, %s16
          %s194 = smul.u32 16, %s18
          %s195 = ssub.s32 13, %s193
          %p196 = scmp.lt.s32.totalorder %s195, 8
          %s197 = scalar_select %p196, %s195, 8
          %s198 = smul.u32 64, %s197
          %s199 = smul.u32 %s198, 16
        $region28: #{forward.4} parent=23 // pred_fallthru
          _
      $region24: #{forward.4} parent=5 // pred_fallthru
        _
      %p200 = scmp.le.s32.totalorder 1, %s9
      %p201 = scmp.lt.s32.totalorder %s9, 3
      %p202 = pnand %p200, %p201
      %p203 = pneg %p202
      // Predicated region
      $region29: #{forward.4} parent=5 // pred_check
        _
      $region30: #{forward.4} parent=5 // pred_check_branch
        %205 = sbr.rel (%p202) target = $region32
      $region31: #{forward.4} parent=5 // pred_region
        %s206 = ssub.s32 %s9, 1
        %s207 = smul.u32 8, %s19
        %s208 = smul.u32 16, %s21
        %s209 = ssub.s32 13, %s207
        %p210 = scmp.lt.s32.totalorder %s209, 8
        %s211 = scalar_select %p210, %s209, 8
        %s212 = smul.u32 64, %s211
        %s213 = smul.u32 %s212, 16
        %p214 = scmp.lt.s32.totalorder %s207, 12
        %s215 = scalar_select %p214, %s207, 12
        %p216 = scmp.lt.s32.totalorder %s208, 15
        %s217 = scalar_select %p216, %s208, 15
        %s218 = smul.addr %s215, 16
        %s219 = sadd.s32 %s217, %s218
        %s220 = smul.addr %s219, 4
        %s221 = scalar_lea.vmem %s0, %s220
        %p222 = pneg %p56
        %p223 = pneg %p53
        %s224 = smul.u32 256, %s21
        %p225 = scmp.lt.s32.totalorder %s224, 255
        %s226 = scalar_select %p225, %s224, 255
        %p227 = scmp.lt.s32.totalorder %s20, 0
        %s228 = scalar_select %p227, %s20, 0
        %s229 = sadd.s32 %s228, %s226
        %s230 = smul.addr %s229, 4
        %s231 = scalar_lea.vmem %s1, %s230
        %p232 = pneg %p84
        %p233 = pneg %p81
        %p234 = scmp.lt.s32.totalorder %s20, 0
        %s235 = scalar_select %p234, %s20, 0
        %s236 = scalar_lea.vmem %s2, %s235
        %p237 = pneg %p110
        %p238 = pneg %p107
        %p239 = pneg %p138
        %p240 = pneg %p135
        %s241 = sand.u32 %s125, 1
        %s242 = sand.u32 %s125, 1
        %s243 = smul.addr %s242, 32
        %s244 = scalar_lea.vmem [#allocation3], %s243
        %s245 = smul.u32 8, %s19
        %s246 = smul.u32 16, %s21
        %s247 = ssub.s32 13, %s245
        %p248 = scmp.lt.s32.totalorder %s247, 8
        %s249 = scalar_select %p248, %s247, 8
        %s250 = smul.u32 64, %s249
        %s251 = smul.u32 %s250, 16
        %p252 = scmp.lt.s32.totalorder %s245, 12
        %s253 = scalar_select %p252, %s245, 12
        %p254 = scmp.lt.s32.totalorder %s246, 15
        %s255 = scalar_select %p254, %s246, 15
        %s256 = smul.addr %s253, 16
        %s257 = sadd.s32 %s255, %s256
        %s258 = smul.addr %s257, 4
        %s259 = scalar_lea.vmem %s0, %s258
        %s260 = smul.u32 8, %s19
        %s261 = smul.u32 16, %s21
        %s262 = ssub.s32 13, %s260
        %p263 = scmp.lt.s32.totalorder %s262, 8
        %s264 = scalar_select %p263, %s262, 8
        %s265 = smul.u32 64, %s264
        %s266 = smul.u32 %s265, 16
        %s267 = smul.u32 256, %s21
        %p268 = scmp.lt.s32.totalorder %s267, 255
        %s269 = scalar_select %p268, %s267, 255
        %p270 = scmp.lt.s32.totalorder %s20, 0
        %s271 = scalar_select %p270, %s20, 0
        %s272 = sadd.s32 %s271, %s269
        %s273 = smul.addr %s272, 4
        %s274 = scalar_lea.vmem %s1, %s273
        %s275 = smul.u32 256, %s21
        %p276 = scmp.lt.s32.totalorder %s20, 0
        %s277 = scalar_select %p276, %s20, 0
        %s278 = scalar_lea.vmem %s2, %s277
        %s279 = smul.u32 8, %s19
        %s280 = ssub.s32 13, %s279
        %p281 = scmp.lt.s32.totalorder %s280, 8
        %s282 = scalar_select %p281, %s280, 8
        %s283 = smul.u32 64, %s282
        %p285 = scmp.eq.s32.totalorder %s21, 0
        // Predicated region
        $region33: #{forward.4} parent=31 // pred_check
          %p286 = pneg %p285
        $region34: #{forward.4} parent=31 // pred_check_branch
          %288 = sbr.rel (%p286) target = $region36
        $region35: #{forward.4} parent=31 // pred_region
          %289 = vst [vmem:[#allocation2] sm:$0xff] 0.0
          %290 = vst [vmem:[#allocation2 + $0x8] sm:$0xff] 0.0
          %291 = vst [vmem:[#allocation2 + $0x10] sm:$0xff] 0.0
          %292 = vst [vmem:[#allocation2 + $0x18] sm:$0xff] 0.0
          %293 = vst [vmem:[#allocation2 + $0x20] sm:$0xff] 0.0
          %294 = vst [vmem:[#allocation2 + $0x28] sm:$0xff] 0.0
          %295 = vst [vmem:[#allocation2 + $0x30] sm:$0xff] 0.0
          %296 = vst [vmem:[#allocation2 + $0x38] sm:$0xff] 0.0
        $region36: #{forward.4} parent=31 // pred_fallthru
          _
        %v297 = vld [vmem:[#allocation2] sm:$0xff]
        %v298 = vld [vmem:[#allocation2 + $0x8] sm:$0xff]
        %v299 = vld [vmem:[#allocation2 + $0x10] sm:$0xff]
        %v300 = vld [vmem:[#allocation2 + $0x18] sm:$0xff]
        %v301 = vld [vmem:[#allocation2 + $0x20] sm:$0xff]
        %v302 = vld [vmem:[#allocation2 + $0x28] sm:$0xff]
        %v303 = vld [vmem:[#allocation2 + $0x30] sm:$0xff]
        %v304 = vld [vmem:[#allocation2 + $0x38] sm:$0xff]
        %v305 = vld [vmem:[%s259] sm:$0xff]
        %v306 = vld [vmem:[%s259 + $0x8] sm:$0xff]
        %v307 = vld [vmem:[%s259 + $0x10] sm:$0xff]
        %v308 = vld [vmem:[%s259 + $0x18] sm:$0xff]
        %v309 = vld [vmem:[%s259 + $0x20] sm:$0xff]
        %v310 = vld [vmem:[%s259 + $0x28] sm:$0xff]
        %v311 = vld [vmem:[%s259 + $0x30] sm:$0xff]
        %v312 = vld [vmem:[%s259 + $0x38] sm:$0xff]
        %v313 = vld [vmem:[%s259 + $0x40] sm:$0xff]
        %v314 = vld [vmem:[%s259 + $0x48] sm:$0xff]
        %v315 = vld [vmem:[%s259 + $0x50] sm:$0xff]
        %v316 = vld [vmem:[%s259 + $0x58] sm:$0xff]
        %v317 = vld [vmem:[%s259 + $0x60] sm:$0xff]
        %v318 = vld [vmem:[%s259 + $0x68] sm:$0xff]
        %v319 = vld [vmem:[%s259 + $0x70] sm:$0xff]
        %v320 = vld [vmem:[%s259 + $0x78] sm:$0xff]
        %v321 = vld [vmem:[%s259 + $0x80] sm:$0xff]
        %v322 = vld [vmem:[%s259 + $0x88] sm:$0xff]
        %v323 = vld [vmem:[%s259 + $0x90] sm:$0xff]
        %v324 = vld [vmem:[%s259 + $0x98] sm:$0xff]
        %v325 = vld [vmem:[%s259 + $0xa0] sm:$0xff]
        %v326 = vld [vmem:[%s259 + $0xa8] sm:$0xff]
        %v327 = vld [vmem:[%s259 + $0xb0] sm:$0xff]
        %v328 = vld [vmem:[%s259 + $0xb8] sm:$0xff]
        %v329 = vld [vmem:[%s259 + $0xc0] sm:$0xff]
        %v330 = vld [vmem:[%s259 + $0xc8] sm:$0xff]
        %v331 = vld [vmem:[%s259 + $0xd0] sm:$0xff]
        %v332 = vld [vmem:[%s259 + $0xd8] sm:$0xff]
        %v333 = vld [vmem:[%s259 + $0xe0] sm:$0xff]
        %v334 = vld [vmem:[%s259 + $0xe8] sm:$0xff]
        %v335 = vld [vmem:[%s259 + $0xf0] sm:$0xff]
        %v336 = vld [vmem:[%s259 + $0xf8] sm:$0xff]
        %v337 = vld [vmem:[%s259 + $0x100] sm:$0xff]
        %v338 = vld [vmem:[%s259 + $0x108] sm:$0xff]
        %v339 = vld [vmem:[%s259 + $0x110] sm:$0xff]
        %v340 = vld [vmem:[%s259 + $0x118] sm:$0xff]
        %v341 = vld [vmem:[%s259 + $0x120] sm:$0xff]
        %v342 = vld [vmem:[%s259 + $0x128] sm:$0xff]
        %v343 = vld [vmem:[%s259 + $0x130] sm:$0xff]
        %v344 = vld [vmem:[%s259 + $0x138] sm:$0xff]
        %v345 = vld [vmem:[%s259 + $0x140] sm:$0xff]
        %v346 = vld [vmem:[%s259 + $0x148] sm:$0xff]
        %v347 = vld [vmem:[%s259 + $0x150] sm:$0xff]
        %v348 = vld [vmem:[%s259 + $0x158] sm:$0xff]
        %v349 = vld [vmem:[%s259 + $0x160] sm:$0xff]
        %v350 = vld [vmem:[%s259 + $0x168] sm:$0xff]
        %v351 = vld [vmem:[%s259 + $0x170] sm:$0xff]
        %v352 = vld [vmem:[%s259 + $0x178] sm:$0xff]
        %v353 = vld [vmem:[%s259 + $0x180] sm:$0xff]
        %v354 = vld [vmem:[%s259 + $0x188] sm:$0xff]
        %v355 = vld [vmem:[%s259 + $0x190] sm:$0xff]
        %v356 = vld [vmem:[%s259 + $0x198] sm:$0xff]
        %v357 = vld [vmem:[%s259 + $0x1a0] sm:$0xff]
        %v358 = vld [vmem:[%s259 + $0x1a8] sm:$0xff]
        %v359 = vld [vmem:[%s259 + $0x1b0] sm:$0xff]
        %v360 = vld [vmem:[%s259 + $0x1b8] sm:$0xff]
        %v361 = vld [vmem:[%s259 + $0x1c0] sm:$0xff]
        %v362 = vld [vmem:[%s259 + $0x1c8] sm:$0xff]
        %v363 = vld [vmem:[%s259 + $0x1d0] sm:$0xff]
        %v364 = vld [vmem:[%s259 + $0x1d8] sm:$0xff]
        %v365 = vld [vmem:[%s259 + $0x1e0] sm:$0xff]
        %v366 = vld [vmem:[%s259 + $0x1e8] sm:$0xff]
        %v367 = vld [vmem:[%s259 + $0x1f0] sm:$0xff]
        %v368 = vld [vmem:[%s259 + $0x1f8] sm:$0xff]
        %v369 = vld [vmem:[%s274] sm:$0xf]
        %v370 = vld [vmem:[%s274 + $0x4] sm:$0xf]
        %v371 = vld [vmem:[%s274 + $0x8] sm:$0xf]
        %v372 = vld [vmem:[%s274 + $0xc] sm:$0xf]
        %v373 = vld [vmem:[%s274 + $0x10] sm:$0xf]
        %v374 = vld [vmem:[%s274 + $0x14] sm:$0xf]
        %v375 = vld [vmem:[%s274 + $0x18] sm:$0xf]
        %v376 = vld [vmem:[%s274 + $0x1c] sm:$0xf]
        %v377 = vld [vmem:[%s274 + $0x20] sm:$0xf]
        %v378 = vld [vmem:[%s274 + $0x24] sm:$0xf]
        %v379 = vld [vmem:[%s274 + $0x28] sm:$0xf]
        %v380 = vld [vmem:[%s274 + $0x2c] sm:$0xf]
        %v381 = vld [vmem:[%s274 + $0x30] sm:$0xf]
        %v382 = vld [vmem:[%s274 + $0x34] sm:$0xf]
        %v383 = vld [vmem:[%s274 + $0x38] sm:$0xf]
        %v384 = vld [vmem:[%s274 + $0x3c] sm:$0xf]
        %v385 = vld [vmem:[%s274 + $0x40] sm:$0xf]
        %v386 = vld [vmem:[%s274 + $0x44] sm:$0xf]
        %v387 = vld [vmem:[%s274 + $0x48] sm:$0xf]
        %v388 = vld [vmem:[%s274 + $0x4c] sm:$0xf]
        %v389 = vld [vmem:[%s274 + $0x50] sm:$0xf]
        %v390 = vld [vmem:[%s274 + $0x54] sm:$0xf]
        %v391 = vld [vmem:[%s274 + $0x58] sm:$0xf]
        %v392 = vld [vmem:[%s274 + $0x5c] sm:$0xf]
        %v393 = vld [vmem:[%s274 + $0x60] sm:$0xf]
        %v394 = vld [vmem:[%s274 + $0x64] sm:$0xf]
        %v395 = vld [vmem:[%s274 + $0x68] sm:$0xf]
        %v396 = vld [vmem:[%s274 + $0x6c] sm:$0xf]
        %v397 = vld [vmem:[%s274 + $0x70] sm:$0xf]
        %v398 = vld [vmem:[%s274 + $0x74] sm:$0xf]
        %v399 = vld [vmem:[%s274 + $0x78] sm:$0xf]
        %v400 = vld [vmem:[%s274 + $0x7c] sm:$0xf]
        %v401 = vld [vmem:[%s274 + $0x80] sm:$0xf]
        %v402 = vld [vmem:[%s274 + $0x84] sm:$0xf]
        %v403 = vld [vmem:[%s274 + $0x88] sm:$0xf]
        %v404 = vld [vmem:[%s274 + $0x8c] sm:$0xf]
        %v405 = vld [vmem:[%s274 + $0x90] sm:$0xf]
        %v406 = vld [vmem:[%s274 + $0x94] sm:$0xf]
        %v407 = vld [vmem:[%s274 + $0x98] sm:$0xf]
        %v408 = vld [vmem:[%s274 + $0x9c] sm:$0xf]
        %v409 = vld [vmem:[%s274 + $0xa0] sm:$0xf]
        %v410 = vld [vmem:[%s274 + $0xa4] sm:$0xf]
        %v411 = vld [vmem:[%s274 + $0xa8] sm:$0xf]
        %v412 = vld [vmem:[%s274 + $0xac] sm:$0xf]
        %v413 = vld [vmem:[%s274 + $0xb0] sm:$0xf]
        %v414 = vld [vmem:[%s274 + $0xb4] sm:$0xf]
        %v415 = vld [vmem:[%s274 + $0xb8] sm:$0xf]
        %v416 = vld [vmem:[%s274 + $0xbc] sm:$0xf]
        %v417 = vld [vmem:[%s274 + $0xc0] sm:$0xf]
        %v418 = vld [vmem:[%s274 + $0xc4] sm:$0xf]
        %v419 = vld [vmem:[%s274 + $0xc8] sm:$0xf]
        %v420 = vld [vmem:[%s274 + $0xcc] sm:$0xf]
        %v421 = vld [vmem:[%s274 + $0xd0] sm:$0xf]
        %v422 = vld [vmem:[%s274 + $0xd4] sm:$0xf]
        %v423 = vld [vmem:[%s274 + $0xd8] sm:$0xf]
        %v424 = vld [vmem:[%s274 + $0xdc] sm:$0xf]
        %v425 = vld [vmem:[%s274 + $0xe0] sm:$0xf]
        %v426 = vld [vmem:[%s274 + $0xe4] sm:$0xf]
        %v427 = vld [vmem:[%s274 + $0xe8] sm:$0xf]
        %v428 = vld [vmem:[%s274 + $0xec] sm:$0xf]
        %v429 = vld [vmem:[%s274 + $0xf0] sm:$0xf]
        %v430 = vld [vmem:[%s274 + $0xf4] sm:$0xf]
        %v431 = vld [vmem:[%s274 + $0xf8] sm:$0xf]
        %v432 = vld [vmem:[%s274 + $0xfc] sm:$0xf]
        %v433 = vld [vmem:[%s274 + $0x100] sm:$0xf]
        %v434 = vld [vmem:[%s274 + $0x104] sm:$0xf]
        %v435 = vld [vmem:[%s274 + $0x108] sm:$0xf]
        %v436 = vld [vmem:[%s274 + $0x10c] sm:$0xf]
        %v437 = vld [vmem:[%s274 + $0x110] sm:$0xf]
        %v438 = vld [vmem:[%s274 + $0x114] sm:$0xf]
        %v439 = vld [vmem:[%s274 + $0x118] sm:$0xf]
        %v440 = vld [vmem:[%s274 + $0x11c] sm:$0xf]
        %v441 = vld [vmem:[%s274 + $0x120] sm:$0xf]
        %v442 = vld [vmem:[%s274 + $0x124] sm:$0xf]
        %v443 = vld [vmem:[%s274 + $0x128] sm:$0xf]
        %v444 = vld [vmem:[%s274 + $0x12c] sm:$0xf]
        %v445 = vld [vmem:[%s274 + $0x130] sm:$0xf]
        %v446 = vld [vmem:[%s274 + $0x134] sm:$0xf]
        %v447 = vld [vmem:[%s274 + $0x138] sm:$0xf]
        %v448 = vld [vmem:[%s274 + $0x13c] sm:$0xf]
        %v449 = vld [vmem:[%s274 + $0x140] sm:$0xf]
        %v450 = vld [vmem:[%s274 + $0x144] sm:$0xf]
        %v451 = vld [vmem:[%s274 + $0x148] sm:$0xf]
        %v452 = vld [vmem:[%s274 + $0x14c] sm:$0xf]
        %v453 = vld [vmem:[%s274 + $0x150] sm:$0xf]
        %v454 = vld [vmem:[%s274 + $0x154] sm:$0xf]
        %v455 = vld [vmem:[%s274 + $0x158] sm:$0xf]
        %v456 = vld [vmem:[%s274 + $0x15c] sm:$0xf]
        %v457 = vld [vmem:[%s274 + $0x160] sm:$0xf]
        %v458 = vld [vmem:[%s274 + $0x164] sm:$0xf]
        %v459 = vld [vmem:[%s274 + $0x168] sm:$0xf]
        %v460 = vld [vmem:[%s274 + $0x16c] sm:$0xf]
        %v461 = vld [vmem:[%s274 + $0x170] sm:$0xf]
        %v462 = vld [vmem:[%s274 + $0x174] sm:$0xf]
        %v463 = vld [vmem:[%s274 + $0x178] sm:$0xf]
        %v464 = vld [vmem:[%s274 + $0x17c] sm:$0xf]
        %v465 = vld [vmem:[%s274 + $0x180] sm:$0xf]
        %v466 = vld [vmem:[%s274 + $0x184] sm:$0xf]
        %v467 = vld [vmem:[%s274 + $0x188] sm:$0xf]
        %v468 = vld [vmem:[%s274 + $0x18c] sm:$0xf]
        %v469 = vld [vmem:[%s274 + $0x190] sm:$0xf]
        %v470 = vld [vmem:[%s274 + $0x194] sm:$0xf]
        %v471 = vld [vmem:[%s274 + $0x198] sm:$0xf]
        %v472 = vld [vmem:[%s274 + $0x19c] sm:$0xf]
        %v473 = vld [vmem:[%s274 + $0x1a0] sm:$0xf]
        %v474 = vld [vmem:[%s274 + $0x1a4] sm:$0xf]
        %v475 = vld [vmem:[%s274 + $0x1a8] sm:$0xf]
        %v476 = vld [vmem:[%s274 + $0x1ac] sm:$0xf]
        %v477 = vld [vmem:[%s274 + $0x1b0] sm:$0xf]
        %v478 = vld [vmem:[%s274 + $0x1b4] sm:$0xf]
        %v479 = vld [vmem:[%s274 + $0x1b8] sm:$0xf]
        %v480 = vld [vmem:[%s274 + $0x1bc] sm:$0xf]
        %v481 = vld [vmem:[%s274 + $0x1c0] sm:$0xf]
        %v482 = vld [vmem:[%s274 + $0x1c4] sm:$0xf]
        %v483 = vld [vmem:[%s274 + $0x1c8] sm:$0xf]
        %v484 = vld [vmem:[%s274 + $0x1cc] sm:$0xf]
        %v485 = vld [vmem:[%s274 + $0x1d0] sm:$0xf]
        %v486 = vld [vmem:[%s274 + $0x1d4] sm:$0xf]
        %v487 = vld [vmem:[%s274 + $0x1d8] sm:$0xf]
        %v488 = vld [vmem:[%s274 + $0x1dc] sm:$0xf]
        %v489 = vld [vmem:[%s274 + $0x1e0] sm:$0xf]
        %v490 = vld [vmem:[%s274 + $0x1e4] sm:$0xf]
        %v491 = vld [vmem:[%s274 + $0x1e8] sm:$0xf]
        %v492 = vld [vmem:[%s274 + $0x1ec] sm:$0xf]
        %v493 = vld [vmem:[%s274 + $0x1f0] sm:$0xf]
        %v494 = vld [vmem:[%s274 + $0x1f4] sm:$0xf]
        %v495 = vld [vmem:[%s274 + $0x1f8] sm:$0xf]
        %v496 = vld [vmem:[%s274 + $0x1fc] sm:$0xf]
        %v497 = vld [vmem:[%s274 + $0x200] sm:$0xf]
        %v498 = vld [vmem:[%s274 + $0x204] sm:$0xf]
        %v499 = vld [vmem:[%s274 + $0x208] sm:$0xf]
        %v500 = vld [vmem:[%s274 + $0x20c] sm:$0xf]
        %v501 = vld [vmem:[%s274 + $0x210] sm:$0xf]
        %v502 = vld [vmem:[%s274 + $0x214] sm:$0xf]
        %v503 = vld [vmem:[%s274 + $0x218] sm:$0xf]
        %v504 = vld [vmem:[%s274 + $0x21c] sm:$0xf]
        %v505 = vld [vmem:[%s274 + $0x220] sm:$0xf]
        %v506 = vld [vmem:[%s274 + $0x224] sm:$0xf]
        %v507 = vld [vmem:[%s274 + $0x228] sm:$0xf]
        %v508 = vld [vmem:[%s274 + $0x22c] sm:$0xf]
        %v509 = vld [vmem:[%s274 + $0x230] sm:$0xf]
        %v510 = vld [vmem:[%s274 + $0x234] sm:$0xf]
        %v511 = vld [vmem:[%s274 + $0x238] sm:$0xf]
        %v512 = vld [vmem:[%s274 + $0x23c] sm:$0xf]
        %v513 = vld [vmem:[%s274 + $0x240] sm:$0xf]
        %v514 = vld [vmem:[%s274 + $0x244] sm:$0xf]
        %v515 = vld [vmem:[%s274 + $0x248] sm:$0xf]
        %v516 = vld [vmem:[%s274 + $0x24c] sm:$0xf]
        %v517 = vld [vmem:[%s274 + $0x250] sm:$0xf]
        %v518 = vld [vmem:[%s274 + $0x254] sm:$0xf]
        %v519 = vld [vmem:[%s274 + $0x258] sm:$0xf]
        %v520 = vld [vmem:[%s274 + $0x25c] sm:$0xf]
        %v521 = vld [vmem:[%s274 + $0x260] sm:$0xf]
        %v522 = vld [vmem:[%s274 + $0x264] sm:$0xf]
        %v523 = vld [vmem:[%s274 + $0x268] sm:$0xf]
        %v524 = vld [vmem:[%s274 + $0x26c] sm:$0xf]
        %v525 = vld [vmem:[%s274 + $0x270] sm:$0xf]
        %v526 = vld [vmem:[%s274 + $0x274] sm:$0xf]
        %v527 = vld [vmem:[%s274 + $0x278] sm:$0xf]
        %v528 = vld [vmem:[%s274 + $0x27c] sm:$0xf]
        %v529 = vld [vmem:[%s274 + $0x280] sm:$0xf]
        %v530 = vld [vmem:[%s274 + $0x284] sm:$0xf]
        %v531 = vld [vmem:[%s274 + $0x288] sm:$0xf]
        %v532 = vld [vmem:[%s274 + $0x28c] sm:$0xf]
        %v533 = vld [vmem:[%s274 + $0x290] sm:$0xf]
        %v534 = vld [vmem:[%s274 + $0x294] sm:$0xf]
        %v535 = vld [vmem:[%s274 + $0x298] sm:$0xf]
        %v536 = vld [vmem:[%s274 + $0x29c] sm:$0xf]
        %v537 = vld [vmem:[%s274 + $0x2a0] sm:$0xf]
        %v538 = vld [vmem:[%s274 + $0x2a4] sm:$0xf]
        %v539 = vld [vmem:[%s274 + $0x2a8] sm:$0xf]
        %v540 = vld [vmem:[%s274 + $0x2ac] sm:$0xf]
        %v541 = vld [vmem:[%s274 + $0x2b0] sm:$0xf]
        %v542 = vld [vmem:[%s274 + $0x2b4] sm:$0xf]
        %v543 = vld [vmem:[%s274 + $0x2b8] sm:$0xf]
        %v544 = vld [vmem:[%s274 + $0x2bc] sm:$0xf]
        %v545 = vld [vmem:[%s274 + $0x2c0] sm:$0xf]
        %v546 = vld [vmem:[%s274 + $0x2c4] sm:$0xf]
        %v547 = vld [vmem:[%s274 + $0x2c8] sm:$0xf]
        %v548 = vld [vmem:[%s274 + $0x2cc] sm:$0xf]
        %v549 = vld [vmem:[%s274 + $0x2d0] sm:$0xf]
        %v550 = vld [vmem:[%s274 + $0x2d4] sm:$0xf]
        %v551 = vld [vmem:[%s274 + $0x2d8] sm:$0xf]
        %v552 = vld [vmem:[%s274 + $0x2dc] sm:$0xf]
        %v553 = vld [vmem:[%s274 + $0x2e0] sm:$0xf]
        %v554 = vld [vmem:[%s274 + $0x2e4] sm:$0xf]
        %v555 = vld [vmem:[%s274 + $0x2e8] sm:$0xf]
        %v556 = vld [vmem:[%s274 + $0x2ec] sm:$0xf]
        %v557 = vld [vmem:[%s274 + $0x2f0] sm:$0xf]
        %v558 = vld [vmem:[%s274 + $0x2f4] sm:$0xf]
        %v559 = vld [vmem:[%s274 + $0x2f8] sm:$0xf]
        %v560 = vld [vmem:[%s274 + $0x2fc] sm:$0xf]
        %v561 = vld [vmem:[%s274 + $0x300] sm:$0xf]
        %v562 = vld [vmem:[%s274 + $0x304] sm:$0xf]
        %v563 = vld [vmem:[%s274 + $0x308] sm:$0xf]
        %v564 = vld [vmem:[%s274 + $0x30c] sm:$0xf]
        %v565 = vld [vmem:[%s274 + $0x310] sm:$0xf]
        %v566 = vld [vmem:[%s274 + $0x314] sm:$0xf]
        %v567 = vld [vmem:[%s274 + $0x318] sm:$0xf]
        %v568 = vld [vmem:[%s274 + $0x31c] sm:$0xf]
        %v569 = vld [vmem:[%s274 + $0x320] sm:$0xf]
        %v570 = vld [vmem:[%s274 + $0x324] sm:$0xf]
        %v571 = vld [vmem:[%s274 + $0x328] sm:$0xf]
        %v572 = vld [vmem:[%s274 + $0x32c] sm:$0xf]
        %v573 = vld [vmem:[%s274 + $0x330] sm:$0xf]
        %v574 = vld [vmem:[%s274 + $0x334] sm:$0xf]
        %v575 = vld [vmem:[%s274 + $0x338] sm:$0xf]
        %v576 = vld [vmem:[%s274 + $0x33c] sm:$0xf]
        %v577 = vld [vmem:[%s274 + $0x340] sm:$0xf]
        %v578 = vld [vmem:[%s274 + $0x344] sm:$0xf]
        %v579 = vld [vmem:[%s274 + $0x348] sm:$0xf]
        %v580 = vld [vmem:[%s274 + $0x34c] sm:$0xf]
        %v581 = vld [vmem:[%s274 + $0x350] sm:$0xf]
        %v582 = vld [vmem:[%s274 + $0x354] sm:$0xf]
        %v583 = vld [vmem:[%s274 + $0x358] sm:$0xf]
        %v584 = vld [vmem:[%s274 + $0x35c] sm:$0xf]
        %v585 = vld [vmem:[%s274 + $0x360] sm:$0xf]
        %v586 = vld [vmem:[%s274 + $0x364] sm:$0xf]
        %v587 = vld [vmem:[%s274 + $0x368] sm:$0xf]
        %v588 = vld [vmem:[%s274 + $0x36c] sm:$0xf]
        %v589 = vld [vmem:[%s274 + $0x370] sm:$0xf]
        %v590 = vld [vmem:[%s274 + $0x374] sm:$0xf]
        %v591 = vld [vmem:[%s274 + $0x378] sm:$0xf]
        %v592 = vld [vmem:[%s274 + $0x37c] sm:$0xf]
        %v593 = vld [vmem:[%s274 + $0x380] sm:$0xf]
        %v594 = vld [vmem:[%s274 + $0x384] sm:$0xf]
        %v595 = vld [vmem:[%s274 + $0x388] sm:$0xf]
        %v596 = vld [vmem:[%s274 + $0x38c] sm:$0xf]
        %v597 = vld [vmem:[%s274 + $0x390] sm:$0xf]
        %v598 = vld [vmem:[%s274 + $0x394] sm:$0xf]
        %v599 = vld [vmem:[%s274 + $0x398] sm:$0xf]
        %v600 = vld [vmem:[%s274 + $0x39c] sm:$0xf]
        %v601 = vld [vmem:[%s274 + $0x3a0] sm:$0xf]
        %v602 = vld [vmem:[%s274 + $0x3a4] sm:$0xf]
        %v603 = vld [vmem:[%s274 + $0x3a8] sm:$0xf]
        %v604 = vld [vmem:[%s274 + $0x3ac] sm:$0xf]
        %v605 = vld [vmem:[%s274 + $0x3b0] sm:$0xf]
        %v606 = vld [vmem:[%s274 + $0x3b4] sm:$0xf]
        %v607 = vld [vmem:[%s274 + $0x3b8] sm:$0xf]
        %v608 = vld [vmem:[%s274 + $0x3bc] sm:$0xf]
        %v609 = vld [vmem:[%s274 + $0x3c0] sm:$0xf]
        %v610 = vld [vmem:[%s274 + $0x3c4] sm:$0xf]
        %v611 = vld [vmem:[%s274 + $0x3c8] sm:$0xf]
        %v612 = vld [vmem:[%s274 + $0x3cc] sm:$0xf]
        %v613 = vld [vmem:[%s274 + $0x3d0] sm:$0xf]
        %v614 = vld [vmem:[%s274 + $0x3d4] sm:$0xf]
        %v615 = vld [vmem:[%s274 + $0x3d8] sm:$0xf]
        %v616 = vld [vmem:[%s274 + $0x3dc] sm:$0xf]
        %v617 = vld [vmem:[%s274 + $0x3e0] sm:$0xf]
        %v618 = vld [vmem:[%s274 + $0x3e4] sm:$0xf]
        %v619 = vld [vmem:[%s274 + $0x3e8] sm:$0xf]
        %v620 = vld [vmem:[%s274 + $0x3ec] sm:$0xf]
        %v621 = vld [vmem:[%s274 + $0x3f0] sm:$0xf]
        %v622 = vld [vmem:[%s274 + $0x3f4] sm:$0xf]
        %v623 = vld [vmem:[%s274 + $0x3f8] sm:$0xf]
        %v624 = vld [vmem:[%s274 + $0x3fc] sm:$0xf]
        %v689 = vunpack.c.l.b16 %v305
        %v690 = vunpack.c.h.b16 %v305
        %v691 = vunpack.c.l.b16 %v306
        %v692 = vunpack.c.h.b16 %v306
        %v693 = vunpack.c.l.b16 %v307
        %v694 = vunpack.c.h.b16 %v307
        %v695 = vunpack.c.l.b16 %v308
        %v696 = vunpack.c.h.b16 %v308
        %v697 = vunpack.c.l.b16 %v309
        %v698 = vunpack.c.h.b16 %v309
        %v699 = vunpack.c.l.b16 %v310
        %v700 = vunpack.c.h.b16 %v310
        %v701 = vunpack.c.l.b16 %v311
        %v702 = vunpack.c.h.b16 %v311
        %v703 = vunpack.c.l.b16 %v312
        %v704 = vunpack.c.h.b16 %v312
        %v705 = vunpack.c.l.b16 %v313
        %v706 = vunpack.c.h.b16 %v313
        %v707 = vunpack.c.l.b16 %v314
        %v708 = vunpack.c.h.b16 %v314
        %v709 = vunpack.c.l.b16 %v315
        %v710 = vunpack.c.h.b16 %v315
        %v711 = vunpack.c.l.b16 %v316
        %v712 = vunpack.c.h.b16 %v316
        %v713 = vunpack.c.l.b16 %v317
        %v714 = vunpack.c.h.b16 %v317
        %v715 = vunpack.c.l.b16 %v318
        %v716 = vunpack.c.h.b16 %v318
        %v717 = vunpack.c.l.b16 %v319
        %v718 = vunpack.c.h.b16 %v319
        %v719 = vunpack.c.l.b16 %v320
        %v720 = vunpack.c.h.b16 %v320
        %v721 = vunpack.c.l.b16 %v321
        %v722 = vunpack.c.h.b16 %v321
        %v723 = vunpack.c.l.b16 %v322
        %v724 = vunpack.c.h.b16 %v322
        %v725 = vunpack.c.l.b16 %v323
        %v726 = vunpack.c.h.b16 %v323
        %v727 = vunpack.c.l.b16 %v324
        %v728 = vunpack.c.h.b16 %v324
        %v729 = vunpack.c.l.b16 %v325
        %v730 = vunpack.c.h.b16 %v325
        %v731 = vunpack.c.l.b16 %v326
        %v732 = vunpack.c.h.b16 %v326
        %v733 = vunpack.c.l.b16 %v327
        %v734 = vunpack.c.h.b16 %v327
        %v735 = vunpack.c.l.b16 %v328
        %v736 = vunpack.c.h.b16 %v328
        %v737 = vunpack.c.l.b16 %v329
        %v738 = vunpack.c.h.b16 %v329
        %v739 = vunpack.c.l.b16 %v330
        %v740 = vunpack.c.h.b16 %v330
        %v741 = vunpack.c.l.b16 %v331
        %v742 = vunpack.c.h.b16 %v331
        %v743 = vunpack.c.l.b16 %v332
        %v744 = vunpack.c.h.b16 %v332
        %v745 = vunpack.c.l.b16 %v333
        %v746 = vunpack.c.h.b16 %v333
        %v747 = vunpack.c.l.b16 %v334
        %v748 = vunpack.c.h.b16 %v334
        %v749 = vunpack.c.l.b16 %v335
        %v750 = vunpack.c.h.b16 %v335
        %v751 = vunpack.c.l.b16 %v336
        %v752 = vunpack.c.h.b16 %v336
        %v753 = vunpack.c.l.b16 %v337
        %v754 = vunpack.c.h.b16 %v337
        %v755 = vunpack.c.l.b16 %v338
        %v756 = vunpack.c.h.b16 %v338
        %v757 = vunpack.c.l.b16 %v339
        %v758 = vunpack.c.h.b16 %v339
        %v759 = vunpack.c.l.b16 %v340
        %v760 = vunpack.c.h.b16 %v340
        %v761 = vunpack.c.l.b16 %v341
        %v762 = vunpack.c.h.b16 %v341
        %v763 = vunpack.c.l.b16 %v342
        %v764 = vunpack.c.h.b16 %v342
        %v765 = vunpack.c.l.b16 %v343
        %v766 = vunpack.c.h.b16 %v343
        %v767 = vunpack.c.l.b16 %v344
        %v768 = vunpack.c.h.b16 %v344
        %v769 = vunpack.c.l.b16 %v345
        %v770 = vunpack.c.h.b16 %v345
        %v771 = vunpack.c.l.b16 %v346
        %v772 = vunpack.c.h.b16 %v346
        %v773 = vunpack.c.l.b16 %v347
        %v774 = vunpack.c.h.b16 %v347
        %v775 = vunpack.c.l.b16 %v348
        %v776 = vunpack.c.h.b16 %v348
        %v777 = vunpack.c.l.b16 %v349
        %v778 = vunpack.c.h.b16 %v349
        %v779 = vunpack.c.l.b16 %v350
        %v780 = vunpack.c.h.b16 %v350
        %v781 = vunpack.c.l.b16 %v351
        %v782 = vunpack.c.h.b16 %v351
        %v783 = vunpack.c.l.b16 %v352
        %v784 = vunpack.c.h.b16 %v352
        %v785 = vunpack.c.l.b16 %v353
        %v786 = vunpack.c.h.b16 %v353
        %v787 = vunpack.c.l.b16 %v354
        %v788 = vunpack.c.h.b16 %v354
        %v789 = vunpack.c.l.b16 %v355
        %v790 = vunpack.c.h.b16 %v355
        %v791 = vunpack.c.l.b16 %v356
        %v792 = vunpack.c.h.b16 %v356
        %v793 = vunpack.c.l.b16 %v357
        %v794 = vunpack.c.h.b16 %v357
        %v795 = vunpack.c.l.b16 %v358
        %v796 = vunpack.c.h.b16 %v358
        %v797 = vunpack.c.l.b16 %v359
        %v798 = vunpack.c.h.b16 %v359
        %v799 = vunpack.c.l.b16 %v360
        %v800 = vunpack.c.h.b16 %v360
        %v801 = vunpack.c.l.b16 %v361
        %v802 = vunpack.c.h.b16 %v361
        %v803 = vunpack.c.l.b16 %v362
        %v804 = vunpack.c.h.b16 %v362
        %v805 = vunpack.c.l.b16 %v363
        %v806 = vunpack.c.h.b16 %v363
        %v807 = vunpack.c.l.b16 %v364
        %v808 = vunpack.c.h.b16 %v364
        %v809 = vunpack.c.l.b16 %v365
        %v810 = vunpack.c.h.b16 %v365
        %v811 = vunpack.c.l.b16 %v366
        %v812 = vunpack.c.h.b16 %v366
        %v813 = vunpack.c.l.b16 %v367
        %v814 = vunpack.c.h.b16 %v367
        %v815 = vunpack.c.l.b16 %v368
        %v816 = vunpack.c.h.b16 %v368
        %v817 = vpack.c.b16 %v705, %v689
        %v818 = vpack.c.b16 %v706, %v690
        %v819 = vpack.c.b16 %v707, %v691
        %v820 = vpack.c.b16 %v708, %v692
        %v821 = vpack.c.b16 %v709, %v693
        %v822 = vpack.c.b16 %v710, %v694
        %v823 = vpack.c.b16 %v711, %v695
        %v824 = vpack.c.b16 %v712, %v696
        %v825 = vpack.c.b16 %v713, %v697
        %v826 = vpack.c.b16 %v714, %v698
        %v827 = vpack.c.b16 %v715, %v699
        %v828 = vpack.c.b16 %v716, %v700
        %v829 = vpack.c.b16 %v717, %v701
        %v830 = vpack.c.b16 %v718, %v702
        %v831 = vpack.c.b16 %v719, %v703
        %v832 = vpack.c.b16 %v720, %v704
        %v833 = vpack.c.b16 %v737, %v721
        %v834 = vpack.c.b16 %v738, %v722
        %v835 = vpack.c.b16 %v739, %v723
        %v836 = vpack.c.b16 %v740, %v724
        %v837 = vpack.c.b16 %v741, %v725
        %v838 = vpack.c.b16 %v742, %v726
        %v839 = vpack.c.b16 %v743, %v727
        %v840 = vpack.c.b16 %v744, %v728
        %v841 = vpack.c.b16 %v745, %v729
        %v842 = vpack.c.b16 %v746, %v730
        %v843 = vpack.c.b16 %v747, %v731
        %v844 = vpack.c.b16 %v748, %v732
        %v845 = vpack.c.b16 %v749, %v733
        %v846 = vpack.c.b16 %v750, %v734
        %v847 = vpack.c.b16 %v751, %v735
        %v848 = vpack.c.b16 %v752, %v736
        %v849 = vpack.c.b16 %v769, %v753
        %v850 = vpack.c.b16 %v770, %v754
        %v851 = vpack.c.b16 %v771, %v755
        %v852 = vpack.c.b16 %v772, %v756
        %v853 = vpack.c.b16 %v773, %v757
        %v854 = vpack.c.b16 %v774, %v758
        %v855 = vpack.c.b16 %v775, %v759
        %v856 = vpack.c.b16 %v776, %v760
        %v857 = vpack.c.b16 %v777, %v761
        %v858 = vpack.c.b16 %v778, %v762
        %v859 = vpack.c.b16 %v779, %v763
        %v860 = vpack.c.b16 %v780, %v764
        %v861 = vpack.c.b16 %v781, %v765
        %v862 = vpack.c.b16 %v782, %v766
        %v863 = vpack.c.b16 %v783, %v767
        %v864 = vpack.c.b16 %v784, %v768
        %v865 = vpack.c.b16 %v801, %v785
        %v866 = vpack.c.b16 %v802, %v786
        %v867 = vpack.c.b16 %v803, %v787
        %v868 = vpack.c.b16 %v804, %v788
        %v869 = vpack.c.b16 %v805, %v789
        %v870 = vpack.c.b16 %v806, %v790
        %v871 = vpack.c.b16 %v807, %v791
        %v872 = vpack.c.b16 %v808, %v792
        %v873 = vpack.c.b16 %v809, %v793
        %v874 = vpack.c.b16 %v810, %v794
        %v875 = vpack.c.b16 %v811, %v795
        %v876 = vpack.c.b16 %v812, %v796
        %v877 = vpack.c.b16 %v813, %v797
        %v878 = vpack.c.b16 %v814, %v798
        %v879 = vpack.c.b16 %v815, %v799
        %v880 = vpack.c.b16 %v816, %v800
        %v1201 = vunpack.c.l.b16 %v369
        %v1202 = vunpack.c.l.b16 %v370
        %v1203 = vunpack.c.l.b16 %v371
        %v1204 = vunpack.c.l.b16 %v372
        %v1205 = vunpack.c.l.b16 %v373
        %v1206 = vunpack.c.l.b16 %v374
        %v1207 = vunpack.c.l.b16 %v375
        %v1208 = vunpack.c.l.b16 %v376
        %v1209 = vunpack.c.l.b16 %v377
        %v1210 = vunpack.c.l.b16 %v378
        %v1211 = vunpack.c.l.b16 %v379
        %v1212 = vunpack.c.l.b16 %v380
        %v1213 = vunpack.c.l.b16 %v381
        %v1214 = vunpack.c.l.b16 %v382
        %v1215 = vunpack.c.l.b16 %v383
        %v1216 = vunpack.c.l.b16 %v384
        %v1217 = vunpack.c.l.b16 %v385
        %v1218 = vunpack.c.l.b16 %v386
        %v1219 = vunpack.c.l.b16 %v387
        %v1220 = vunpack.c.l.b16 %v388
        %v1221 = vunpack.c.l.b16 %v389
        %v1222 = vunpack.c.l.b16 %v390
        %v1223 = vunpack.c.l.b16 %v391
        %v1224 = vunpack.c.l.b16 %v392
        %v1225 = vunpack.c.l.b16 %v393
        %v1226 = vunpack.c.l.b16 %v394
        %v1227 = vunpack.c.l.b16 %v395
        %v1228 = vunpack.c.l.b16 %v396
        %v1229 = vunpack.c.l.b16 %v397
        %v1230 = vunpack.c.l.b16 %v398
        %v1231 = vunpack.c.l.b16 %v399
        %v1232 = vunpack.c.l.b16 %v400
        %v1233 = vunpack.c.l.b16 %v401
        %v1234 = vunpack.c.l.b16 %v402
        %v1235 = vunpack.c.l.b16 %v403
        %v1236 = vunpack.c.l.b16 %v404
        %v1237 = vunpack.c.l.b16 %v405
        %v1238 = vunpack.c.l.b16 %v406
        %v1239 = vunpack.c.l.b16 %v407
        %v1240 = vunpack.c.l.b16 %v408
        %v1241 = vunpack.c.l.b16 %v409
        %v1242 = vunpack.c.l.b16 %v410
        %v1243 = vunpack.c.l.b16 %v411
        %v1244 = vunpack.c.l.b16 %v412
        %v1245 = vunpack.c.l.b16 %v413
        %v1246 = vunpack.c.l.b16 %v414
        %v1247 = vunpack.c.l.b16 %v415
        %v1248 = vunpack.c.l.b16 %v416
        %v1249 = vunpack.c.l.b16 %v417
        %v1250 = vunpack.c.l.b16 %v418
        %v1251 = vunpack.c.l.b16 %v419
        %v1252 = vunpack.c.l.b16 %v420
        %v1253 = vunpack.c.l.b16 %v421
        %v1254 = vunpack.c.l.b16 %v422
        %v1255 = vunpack.c.l.b16 %v423
        %v1256 = vunpack.c.l.b16 %v424
        %v1257 = vunpack.c.l.b16 %v425
        %v1258 = vunpack.c.l.b16 %v426
        %v1259 = vunpack.c.l.b16 %v427
        %v1260 = vunpack.c.l.b16 %v428
        %v1261 = vunpack.c.l.b16 %v429
        %v1262 = vunpack.c.l.b16 %v430
        %v1263 = vunpack.c.l.b16 %v431
        %v1264 = vunpack.c.l.b16 %v432
        %v1265 = vunpack.c.l.b16 %v433
        %v1266 = vunpack.c.l.b16 %v434
        %v1267 = vunpack.c.l.b16 %v435
        %v1268 = vunpack.c.l.b16 %v436
        %v1269 = vunpack.c.l.b16 %v437
        %v1270 = vunpack.c.l.b16 %v438
        %v1271 = vunpack.c.l.b16 %v439
        %v1272 = vunpack.c.l.b16 %v440
        %v1273 = vunpack.c.l.b16 %v441
        %v1274 = vunpack.c.l.b16 %v442
        %v1275 = vunpack.c.l.b16 %v443
        %v1276 = vunpack.c.l.b16 %v444
        %v1277 = vunpack.c.l.b16 %v445
        %v1278 = vunpack.c.l.b16 %v446
        %v1279 = vunpack.c.l.b16 %v447
        %v1280 = vunpack.c.l.b16 %v448
        %v1281 = vunpack.c.l.b16 %v449
        %v1282 = vunpack.c.l.b16 %v450
        %v1283 = vunpack.c.l.b16 %v451
        %v1284 = vunpack.c.l.b16 %v452
        %v1285 = vunpack.c.l.b16 %v453
        %v1286 = vunpack.c.l.b16 %v454
        %v1287 = vunpack.c.l.b16 %v455
        %v1288 = vunpack.c.l.b16 %v456
        %v1289 = vunpack.c.l.b16 %v457
        %v1290 = vunpack.c.l.b16 %v458
        %v1291 = vunpack.c.l.b16 %v459
        %v1292 = vunpack.c.l.b16 %v460
        %v1293 = vunpack.c.l.b16 %v461
        %v1294 = vunpack.c.l.b16 %v462
        %v1295 = vunpack.c.l.b16 %v463
        %v1296 = vunpack.c.l.b16 %v464
        %v1297 = vunpack.c.l.b16 %v465
        %v1298 = vunpack.c.l.b16 %v466
        %v1299 = vunpack.c.l.b16 %v467
        %v1300 = vunpack.c.l.b16 %v468
        %v1301 = vunpack.c.l.b16 %v469
        %v1302 = vunpack.c.l.b16 %v470
        %v1303 = vunpack.c.l.b16 %v471
        %v1304 = vunpack.c.l.b16 %v472
        %v1305 = vunpack.c.l.b16 %v473
        %v1306 = vunpack.c.l.b16 %v474
        %v1307 = vunpack.c.l.b16 %v475
        %v1308 = vunpack.c.l.b16 %v476
        %v1309 = vunpack.c.l.b16 %v477
        %v1310 = vunpack.c.l.b16 %v478
        %v1311 = vunpack.c.l.b16 %v479
        %v1312 = vunpack.c.l.b16 %v480
        %v1313 = vunpack.c.l.b16 %v481
        %v1314 = vunpack.c.l.b16 %v482
        %v1315 = vunpack.c.l.b16 %v483
        %v1316 = vunpack.c.l.b16 %v484
        %v1317 = vunpack.c.l.b16 %v485
        %v1318 = vunpack.c.l.b16 %v486
        %v1319 = vunpack.c.l.b16 %v487
        %v1320 = vunpack.c.l.b16 %v488
        %v1321 = vunpack.c.l.b16 %v489
        %v1322 = vunpack.c.l.b16 %v490
        %v1323 = vunpack.c.l.b16 %v491
        %v1324 = vunpack.c.l.b16 %v492
        %v1325 = vunpack.c.l.b16 %v493
        %v1326 = vunpack.c.l.b16 %v494
        %v1327 = vunpack.c.l.b16 %v495
        %v1328 = vunpack.c.l.b16 %v496
        %v1329 = vunpack.c.l.b16 %v497
        %v1330 = vunpack.c.l.b16 %v498
        %v1331 = vunpack.c.l.b16 %v499
        %v1332 = vunpack.c.l.b16 %v500
        %v1333 = vunpack.c.l.b16 %v501
        %v1334 = vunpack.c.l.b16 %v502
        %v1335 = vunpack.c.l.b16 %v503
        %v1336 = vunpack.c.l.b16 %v504
        %v1337 = vunpack.c.l.b16 %v505
        %v1338 = vunpack.c.l.b16 %v506
        %v1339 = vunpack.c.l.b16 %v507
        %v1340 = vunpack.c.l.b16 %v508
        %v1341 = vunpack.c.l.b16 %v509
        %v1342 = vunpack.c.l.b16 %v510
        %v1343 = vunpack.c.l.b16 %v511
        %v1344 = vunpack.c.l.b16 %v512
        %v1345 = vunpack.c.l.b16 %v513
        %v1346 = vunpack.c.l.b16 %v514
        %v1347 = vunpack.c.l.b16 %v515
        %v1348 = vunpack.c.l.b16 %v516
        %v1349 = vunpack.c.l.b16 %v517
        %v1350 = vunpack.c.l.b16 %v518
        %v1351 = vunpack.c.l.b16 %v519
        %v1352 = vunpack.c.l.b16 %v520
        %v1353 = vunpack.c.l.b16 %v521
        %v1354 = vunpack.c.l.b16 %v522
        %v1355 = vunpack.c.l.b16 %v523
        %v1356 = vunpack.c.l.b16 %v524
        %v1357 = vunpack.c.l.b16 %v525
        %v1358 = vunpack.c.l.b16 %v526
        %v1359 = vunpack.c.l.b16 %v527
        %v1360 = vunpack.c.l.b16 %v528
        %v1361 = vunpack.c.l.b16 %v529
        %v1362 = vunpack.c.l.b16 %v530
        %v1363 = vunpack.c.l.b16 %v531
        %v1364 = vunpack.c.l.b16 %v532
        %v1365 = vunpack.c.l.b16 %v533
        %v1366 = vunpack.c.l.b16 %v534
        %v1367 = vunpack.c.l.b16 %v535
        %v1368 = vunpack.c.l.b16 %v536
        %v1369 = vunpack.c.l.b16 %v537
        %v1370 = vunpack.c.l.b16 %v538
        %v1371 = vunpack.c.l.b16 %v539
        %v1372 = vunpack.c.l.b16 %v540
        %v1373 = vunpack.c.l.b16 %v541
        %v1374 = vunpack.c.l.b16 %v542
        %v1375 = vunpack.c.l.b16 %v543
        %v1376 = vunpack.c.l.b16 %v544
        %v1377 = vunpack.c.l.b16 %v545
        %v1378 = vunpack.c.l.b16 %v546
        %v1379 = vunpack.c.l.b16 %v547
        %v1380 = vunpack.c.l.b16 %v548
        %v1381 = vunpack.c.l.b16 %v549
        %v1382 = vunpack.c.l.b16 %v550
        %v1383 = vunpack.c.l.b16 %v551
        %v1384 = vunpack.c.l.b16 %v552
        %v1385 = vunpack.c.l.b16 %v553
        %v1386 = vunpack.c.l.b16 %v554
        %v1387 = vunpack.c.l.b16 %v555
        %v1388 = vunpack.c.l.b16 %v556
        %v1389 = vunpack.c.l.b16 %v557
        %v1390 = vunpack.c.l.b16 %v558
        %v1391 = vunpack.c.l.b16 %v559
        %v1392 = vunpack.c.l.b16 %v560
        %v1393 = vunpack.c.l.b16 %v561
        %v1394 = vunpack.c.l.b16 %v562
        %v1395 = vunpack.c.l.b16 %v563
        %v1396 = vunpack.c.l.b16 %v564
        %v1397 = vunpack.c.l.b16 %v565
        %v1398 = vunpack.c.l.b16 %v566
        %v1399 = vunpack.c.l.b16 %v567
        %v1400 = vunpack.c.l.b16 %v568
        %v1401 = vunpack.c.l.b16 %v569
        %v1402 = vunpack.c.l.b16 %v570
        %v1403 = vunpack.c.l.b16 %v571
        %v1404 = vunpack.c.l.b16 %v572
        %v1405 = vunpack.c.l.b16 %v573
        %v1406 = vunpack.c.l.b16 %v574
        %v1407 = vunpack.c.l.b16 %v575
        %v1408 = vunpack.c.l.b16 %v576
        %v1409 = vunpack.c.l.b16 %v577
        %v1410 = vunpack.c.l.b16 %v578
        %v1411 = vunpack.c.l.b16 %v579
        %v1412 = vunpack.c.l.b16 %v580
        %v1413 = vunpack.c.l.b16 %v581
        %v1414 = vunpack.c.l.b16 %v582
        %v1415 = vunpack.c.l.b16 %v583
        %v1416 = vunpack.c.l.b16 %v584
        %v1417 = vunpack.c.l.b16 %v585
        %v1418 = vunpack.c.l.b16 %v586
        %v1419 = vunpack.c.l.b16 %v587
        %v1420 = vunpack.c.l.b16 %v588
        %v1421 = vunpack.c.l.b16 %v589
        %v1422 = vunpack.c.l.b16 %v590
        %v1423 = vunpack.c.l.b16 %v591
        %v1424 = vunpack.c.l.b16 %v592
        %v1425 = vunpack.c.l.b16 %v593
        %v1426 = vunpack.c.l.b16 %v594
        %v1427 = vunpack.c.l.b16 %v595
        %v1428 = vunpack.c.l.b16 %v596
        %v1429 = vunpack.c.l.b16 %v597
        %v1430 = vunpack.c.l.b16 %v598
        %v1431 = vunpack.c.l.b16 %v599
        %v1432 = vunpack.c.l.b16 %v600
        %v1433 = vunpack.c.l.b16 %v601
        %v1434 = vunpack.c.l.b16 %v602
        %v1435 = vunpack.c.l.b16 %v603
        %v1436 = vunpack.c.l.b16 %v604
        %v1437 = vunpack.c.l.b16 %v605
        %v1438 = vunpack.c.l.b16 %v606
        %v1439 = vunpack.c.l.b16 %v607
        %v1440 = vunpack.c.l.b16 %v608
        %v1441 = vunpack.c.l.b16 %v609
        %v1442 = vunpack.c.l.b16 %v610
        %v1443 = vunpack.c.l.b16 %v611
        %v1444 = vunpack.c.l.b16 %v612
        %v1445 = vunpack.c.l.b16 %v613
        %v1446 = vunpack.c.l.b16 %v614
        %v1447 = vunpack.c.l.b16 %v615
        %v1448 = vunpack.c.l.b16 %v616
        %v1449 = vunpack.c.l.b16 %v617
        %v1450 = vunpack.c.l.b16 %v618
        %v1451 = vunpack.c.l.b16 %v619
        %v1452 = vunpack.c.l.b16 %v620
        %v1453 = vunpack.c.l.b16 %v621
        %v1454 = vunpack.c.l.b16 %v622
        %v1455 = vunpack.c.l.b16 %v623
        %v1456 = vunpack.c.l.b16 %v624
        %v1457 = vpack.c.b16 %v1202, %v1201
        %v1458 = vpack.c.b16 %v1204, %v1203
        %v1459 = vpack.c.b16 %v1206, %v1205
        %v1460 = vpack.c.b16 %v1208, %v1207
        %v1461 = vpack.c.b16 %v1210, %v1209
        %v1462 = vpack.c.b16 %v1212, %v1211
        %v1463 = vpack.c.b16 %v1214, %v1213
        %v1464 = vpack.c.b16 %v1216, %v1215
        %v1465 = vpack.c.b16 %v1218, %v1217
        %v1466 = vpack.c.b16 %v1220, %v1219
        %v1467 = vpack.c.b16 %v1222, %v1221
        %v1468 = vpack.c.b16 %v1224, %v1223
        %v1469 = vpack.c.b16 %v1226, %v1225
        %v1470 = vpack.c.b16 %v1228, %v1227
        %v1471 = vpack.c.b16 %v1230, %v1229
        %v1472 = vpack.c.b16 %v1232, %v1231
        %v1473 = vpack.c.b16 %v1234, %v1233
        %v1474 = vpack.c.b16 %v1236, %v1235
        %v1475 = vpack.c.b16 %v1238, %v1237
        %v1476 = vpack.c.b16 %v1240, %v1239
        %v1477 = vpack.c.b16 %v1242, %v1241
        %v1478 = vpack.c.b16 %v1244, %v1243
        %v1479 = vpack.c.b16 %v1246, %v1245
        %v1480 = vpack.c.b16 %v1248, %v1247
        %v1481 = vpack.c.b16 %v1250, %v1249
        %v1482 = vpack.c.b16 %v1252, %v1251
        %v1483 = vpack.c.b16 %v1254, %v1253
        %v1484 = vpack.c.b16 %v1256, %v1255
        %v1485 = vpack.c.b16 %v1258, %v1257
        %v1486 = vpack.c.b16 %v1260, %v1259
        %v1487 = vpack.c.b16 %v1262, %v1261
        %v1488 = vpack.c.b16 %v1264, %v1263
        %v1489 = vpack.c.b16 %v1266, %v1265
        %v1490 = vpack.c.b16 %v1268, %v1267
        %v1491 = vpack.c.b16 %v1270, %v1269
        %v1492 = vpack.c.b16 %v1272, %v1271
        %v1493 = vpack.c.b16 %v1274, %v1273
        %v1494 = vpack.c.b16 %v1276, %v1275
        %v1495 = vpack.c.b16 %v1278, %v1277
        %v1496 = vpack.c.b16 %v1280, %v1279
        %v1497 = vpack.c.b16 %v1282, %v1281
        %v1498 = vpack.c.b16 %v1284, %v1283
        %v1499 = vpack.c.b16 %v1286, %v1285
        %v1500 = vpack.c.b16 %v1288, %v1287
        %v1501 = vpack.c.b16 %v1290, %v1289
        %v1502 = vpack.c.b16 %v1292, %v1291
        %v1503 = vpack.c.b16 %v1294, %v1293
        %v1504 = vpack.c.b16 %v1296, %v1295
        %v1505 = vpack.c.b16 %v1298, %v1297
        %v1506 = vpack.c.b16 %v1300, %v1299
        %v1507 = vpack.c.b16 %v1302, %v1301
        %v1508 = vpack.c.b16 %v1304, %v1303
        %v1509 = vpack.c.b16 %v1306, %v1305
        %v1510 = vpack.c.b16 %v1308, %v1307
        %v1511 = vpack.c.b16 %v1310, %v1309
        %v1512 = vpack.c.b16 %v1312, %v1311
        %v1513 = vpack.c.b16 %v1314, %v1313
        %v1514 = vpack.c.b16 %v1316, %v1315
        %v1515 = vpack.c.b16 %v1318, %v1317
        %v1516 = vpack.c.b16 %v1320, %v1319
        %v1517 = vpack.c.b16 %v1322, %v1321
        %v1518 = vpack.c.b16 %v1324, %v1323
        %v1519 = vpack.c.b16 %v1326, %v1325
        %v1520 = vpack.c.b16 %v1328, %v1327
        %v1521 = vpack.c.b16 %v1330, %v1329
        %v1522 = vpack.c.b16 %v1332, %v1331
        %v1523 = vpack.c.b16 %v1334, %v1333
        %v1524 = vpack.c.b16 %v1336, %v1335
        %v1525 = vpack.c.b16 %v1338, %v1337
        %v1526 = vpack.c.b16 %v1340, %v1339
        %v1527 = vpack.c.b16 %v1342, %v1341
        %v1528 = vpack.c.b16 %v1344, %v1343
        %v1529 = vpack.c.b16 %v1346, %v1345
        %v1530 = vpack.c.b16 %v1348, %v1347
        %v1531 = vpack.c.b16 %v1350, %v1349
        %v1532 = vpack.c.b16 %v1352, %v1351
        %v1533 = vpack.c.b16 %v1354, %v1353
        %v1534 = vpack.c.b16 %v1356, %v1355
        %v1535 = vpack.c.b16 %v1358, %v1357
        %v1536 = vpack.c.b16 %v1360, %v1359
        %v1537 = vpack.c.b16 %v1362, %v1361
        %v1538 = vpack.c.b16 %v1364, %v1363
        %v1539 = vpack.c.b16 %v1366, %v1365
        %v1540 = vpack.c.b16 %v1368, %v1367
        %v1541 = vpack.c.b16 %v1370, %v1369
        %v1542 = vpack.c.b16 %v1372, %v1371
        %v1543 = vpack.c.b16 %v1374, %v1373
        %v1544 = vpack.c.b16 %v1376, %v1375
        %v1545 = vpack.c.b16 %v1378, %v1377
        %v1546 = vpack.c.b16 %v1380, %v1379
        %v1547 = vpack.c.b16 %v1382, %v1381
        %v1548 = vpack.c.b16 %v1384, %v1383
        %v1549 = vpack.c.b16 %v1386, %v1385
        %v1550 = vpack.c.b16 %v1388, %v1387
        %v1551 = vpack.c.b16 %v1390, %v1389
        %v1552 = vpack.c.b16 %v1392, %v1391
        %v1553 = vpack.c.b16 %v1394, %v1393
        %v1554 = vpack.c.b16 %v1396, %v1395
        %v1555 = vpack.c.b16 %v1398, %v1397
        %v1556 = vpack.c.b16 %v1400, %v1399
        %v1557 = vpack.c.b16 %v1402, %v1401
        %v1558 = vpack.c.b16 %v1404, %v1403
        %v1559 = vpack.c.b16 %v1406, %v1405
        %v1560 = vpack.c.b16 %v1408, %v1407
        %v1561 = vpack.c.b16 %v1410, %v1409
        %v1562 = vpack.c.b16 %v1412, %v1411
        %v1563 = vpack.c.b16 %v1414, %v1413
        %v1564 = vpack.c.b16 %v1416, %v1415
        %v1565 = vpack.c.b16 %v1418, %v1417
        %v1566 = vpack.c.b16 %v1420, %v1419
        %v1567 = vpack.c.b16 %v1422, %v1421
        %v1568 = vpack.c.b16 %v1424, %v1423
        %v1569 = vpack.c.b16 %v1426, %v1425
        %v1570 = vpack.c.b16 %v1428, %v1427
        %v1571 = vpack.c.b16 %v1430, %v1429
        %v1572 = vpack.c.b16 %v1432, %v1431
        %v1573 = vpack.c.b16 %v1434, %v1433
        %v1574 = vpack.c.b16 %v1436, %v1435
        %v1575 = vpack.c.b16 %v1438, %v1437
        %v1576 = vpack.c.b16 %v1440, %v1439
        %v1577 = vpack.c.b16 %v1442, %v1441
        %v1578 = vpack.c.b16 %v1444, %v1443
        %v1579 = vpack.c.b16 %v1446, %v1445
        %v1580 = vpack.c.b16 %v1448, %v1447
        %v1581 = vpack.c.b16 %v1450, %v1449
        %v1582 = vpack.c.b16 %v1452, %v1451
        %v1583 = vpack.c.b16 %v1454, %v1453
        %v1584 = vpack.c.b16 %v1456, %v1455
        %1713 = vmatprep.subr.bf16.mxu0 0
        %1714 = vmatpush1.bf16.msra.mxu0 %v1457
        %1715 = vmatprep.subr.bf16.mxu0 0
        %1716 = vmatpush1.bf16.msra.mxu0 %v1458
        %1717 = vmatprep.subr.bf16.mxu0 0
        %1718 = vmatpush1.bf16.msra.mxu0 %v1459
        %1719 = vmatprep.subr.bf16.mxu0 0
        %1720 = vmatpush1.bf16.msra.mxu0 %v1460
        %1721 = vmatprep.subr.bf16.mxu0 0
        %1722 = vmatpush1.bf16.msra.mxu0 %v1461
        %1723 = vmatprep.subr.bf16.mxu0 0
        %1724 = vmatpush1.bf16.msra.mxu0 %v1462
        %1725 = vmatprep.subr.bf16.mxu0 0
        %1726 = vmatpush1.bf16.msra.mxu0 %v1463
        %1727 = vmatprep.subr.bf16.mxu0 0
        %1728 = vmatpush1.bf16.msra.mxu0 %v1464
        %1729 = vmatprep.subr.bf16.mxu0 0
        %1730 = vmatpush1.bf16.msra.mxu0 %v1465
        %1731 = vmatprep.subr.bf16.mxu0 0
        %1732 = vmatpush1.bf16.msra.mxu0 %v1466
        %1733 = vmatprep.subr.bf16.mxu0 0
        %1734 = vmatpush1.bf16.msra.mxu0 %v1467
        %1735 = vmatprep.subr.bf16.mxu0 0
        %1736 = vmatpush1.bf16.msra.mxu0 %v1468
        %1737 = vmatprep.subr.bf16.mxu0 0
        %1738 = vmatpush1.bf16.msra.mxu0 %v1469
        %1739 = vmatprep.subr.bf16.mxu0 0
        %1740 = vmatpush1.bf16.msra.mxu0 %v1470
        %1741 = vmatprep.subr.bf16.mxu0 0
        %1742 = vmatpush1.bf16.msra.mxu0 %v1471
        %1743 = vmatprep.subr.bf16.mxu0 0
        %1744 = vmatpush1.bf16.msra.mxu0 %v1472
        %1745 = vmatprep.mubr.bf16.mxu0 %v818
        %1746 = vmatmul.mubr.bf16.gmra.mrb[0].mxu0 %v817
        %v1747 = vpop.f32.mrb[0].mxu0
        %v1748 = vadd.f32 0.0, %v1747
        %v1749 = vpop.f32.mrb[0].mxu0
        %v1750 = vpop.f32.mrb[0].mxu0
        %v1751 = vadd.f32 0.0, %v1750
        %v1752 = vpop.f32.mrb[0].mxu0
        %1753 = vmatprep.mubr.bf16.mxu0 %v834
        %1754 = vmatmul.mubr.bf16.gmra.mrb[0].mxu0 %v833
        %v1755 = vpop.f32.mrb[0].mxu0
        %v1756 = vadd.f32 0.0, %v1755
        %v1757 = vpop.f32.mrb[0].mxu0
        %v1758 = vpop.f32.mrb[0].mxu0
        %v1759 = vadd.f32 0.0, %v1758
        %v1760 = vpop.f32.mrb[0].mxu0
        %1761 = vmatprep.mubr.bf16.mxu0 %v850
        %1762 = vmatmul.mubr.bf16.gmra.mrb[0].mxu0 %v849
        %v1763 = vpop.f32.mrb[0].mxu0
        %v1764 = vadd.f32 0.0, %v1763
        %v1765 = vpop.f32.mrb[0].mxu0
        %v1766 = vpop.f32.mrb[0].mxu0
        %v1767 = vadd.f32 0.0, %v1766
        %v1768 = vpop.f32.mrb[0].mxu0
        %1769 = vmatprep.mubr.bf16.mxu0 %v866
        %1770 = vmatmul.mubr.bf16.gmra.mrb[0].mxu0 %v865
        %v1771 = vpop.f32.mrb[0].mxu0
        %v1772 = vadd.f32 0.0, %v1771
        %v1773 = vpop.f32.mrb[0].mxu0
        %v1774 = vpop.f32.mrb[0].mxu0
        %v1775 = vadd.f32 0.0, %v1774
        %v1776 = vpop.f32.mrb[0].mxu0
        %1777 = vdwg.mxu0
        %1778 = vmatprep.subr.bf16.mxu0 0
        %1779 = vmatpush1.bf16.msra.mxu0 %v1473
        %1780 = vmatprep.subr.bf16.mxu0 0
        %1781 = vmatpush1.bf16.msra.mxu0 %v1474
        %1782 = vmatprep.subr.bf16.mxu0 0
        %1783 = vmatpush1.bf16.msra.mxu0 %v1475
        %1784 = vmatprep.subr.bf16.mxu0 0
        %1785 = vmatpush1.bf16.msra.mxu0 %v1476
        %1786 = vmatprep.subr.bf16.mxu0 0
        %1787 = vmatpush1.bf16.msra.mxu0 %v1477
        %1788 = vmatprep.subr.bf16.mxu0 0
        %1789 = vmatpush1.bf16.msra.mxu0 %v1478
        %1790 = vmatprep.subr.bf16.mxu0 0
        %1791 = vmatpush1.bf16.msra.mxu0 %v1479
        %1792 = vmatprep.subr.bf16.mxu0 0
        %1793 = vmatpush1.bf16.msra.mxu0 %v1480
        %1794 = vmatprep.subr.bf16.mxu0 0
        %1795 = vmatpush1.bf16.msra.mxu0 %v1481
        %1796 = vmatprep.subr.bf16.mxu0 0
        %1797 = vmatpush1.bf16.msra.mxu0 %v1482
        %1798 = vmatprep.subr.bf16.mxu0 0
        %1799 = vmatpush1.bf16.msra.mxu0 %v1483
        %1800 = vmatprep.subr.bf16.mxu0 0
        %1801 = vmatpush1.bf16.msra.mxu0 %v1484
        %1802 = vmatprep.subr.bf16.mxu0 0
        %1803 = vmatpush1.bf16.msra.mxu0 %v1485
        %1804 = vmatprep.subr.bf16.mxu0 0
        %1805 = vmatpush1.bf16.msra.mxu0 %v1486
        %1806 = vmatprep.subr.bf16.mxu0 0
        %1807 = vmatpush1.bf16.msra.mxu0 %v1487
        %1808 = vmatprep.subr.bf16.mxu0 0
        %1809 = vmatpush1.bf16.msra.mxu0 %v1488
        %1810 = vmatprep.mubr.bf16.mxu0 %v820
        %1811 = vmatmul.mubr.bf16.gmra.mrb[0].mxu0 %v819
        %v1812 = vpop.f32.mrb[0].mxu0
        %v1813 = vadd.f32 %v1748, %v1812
        %v1814 = vpop.f32.mrb[0].mxu0
        %v1815 = vpop.f32.mrb[0].mxu0
        %v1816 = vadd.f32 %v1751, %v1815
        %v1817 = vpop.f32.mrb[0].mxu0
        %1818 = vmatprep.mubr.bf16.mxu0 %v836
        %1819 = vmatmul.mubr.bf16.gmra.mrb[0].mxu0 %v835
        %v1820 = vpop.f32.mrb[0].mxu0
        %v1821 = vadd.f32 %v1756, %v1820
        %v1822 = vpop.f32.mrb[0].mxu0
        %v1823 = vpop.f32.mrb[0].mxu0
        %v1824 = vadd.f32 %v1759, %v1823
        %v1825 = vpop.f32.mrb[0].mxu0
        %1826 = vmatprep.mubr.bf16.mxu0 %v852
        %1827 = vmatmul.mubr.bf16.gmra.mrb[0].mxu0 %v851
        %v1828 = vpop.f32.mrb[0].mxu0
        %v1829 = vadd.f32 %v1764, %v1828
        %v1830 = vpop.f32.mrb[0].mxu0
        %v1831 = vpop.f32.mrb[0].mxu0
        %v1832 = vadd.f32 %v1767, %v1831
        %v1833 = vpop.f32.mrb[0].mxu0
        %1834 = vmatprep.mubr.bf16.mxu0 %v868
        %1835 = vmatmul.mubr.bf16.gmra.mrb[0].mxu0 %v867
        %v1836 = vpop.f32.mrb[0].mxu0
        %v1837 = vadd.f32 %v1772, %v1836
        %v1838 = vpop.f32.mrb[0].mxu0
        %v1839 = vpop.f32.mrb[0].mxu0
        %v1840 = vadd.f32 %v1775, %v1839
        %v1841 = vpop.f32.mrb[0].mxu0
        %1842 = vdwg.mxu0
        %1843 = vmatprep.subr.bf16.mxu0 0
        %1844 = vmatpush1.bf16.msra.mxu0 %v1489
        %1845 = vmatprep.subr.bf16.mxu0 0
        %1846 = vmatpush1.bf16.msra.mxu0 %v1490
        %1847 = vmatprep.subr.bf16.mxu0 0
        %1848 = vmatpush1.bf16.msra.mxu0 %v1491
        %1849 = vmatprep.subr.bf16.mxu0 0
        %1850 = vmatpush1.bf16.msra.mxu0 %v1492
        %1851 = vmatprep.subr.bf16.mxu0 0
        %1852 = vmatpush1.bf16.msra.mxu0 %v1493
        %1853 = vmatprep.subr.bf16.mxu0 0
        %1854 = vmatpush1.bf16.msra.mxu0 %v1494
        %1855 = vmatprep.subr.bf16.mxu0 0
        %1856 = vmatpush1.bf16.msra.mxu0 %v1495
        %1857 = vmatprep.subr.bf16.mxu0 0
        %1858 = vmatpush1.bf16.msra.mxu0 %v1496
        %1859 = vmatprep.subr.bf16.mxu0 0
        %1860 = vmatpush1.bf16.msra.mxu0 %v1497
        %1861 = vmatprep.subr.bf16.mxu0 0
        %1862 = vmatpush1.bf16.msra.mxu0 %v1498
        %1863 = vmatprep.subr.bf16.mxu0 0
        %1864 = vmatpush1.bf16.msra.mxu0 %v1499
        %1865 = vmatprep.subr.bf16.mxu0 0
        %1866 = vmatpush1.bf16.msra.mxu0 %v1500
        %1867 = vmatprep.subr.bf16.mxu0 0
        %1868 = vmatpush1.bf16.msra.mxu0 %v1501
        %1869 = vmatprep.subr.bf16.mxu0 0
        %1870 = vmatpush1.bf16.msra.mxu0 %v1502
        %1871 = vmatprep.subr.bf16.mxu0 0
        %1872 = vmatpush1.bf16.msra.mxu0 %v1503
        %1873 = vmatprep.subr.bf16.mxu0 0
        %1874 = vmatpush1.bf16.msra.mxu0 %v1504
        %1875 = vmatprep.mubr.bf16.mxu0 %v822
        %1876 = vmatmul.mubr.bf16.gmra.mrb[0].mxu0 %v821
        %v1877 = vpop.f32.mrb[0].mxu0
        %v1878 = vadd.f32 %v1813, %v1877
        %v1879 = vpop.f32.mrb[0].mxu0
        %v1880 = vpop.f32.mrb[0].mxu0
        %v1881 = vadd.f32 %v1816, %v1880
        %v1882 = vpop.f32.mrb[0].mxu0
        %1883 = vmatprep.mubr.bf16.mxu0 %v838
        %1884 = vmatmul.mubr.bf16.gmra.mrb[0].mxu0 %v837
        %v1885 = vpop.f32.mrb[0].mxu0
        %v1886 = vadd.f32 %v1821, %v1885
        %v1887 = vpop.f32.mrb[0].mxu0
        %v1888 = vpop.f32.mrb[0].mxu0
        %v1889 = vadd.f32 %v1824, %v1888
        %v1890 = vpop.f32.mrb[0].mxu0
        %1891 = vmatprep.mubr.bf16.mxu0 %v854
        %1892 = vmatmul.mubr.bf16.gmra.mrb[0].mxu0 %v853
        %v1893 = vpop.f32.mrb[0].mxu0
        %v1894 = vadd.f32 %v1829, %v1893
        %v1895 = vpop.f32.mrb[0].mxu0
        %v1896 = vpop.f32.mrb[0].mxu0
        %v1897 = vadd.f32 %v1832, %v1896
        %v1898 = vpop.f32.mrb[0].mxu0
        %1899 = vmatprep.mubr.bf16.mxu0 %v870
        %1900 = vmatmul.mubr.bf16.gmra.mrb[0].mxu0 %v869
        %v1901 = vpop.f32.mrb[0].mxu0
        %v1902 = vadd.f32 %v1837, %v1901
        %v1903 = vpop.f32.mrb[0].mxu0
        %v1904 = vpop.f32.mrb[0].mxu0
        %v1905 = vadd.f32 %v1840, %v1904
        %v1906 = vpop.f32.mrb[0].mxu0
        %1907 = vdwg.mxu0
        %1908 = vmatprep.subr.bf16.mxu0 0
        %1909 = vmatpush1.bf16.msra.mxu0 %v1505
        %1910 = vmatprep.subr.bf16.mxu0 0
        %1911 = vmatpush1.bf16.msra.mxu0 %v1506
        %1912 = vmatprep.subr.bf16.mxu0 0
        %1913 = vmatpush1.bf16.msra.mxu0 %v1507
        %1914 = vmatprep.subr.bf16.mxu0 0
        %1915 = vmatpush1.bf16.msra.mxu0 %v1508
        %1916 = vmatprep.subr.bf16.mxu0 0
        %1917 = vmatpush1.bf16.msra.mxu0 %v1509
        %1918 = vmatprep.subr.bf16.mxu0 0
        %1919 = vmatpush1.bf16.msra.mxu0 %v1510
        %1920 = vmatprep.subr.bf16.mxu0 0
        %1921 = vmatpush1.bf16.msra.mxu0 %v1511
        %1922 = vmatprep.subr.bf16.mxu0 0
        %1923 = vmatpush1.bf16.msra.mxu0 %v1512
        %1924 = vmatprep.subr.bf16.mxu0 0
        %1925 = vmatpush1.bf16.msra.mxu0 %v1513
        %1926 = vmatprep.subr.bf16.mxu0 0
        %1927 = vmatpush1.bf16.msra.mxu0 %v1514
        %1928 = vmatprep.subr.bf16.mxu0 0
        %1929 = vmatpush1.bf16.msra.mxu0 %v1515
        %1930 = vmatprep.subr.bf16.mxu0 0
        %1931 = vmatpush1.bf16.msra.mxu0 %v1516
        %1932 = vmatprep.subr.bf16.mxu0 0
        %1933 = vmatpush1.bf16.msra.mxu0 %v1517
        %1934 = vmatprep.subr.bf16.mxu0 0
        %1935 = vmatpush1.bf16.msra.mxu0 %v1518
        %1936 = vmatprep.subr.bf16.mxu0 0
        %1937 = vmatpush1.bf16.msra.mxu0 %v1519
        %1938 = vmatprep.subr.bf16.mxu0 0
        %1939 = vmatpush1.bf16.msra.mxu0 %v1520
        %1940 = vmatprep.mubr.bf16.mxu0 %v824
        %1941 = vmatmul.mubr.bf16.gmra.mrb[0].mxu0 %v823
        %v1942 = vpop.f32.mrb[0].mxu0
        %v1943 = vadd.f32 %v1878, %v1942
        %v1944 = vpop.f32.mrb[0].mxu0
        %v1945 = vpop.f32.mrb[0].mxu0
        %v1946 = vadd.f32 %v1881, %v1945
        %v1947 = vpop.f32.mrb[0].mxu0
        %1948 = vmatprep.mubr.bf16.mxu0 %v840
        %1949 = vmatmul.mubr.bf16.gmra.mrb[0].mxu0 %v839
        %v1950 = vpop.f32.mrb[0].mxu0
        %v1951 = vadd.f32 %v1886, %v1950
        %v1952 = vpop.f32.mrb[0].mxu0
        %v1953 = vpop.f32.mrb[0].mxu0
        %v1954 = vadd.f32 %v1889, %v1953
        %v1955 = vpop.f32.mrb[0].mxu0
        %1956 = vmatprep.mubr.bf16.mxu0 %v856
        %1957 = vmatmul.mubr.bf16.gmra.mrb[0].mxu0 %v855
        %v1958 = vpop.f32.mrb[0].mxu0
        %v1959 = vadd.f32 %v1894, %v1958
        %v1960 = vpop.f32.mrb[0].mxu0
        %v1961 = vpop.f32.mrb[0].mxu0
        %v1962 = vadd.f32 %v1897, %v1961
        %v1963 = vpop.f32.mrb[0].mxu0
        %1964 = vmatprep.mubr.bf16.mxu0 %v872
        %1965 = vmatmul.mubr.bf16.gmra.mrb[0].mxu0 %v871
        %v1966 = vpop.f32.mrb[0].mxu0
        %v1967 = vadd.f32 %v1902, %v1966
        %v1968 = vpop.f32.mrb[0].mxu0
        %v1969 = vpop.f32.mrb[0].mxu0
        %v1970 = vadd.f32 %v1905, %v1969
        %v1971 = vpop.f32.mrb[0].mxu0
        %1972 = vdwg.mxu0
        %1973 = vmatprep.subr.bf16.mxu0 0
        %1974 = vmatpush1.bf16.msra.mxu0 %v1521
        %1975 = vmatprep.subr.bf16.mxu0 0
        %1976 = vmatpush1.bf16.msra.mxu0 %v1522
        %1977 = vmatprep.subr.bf16.mxu0 0
        %1978 = vmatpush1.bf16.msra.mxu0 %v1523
        %1979 = vmatprep.subr.bf16.mxu0 0
        %1980 = vmatpush1.bf16.msra.mxu0 %v1524
        %1981 = vmatprep.subr.bf16.mxu0 0
        %1982 = vmatpush1.bf16.msra.mxu0 %v1525
        %1983 = vmatprep.subr.bf16.mxu0 0
        %1984 = vmatpush1.bf16.msra.mxu0 %v1526
        %1985 = vmatprep.subr.bf16.mxu0 0
        %1986 = vmatpush1.bf16.msra.mxu0 %v1527
        %1987 = vmatprep.subr.bf16.mxu0 0
        %1988 = vmatpush1.bf16.msra.mxu0 %v1528
        %1989 = vmatprep.subr.bf16.mxu0 0
        %1990 = vmatpush1.bf16.msra.mxu0 %v1529
        %1991 = vmatprep.subr.bf16.mxu0 0
        %1992 = vmatpush1.bf16.msra.mxu0 %v1530
        %1993 = vmatprep.subr.bf16.mxu0 0
        %1994 = vmatpush1.bf16.msra.mxu0 %v1531
        %1995 = vmatprep.subr.bf16.mxu0 0
        %1996 = vmatpush1.bf16.msra.mxu0 %v1532
        %1997 = vmatprep.subr.bf16.mxu0 0
        %1998 = vmatpush1.bf16.msra.mxu0 %v1533
        %1999 = vmatprep.subr.bf16.mxu0 0
        %2000 = vmatpush1.bf16.msra.mxu0 %v1534
        %2001 = vmatprep.subr.bf16.mxu0 0
        %2002 = vmatpush1.bf16.msra.mxu0 %v1535
        %2003 = vmatprep.subr.bf16.mxu0 0
        %2004 = vmatpush1.bf16.msra.mxu0 %v1536
        %2005 = vmatprep.mubr.bf16.mxu0 %v826
        %2006 = vmatmul.mubr.bf16.gmra.mrb[0].mxu0 %v825
        %v2007 = vpop.f32.mrb[0].mxu0
        %v2008 = vadd.f32 %v1943, %v2007
        %v2009 = vpop.f32.mrb[0].mxu0
        %v2010 = vpop.f32.mrb[0].mxu0
        %v2011 = vadd.f32 %v1946, %v2010
        %v2012 = vpop.f32.mrb[0].mxu0
        %2013 = vmatprep.mubr.bf16.mxu0 %v842
        %2014 = vmatmul.mubr.bf16.gmra.mrb[0].mxu0 %v841
        %v2015 = vpop.f32.mrb[0].mxu0
        %v2016 = vadd.f32 %v1951, %v2015
        %v2017 = vpop.f32.mrb[0].mxu0
        %v2018 = vpop.f32.mrb[0].mxu0
        %v2019 = vadd.f32 %v1954, %v2018
        %v2020 = vpop.f32.mrb[0].mxu0
        %2021 = vmatprep.mubr.bf16.mxu0 %v858
        %2022 = vmatmul.mubr.bf16.gmra.mrb[0].mxu0 %v857
        %v2023 = vpop.f32.mrb[0].mxu0
        %v2024 = vadd.f32 %v1959, %v2023
        %v2025 = vpop.f32.mrb[0].mxu0
        %v2026 = vpop.f32.mrb[0].mxu0
        %v2027 = vadd.f32 %v1962, %v2026
        %v2028 = vpop.f32.mrb[0].mxu0
        %2029 = vmatprep.mubr.bf16.mxu0 %v874
        %2030 = vmatmul.mubr.bf16.gmra.mrb[0].mxu0 %v873
        %v2031 = vpop.f32.mrb[0].mxu0
        %v2032 = vadd.f32 %v1967, %v2031
        %v2033 = vpop.f32.mrb[0].mxu0
        %v2034 = vpop.f32.mrb[0].mxu0
        %v2035 = vadd.f32 %v1970, %v2034
        %v2036 = vpop.f32.mrb[0].mxu0
        %2037 = vdwg.mxu0
        %2038 = vmatprep.subr.bf16.mxu0 0
        %2039 = vmatpush1.bf16.msra.mxu0 %v1537
        %2040 = vmatprep.subr.bf16.mxu0 0
        %2041 = vmatpush1.bf16.msra.mxu0 %v1538
        %2042 = vmatprep.subr.bf16.mxu0 0
        %2043 = vmatpush1.bf16.msra.mxu0 %v1539
        %2044 = vmatprep.subr.bf16.mxu0 0
        %2045 = vmatpush1.bf16.msra.mxu0 %v1540
        %2046 = vmatprep.subr.bf16.mxu0 0
        %2047 = vmatpush1.bf16.msra.mxu0 %v1541
        %2048 = vmatprep.subr.bf16.mxu0 0
        %2049 = vmatpush1.bf16.msra.mxu0 %v1542
        %2050 = vmatprep.subr.bf16.mxu0 0
        %2051 = vmatpush1.bf16.msra.mxu0 %v1543
        %2052 = vmatprep.subr.bf16.mxu0 0
        %2053 = vmatpush1.bf16.msra.mxu0 %v1544
        %2054 = vmatprep.subr.bf16.mxu0 0
        %2055 = vmatpush1.bf16.msra.mxu0 %v1545
        %2056 = vmatprep.subr.bf16.mxu0 0
        %2057 = vmatpush1.bf16.msra.mxu0 %v1546
        %2058 = vmatprep.subr.bf16.mxu0 0
        %2059 = vmatpush1.bf16.msra.mxu0 %v1547
        %2060 = vmatprep.subr.bf16.mxu0 0
        %2061 = vmatpush1.bf16.msra.mxu0 %v1548
        %2062 = vmatprep.subr.bf16.mxu0 0
        %2063 = vmatpush1.bf16.msra.mxu0 %v1549
        %2064 = vmatprep.subr.bf16.mxu0 0
        %2065 = vmatpush1.bf16.msra.mxu0 %v1550
        %2066 = vmatprep.subr.bf16.mxu0 0
        %2067 = vmatpush1.bf16.msra.mxu0 %v1551
        %2068 = vmatprep.subr.bf16.mxu0 0
        %2069 = vmatpush1.bf16.msra.mxu0 %v1552
        %2070 = vmatprep.mubr.bf16.mxu0 %v828
        %2071 = vmatmul.mubr.bf16.gmra.mrb[0].mxu0 %v827
        %v2072 = vpop.f32.mrb[0].mxu0
        %v2073 = vadd.f32 %v2008, %v2072
        %v2074 = vpop.f32.mrb[0].mxu0
        %v2075 = vpop.f32.mrb[0].mxu0
        %v2076 = vadd.f32 %v2011, %v2075
        %v2077 = vpop.f32.mrb[0].mxu0
        %2078 = vmatprep.mubr.bf16.mxu0 %v844
        %2079 = vmatmul.mubr.bf16.gmra.mrb[0].mxu0 %v843
        %v2080 = vpop.f32.mrb[0].mxu0
        %v2081 = vadd.f32 %v2016, %v2080
        %v2082 = vpop.f32.mrb[0].mxu0
        %v2083 = vpop.f32.mrb[0].mxu0
        %v2084 = vadd.f32 %v2019, %v2083
        %v2085 = vpop.f32.mrb[0].mxu0
        %2086 = vmatprep.mubr.bf16.mxu0 %v860
        %2087 = vmatmul.mubr.bf16.gmra.mrb[0].mxu0 %v859
        %v2088 = vpop.f32.mrb[0].mxu0
        %v2089 = vadd.f32 %v2024, %v2088
        %v2090 = vpop.f32.mrb[0].mxu0
        %v2091 = vpop.f32.mrb[0].mxu0
        %v2092 = vadd.f32 %v2027, %v2091
        %v2093 = vpop.f32.mrb[0].mxu0
        %2094 = vmatprep.mubr.bf16.mxu0 %v876
        %2095 = vmatmul.mubr.bf16.gmra.mrb[0].mxu0 %v875
        %v2096 = vpop.f32.mrb[0].mxu0
        %v2097 = vadd.f32 %v2032, %v2096
        %v2098 = vpop.f32.mrb[0].mxu0
        %v2099 = vpop.f32.mrb[0].mxu0
        %v2100 = vadd.f32 %v2035, %v2099
        %v2101 = vpop.f32.mrb[0].mxu0
        %2102 = vdwg.mxu0
        %2103 = vmatprep.subr.bf16.mxu0 0
        %2104 = vmatpush1.bf16.msra.mxu0 %v1553
        %2105 = vmatprep.subr.bf16.mxu0 0
        %2106 = vmatpush1.bf16.msra.mxu0 %v1554
        %2107 = vmatprep.subr.bf16.mxu0 0
        %2108 = vmatpush1.bf16.msra.mxu0 %v1555
        %2109 = vmatprep.subr.bf16.mxu0 0
        %2110 = vmatpush1.bf16.msra.mxu0 %v1556
        %2111 = vmatprep.subr.bf16.mxu0 0
        %2112 = vmatpush1.bf16.msra.mxu0 %v1557
        %2113 = vmatprep.subr.bf16.mxu0 0
        %2114 = vmatpush1.bf16.msra.mxu0 %v1558
        %2115 = vmatprep.subr.bf16.mxu0 0
        %2116 = vmatpush1.bf16.msra.mxu0 %v1559
        %2117 = vmatprep.subr.bf16.mxu0 0
        %2118 = vmatpush1.bf16.msra.mxu0 %v1560
        %2119 = vmatprep.subr.bf16.mxu0 0
        %2120 = vmatpush1.bf16.msra.mxu0 %v1561
        %2121 = vmatprep.subr.bf16.mxu0 0
        %2122 = vmatpush1.bf16.msra.mxu0 %v1562
        %2123 = vmatprep.subr.bf16.mxu0 0
        %2124 = vmatpush1.bf16.msra.mxu0 %v1563
        %2125 = vmatprep.subr.bf16.mxu0 0
        %2126 = vmatpush1.bf16.msra.mxu0 %v1564
        %2127 = vmatprep.subr.bf16.mxu0 0
        %2128 = vmatpush1.bf16.msra.mxu0 %v1565
        %2129 = vmatprep.subr.bf16.mxu0 0
        %2130 = vmatpush1.bf16.msra.mxu0 %v1566
        %2131 = vmatprep.subr.bf16.mxu0 0
        %2132 = vmatpush1.bf16.msra.mxu0 %v1567
        %2133 = vmatprep.subr.bf16.mxu0 0
        %2134 = vmatpush1.bf16.msra.mxu0 %v1568
        %2135 = vmatprep.mubr.bf16.mxu0 %v830
        %2136 = vmatmul.mubr.bf16.gmra.mrb[0].mxu0 %v829
        %v2137 = vpop.f32.mrb[0].mxu0
        %v2138 = vadd.f32 %v2073, %v2137
        %v2139 = vpop.f32.mrb[0].mxu0
        %v2140 = vpop.f32.mrb[0].mxu0
        %v2141 = vadd.f32 %v2076, %v2140
        %v2142 = vpop.f32.mrb[0].mxu0
        %2143 = vmatprep.mubr.bf16.mxu0 %v846
        %2144 = vmatmul.mubr.bf16.gmra.mrb[0].mxu0 %v845
        %v2145 = vpop.f32.mrb[0].mxu0
        %v2146 = vadd.f32 %v2081, %v2145
        %v2147 = vpop.f32.mrb[0].mxu0
        %v2148 = vpop.f32.mrb[0].mxu0
        %v2149 = vadd.f32 %v2084, %v2148
        %v2150 = vpop.f32.mrb[0].mxu0
        %2151 = vmatprep.mubr.bf16.mxu0 %v862
        %2152 = vmatmul.mubr.bf16.gmra.mrb[0].mxu0 %v861
        %v2153 = vpop.f32.mrb[0].mxu0
        %v2154 = vadd.f32 %v2089, %v2153
        %v2155 = vpop.f32.mrb[0].mxu0
        %v2156 = vpop.f32.mrb[0].mxu0
        %v2157 = vadd.f32 %v2092, %v2156
        %v2158 = vpop.f32.mrb[0].mxu0
        %2159 = vmatprep.mubr.bf16.mxu0 %v878
        %2160 = vmatmul.mubr.bf16.gmra.mrb[0].mxu0 %v877
        %v2161 = vpop.f32.mrb[0].mxu0
        %v2162 = vadd.f32 %v2097, %v2161
        %v2163 = vpop.f32.mrb[0].mxu0
        %v2164 = vpop.f32.mrb[0].mxu0
        %v2165 = vadd.f32 %v2100, %v2164
        %v2166 = vpop.f32.mrb[0].mxu0
        %2167 = vdwg.mxu0
        %2168 = vmatprep.subr.bf16.mxu0 0
        %2169 = vmatpush1.bf16.msra.mxu0 %v1569
        %2170 = vmatprep.subr.bf16.mxu0 0
        %2171 = vmatpush1.bf16.msra.mxu0 %v1570
        %2172 = vmatprep.subr.bf16.mxu0 0
        %2173 = vmatpush1.bf16.msra.mxu0 %v1571
        %2174 = vmatprep.subr.bf16.mxu0 0
        %2175 = vmatpush1.bf16.msra.mxu0 %v1572
        %2176 = vmatprep.subr.bf16.mxu0 0
        %2177 = vmatpush1.bf16.msra.mxu0 %v1573
        %2178 = vmatprep.subr.bf16.mxu0 0
        %2179 = vmatpush1.bf16.msra.mxu0 %v1574
        %2180 = vmatprep.subr.bf16.mxu0 0
        %2181 = vmatpush1.bf16.msra.mxu0 %v1575
        %2182 = vmatprep.subr.bf16.mxu0 0
        %2183 = vmatpush1.bf16.msra.mxu0 %v1576
        %2184 = vmatprep.subr.bf16.mxu0 0
        %2185 = vmatpush1.bf16.msra.mxu0 %v1577
        %2186 = vmatprep.subr.bf16.mxu0 0
        %2187 = vmatpush1.bf16.msra.mxu0 %v1578
        %2188 = vmatprep.subr.bf16.mxu0 0
        %2189 = vmatpush1.bf16.msra.mxu0 %v1579
        %2190 = vmatprep.subr.bf16.mxu0 0
        %2191 = vmatpush1.bf16.msra.mxu0 %v1580
        %2192 = vmatprep.subr.bf16.mxu0 0
        %2193 = vmatpush1.bf16.msra.mxu0 %v1581
        %2194 = vmatprep.subr.bf16.mxu0 0
        %2195 = vmatpush1.bf16.msra.mxu0 %v1582
        %2196 = vmatprep.subr.bf16.mxu0 0
        %2197 = vmatpush1.bf16.msra.mxu0 %v1583
        %2198 = vmatprep.subr.bf16.mxu0 0
        %2199 = vmatpush1.bf16.msra.mxu0 %v1584
        %2200 = vmatprep.mubr.bf16.mxu0 %v832
        %2201 = vmatmul.mubr.bf16.gmra.mrb[0].mxu0 %v831
        %v2202 = vpop.f32.mrb[0].mxu0
        %v2203 = vadd.f32 %v2138, %v2202
        %v2204 = vpop.f32.mrb[0].mxu0
        %v2205 = vpop.f32.mrb[0].mxu0
        %v2206 = vadd.f32 %v2141, %v2205
        %v2207 = vpop.f32.mrb[0].mxu0
        %2208 = vmatprep.mubr.bf16.mxu0 %v848
        %2209 = vmatmul.mubr.bf16.gmra.mrb[0].mxu0 %v847
        %v2210 = vpop.f32.mrb[0].mxu0
        %v2211 = vadd.f32 %v2146, %v2210
        %v2212 = vpop.f32.mrb[0].mxu0
        %v2213 = vpop.f32.mrb[0].mxu0
        %v2214 = vadd.f32 %v2149, %v2213
        %v2215 = vpop.f32.mrb[0].mxu0
        %2216 = vmatprep.mubr.bf16.mxu0 %v864
        %2217 = vmatmul.mubr.bf16.gmra.mrb[0].mxu0 %v863
        %v2218 = vpop.f32.mrb[0].mxu0
        %v2219 = vadd.f32 %v2154, %v2218
        %v2220 = vpop.f32.mrb[0].mxu0
        %v2221 = vpop.f32.mrb[0].mxu0
        %v2222 = vadd.f32 %v2157, %v2221
        %v2223 = vpop.f32.mrb[0].mxu0
        %2224 = vmatprep.mubr.bf16.mxu0 %v880
        %2225 = vmatmul.mubr.bf16.gmra.mrb[0].mxu0 %v879
        %v2226 = vpop.f32.mrb[0].mxu0
        %v2227 = vadd.f32 %v2162, %v2226
        %v2228 = vpop.f32.mrb[0].mxu0
        %v2229 = vpop.f32.mrb[0].mxu0
        %v2230 = vadd.f32 %v2165, %v2229
        %v2231 = vpop.f32.mrb[0].mxu0
        %2232 = vdwg.mxu0
        %v2233 = vadd.f32 %v297, %v2203
        %v2234 = vadd.f32 %v298, %v2206
        %v2235 = vadd.f32 %v299, %v2211
        %v2236 = vadd.f32 %v300, %v2214
        %v2237 = vadd.f32 %v301, %v2219
        %v2238 = vadd.f32 %v302, %v2222
        %v2239 = vadd.f32 %v303, %v2227
        %v2240 = vadd.f32 %v304, %v2230
        %2241 = vst [vmem:[#allocation2] sm:$0xff] %v2233
        %2242 = vst [vmem:[#allocation2 + $0x8] sm:$0xff] %v2234
        %2243 = vst [vmem:[#allocation2 + $0x10] sm:$0xff] %v2235
        %2244 = vst [vmem:[#allocation2 + $0x18] sm:$0xff] %v2236
        %2245 = vst [vmem:[#allocation2 + $0x20] sm:$0xff] %v2237
        %2246 = vst [vmem:[#allocation2 + $0x28] sm:$0xff] %v2238
        %2247 = vst [vmem:[#allocation2 + $0x30] sm:$0xff] %v2239
        %2248 = vst [vmem:[#allocation2 + $0x38] sm:$0xff] %v2240
        // Predicated region
        $region37: #{forward.4} parent=31 // pred_check
          %p2249 = pneg %p285
        $region38: #{forward.4} parent=31 // pred_check_branch
          %2251 = sbr.rel (%p2249) target = $region40
        $region39: #{forward.4} parent=31 // pred_region
          %v2252 = vld [vmem:[#allocation2] sm:$0xff]
          %v2253 = vld [vmem:[#allocation2 + $0x8] sm:$0xff]
          %v2254 = vld [vmem:[#allocation2 + $0x10] sm:$0xff]
          %v2255 = vld [vmem:[#allocation2 + $0x18] sm:$0xff]
          %v2256 = vld [vmem:[#allocation2 + $0x20] sm:$0xff]
          %v2257 = vld [vmem:[#allocation2 + $0x28] sm:$0xff]
          %v2258 = vld [vmem:[#allocation2 + $0x30] sm:$0xff]
          %v2259 = vld [vmem:[#allocation2 + $0x38] sm:$0xff]
          %v2260 = vld [vmem:[%s278] sm:$0x1]
          %v2262 = vlaneseq
          %v2263 = vshrl.u32 %v2262, 7
          %v2264 = vsub.s32 0, %v2263
          %v2265 = vrot.slane %v2260, %v2264
          %v2267 = vadd.f32 %v2252, %v2265
          %v2268 = vadd.f32 %v2253, %v2265
          %v2269 = vadd.f32 %v2254, %v2265
          %v2270 = vadd.f32 %v2255, %v2265
          %v2271 = vadd.f32 %v2256, %v2265
          %v2272 = vadd.f32 %v2257, %v2265
          %v2273 = vadd.f32 %v2258, %v2265
          %v2274 = vadd.f32 %v2259, %v2265
          %vm2275 = vcmp.ge.f32.partialorder %v2267, 0.0
          %vm2276 = vcmp.ge.f32.partialorder %v2268, 0.0
          %vm2277 = vcmp.ge.f32.partialorder %v2269, 0.0
          %vm2278 = vcmp.ge.f32.partialorder %v2270, 0.0
          %vm2279 = vcmp.ge.f32.partialorder %v2271, 0.0
          %vm2280 = vcmp.ge.f32.partialorder %v2272, 0.0
          %vm2281 = vcmp.ge.f32.partialorder %v2273, 0.0
          %vm2282 = vcmp.ge.f32.partialorder %v2274, 0.0
          %v2283 = vmul.f32 %v2267, 0.2
          %v2284 = vmul.f32 %v2268, 0.2
          %v2285 = vmul.f32 %v2269, 0.2
          %v2286 = vmul.f32 %v2270, 0.2
          %v2287 = vmul.f32 %v2271, 0.2
          %v2288 = vmul.f32 %v2272, 0.2
          %v2289 = vmul.f32 %v2273, 0.2
          %v2290 = vmul.f32 %v2274, 0.2
          %v2291 = vsel %vm2275, %v2267, %v2283
          %v2292 = vsel %vm2276, %v2268, %v2284
          %v2293 = vsel %vm2277, %v2269, %v2285
          %v2294 = vsel %vm2278, %v2270, %v2286
          %v2295 = vsel %vm2279, %v2271, %v2287
          %v2296 = vsel %vm2280, %v2272, %v2288
          %v2297 = vsel %vm2281, %v2273, %v2289
          %v2298 = vsel %vm2282, %v2274, %v2290
          %v2299 = vpack.c.bf16 %v2292, %v2291
          %v2300 = vpack.c.bf16 %v2294, %v2293
          %v2301 = vpack.c.bf16 %v2296, %v2295
          %v2302 = vpack.c.bf16 %v2298, %v2297
          %v2307 = vunpack.c.l.b16 %v2299
          %v2308 = vunpack.c.h.b16 %v2299
          %v2309 = vunpack.c.l.b16 %v2300
          %v2310 = vunpack.c.h.b16 %v2300
          %v2311 = vunpack.c.l.b16 %v2301
          %v2312 = vunpack.c.h.b16 %v2301
          %v2313 = vunpack.c.l.b16 %v2302
          %v2314 = vunpack.c.h.b16 %v2302
          %v2315 = vpack.c.b16 %v2307, %v2307
          %v2316 = vpack.c.b16 %v2308, %v2308
          %v2317 = vpack.c.b16 %v2309, %v2309
          %v2318 = vpack.c.b16 %v2310, %v2310
          %v2319 = vpack.c.b16 %v2311, %v2311
          %v2320 = vpack.c.b16 %v2312, %v2312
          %v2321 = vpack.c.b16 %v2313, %v2313
          %v2322 = vpack.c.b16 %v2314, %v2314
          %2331 = vst [vmem:[%s244] sm:$0xf] %v2315
          %2332 = vst [vmem:[%s244 + $0x4] sm:$0xf] %v2316
          %2333 = vst [vmem:[%s244 + $0x8] sm:$0xf] %v2317
          %2334 = vst [vmem:[%s244 + $0xc] sm:$0xf] %v2318
          %2335 = vst [vmem:[%s244 + $0x10] sm:$0xf] %v2319
          %2336 = vst [vmem:[%s244 + $0x14] sm:$0xf] %v2320
          %2337 = vst [vmem:[%s244 + $0x18] sm:$0xf] %v2321
          %2338 = vst [vmem:[%s244 + $0x1c] sm:$0xf] %v2322
        $region40: #{forward.4} parent=31 // pred_fallthru
          _
        %s2339 = sand.u32 %s125, 1
        %s2340 = sand.u32 %s125, 1
        %s2341 = smul.addr %s2340, 32
        %s2342 = scalar_lea.vmem [#allocation3], %s2341
        // Predicated region
        $region41: #{forward.4} parent=31 // pred_check
          %p2343 = pneg %p135
        $region42: #{forward.4} parent=31 // pred_check_branch
          %2345 = sbr.rel (%p2343) target = $region44
        $region43: #{forward.4} parent=31 // pred_region
          %s2346 = smul.u32 8, %s19
          %s2347 = ssub.s32 13, %s2346
          %p2348 = scmp.lt.s32.totalorder %s2347, 8
          %s2349 = scalar_select %p2348, %s2347, 8
          %s2350 = smul.u32 64, %s2349
          %p2351 = scmp.ne.s32.totalorder 0, %s2350
          %s2352 = sadd.s32 %s20, %s2346
          %s2353 = smul.addr %s2352, 4
          %s2354 = scalar_lea.vmem %s3, %s2353
          // Predicated region
          $region45: #{forward.4} parent=43 // pred_check
            %p2355 = pneg %p2351
          $region46: #{forward.4} parent=43 // pred_check_branch
            %2357 = sbr.rel (%p2355) target = $region48
          $region47: #{forward.4} parent=43 // pred_region
            // Predicated region
            $region49: #{forward.4} parent=47 // pred_check
              _
            $region50: #{forward.4} parent=47 // pred_check_branch
              %2359 = sbr.rel target = $region52
            $region51: #{forward.4} parent=47 // pred_region
              // Predicated region
              $region71: #{forward.4} parent=51 // pred_check
                _
              $region72: #{forward.4} parent=51 // pred_check_branch
                %2422 = sbr.rel (0) target = $region74
              $region73: #{forward.4} parent=51 // pred_region
                %s2424 = sshrl.u32 %s2349, 3
                // While loop
                $region75: #{forward.4} parent=73 // loop_pre_header
                  _
                $region76: #{forward.4} parent=73 // loop_header
                  %s2426 = sphi 0, %s2428
                  %p2427 = scmp.ge.s32.totalorder %s2426, %s2424
                  %s2431 = sphi 0, %s2452
                  %s2432 = sphi %s2342, %s2455
                  %s2433 = sphi %s2354, %s2456
                $region77: #{forward.4} parent=73 // loop_header_branch
                  %2430 = sbr.rel (%p2427) target = $region81
                $region78: #{forward.4} parent=73 // loop_body
                  %v2434 = vld [vmem:[%s2432] sm:$0xf]
                  %2435 = vst [vmem:[%s2433] sm:$0xf] %v2434
                  %v2436 = vld [vmem:[%s2432 + $0x4] sm:$0xf]
                  %2437 = vst [vmem:[%s2433 + $0x4] sm:$0xf] %v2436
                  %v2438 = vld [vmem:[%s2432 + $0x8] sm:$0xf]
                  %2439 = vst [vmem:[%s2433 + $0x8] sm:$0xf] %v2438
                  %v2440 = vld [vmem:[%s2432 + $0xc] sm:$0xf]
                  %2441 = vst [vmem:[%s2433 + $0xc] sm:$0xf] %v2440
                  %v2442 = vld [vmem:[%s2432 + $0x10] sm:$0xf]
                  %2443 = vst [vmem:[%s2433 + $0x10] sm:$0xf] %v2442
                  %v2444 = vld [vmem:[%s2432 + $0x14] sm:$0xf]
                  %2445 = vst [vmem:[%s2433 + $0x14] sm:$0xf] %v2444
                  %v2446 = vld [vmem:[%s2432 + $0x18] sm:$0xf]
                  %2447 = vst [vmem:[%s2433 + $0x18] sm:$0xf] %v2446
                  %v2448 = vld [vmem:[%s2432 + $0x1c] sm:$0xf]
                  %2449 = vst [vmem:[%s2433 + $0x1c] sm:$0xf] %v2448
                  %s2450 = sadd.s32 1, %s2431
                  %p2451 = scmp.ge.s32.totalorder %s2450, %s2424
                  %s2452 = scalar_select %p2451, 0, %s2450
                  %s2453 = smul.u32 %s2452, 32
                  %s2454 = smul.u32 %s2452, 32
                  %s2455 = scalar_lea.vmem %s2342, %s2453 [#allocation3]
                  %s2456 = scalar_lea.vmem %s2354, %s2454
                $region79: #{forward.4} parent=73 // loop_footer
                  %s2428 = sadd.s32 %s2426, 1
                $region80: #{forward.4} parent=73 // loop_footer_branch
                  %2425 = sbr.rel target = $region76
                $region81: #{forward.4} parent=73 // loop_exit
                  _
                %s2457 = sshrl.u32 %s2349, 3
                %s2458 = sand.u32 %s2349, 7
                %s2459 = smul.u32 %s2457, 8
                %s2460 = smul.u32 4, %s2459
                %s2461 = scalar_lea.vmem %s2342, %s2460 [#allocation3]
                %s2462 = smul.u32 4, %s2459
                %s2463 = scalar_lea.vmem %s2354, %s2462
                // While loop
                $region82: #{forward.4} parent=73 // loop_pre_header
                  _
                $region83: #{forward.4} parent=73 // loop_header
                  %s2465 = sphi 0, %s2467
                  %p2466 = scmp.ge.s32.totalorder %s2465, %s2458
                  %s2470 = sphi 0, %s2477
                  %s2471 = sphi %s2461, %s2480
                  %s2472 = sphi %s2463, %s2481
                $region84: #{forward.4} parent=73 // loop_header_branch
                  %2469 = sbr.rel (%p2466) target = $region88
                $region85: #{forward.4} parent=73 // loop_body
                  %v2473 = vld [vmem:[%s2471] sm:$0xf]
                  %2474 = vst [vmem:[%s2472] sm:$0xf] %v2473
                  %s2475 = sadd.s32 1, %s2470
                  %p2476 = scmp.ge.s32.totalorder %s2475, %s2458
                  %s2477 = scalar_select %p2476, 0, %s2475
                  %s2478 = smul.u32 %s2477, 4
                  %s2479 = smul.u32 %s2477, 4
                  %s2480 = scalar_lea.vmem %s2461, %s2478 [#allocation3]
                  %s2481 = scalar_lea.vmem %s2463, %s2479
                $region86: #{forward.4} parent=73 // loop_footer
                  %s2467 = sadd.s32 %s2465, 1
                $region87: #{forward.4} parent=73 // loop_footer_branch
                  %2464 = sbr.rel target = $region83
                $region88: #{forward.4} parent=73 // loop_exit
                  _
              $region74: #{forward.4} parent=51 // pred_fallthru
                _
            $region52: #{forward.4} parent=47 // pred_fallthru
              _
            // Predicated region
            $region53: #{forward.4} parent=47 // pred_check
              _
            $region54: #{forward.4} parent=47 // pred_check_branch
              %2361 = sbr.rel (0) target = $region56
            $region55: #{forward.4} parent=47 // pred_region
              %s2363 = sshrl.u32 %s2349, 3
              // While loop
              $region57: #{forward.4} parent=55 // loop_pre_header
                _
              $region58: #{forward.4} parent=55 // loop_header
                %s2365 = sphi 0, %s2367
                %p2366 = scmp.ge.s32.totalorder %s2365, %s2363
                %s2370 = sphi 0, %s2391
                %s2371 = sphi %s2342, %s2394
                %s2372 = sphi %s2354, %s2395
              $region59: #{forward.4} parent=55 // loop_header_branch
                %2369 = sbr.rel (%p2366) target = $region63
              $region60: #{forward.4} parent=55 // loop_body
                %v2373 = vld [vmem:[%s2371] sm:$0xf]
                %2374 = vst [vmem:[%s2372] sm:$0xf] %v2373
                %v2375 = vld [vmem:[%s2371 + $0x4] sm:$0xf]
                %2376 = vst [vmem:[%s2372 + $0x4] sm:$0xf] %v2375
                %v2377 = vld [vmem:[%s2371 + $0x8] sm:$0xf]
                %2378 = vst [vmem:[%s2372 + $0x8] sm:$0xf] %v2377
                %v2379 = vld [vmem:[%s2371 + $0xc] sm:$0xf]
                %2380 = vst [vmem:[%s2372 + $0xc] sm:$0xf] %v2379
                %v2381 = vld [vmem:[%s2371 + $0x10] sm:$0xf]
                %2382 = vst [vmem:[%s2372 + $0x10] sm:$0xf] %v2381
                %v2383 = vld [vmem:[%s2371 + $0x14] sm:$0xf]
                %2384 = vst [vmem:[%s2372 + $0x14] sm:$0xf] %v2383
                %v2385 = vld [vmem:[%s2371 + $0x18] sm:$0xf]
                %2386 = vst [vmem:[%s2372 + $0x18] sm:$0xf] %v2385
                %v2387 = vld [vmem:[%s2371 + $0x1c] sm:$0xf]
                %2388 = vst [vmem:[%s2372 + $0x1c] sm:$0xf] %v2387
                %s2389 = sadd.s32 1, %s2370
                %p2390 = scmp.ge.s32.totalorder %s2389, %s2363
                %s2391 = scalar_select %p2390, 0, %s2389
                %s2392 = smul.u32 %s2391, 32
                %s2393 = smul.u32 %s2391, 32
                %s2394 = scalar_lea.vmem %s2342, %s2392 [#allocation3]
                %s2395 = scalar_lea.vmem %s2354, %s2393
              $region61: #{forward.4} parent=55 // loop_footer
                %s2367 = sadd.s32 %s2365, 1
              $region62: #{forward.4} parent=55 // loop_footer_branch
                %2364 = sbr.rel target = $region58
              $region63: #{forward.4} parent=55 // loop_exit
                _
              %s2396 = sshrl.u32 %s2349, 3
              %s2397 = sand.u32 %s2349, 7
              %s2398 = smul.u32 %s2396, 8
              %s2399 = smul.u32 4, %s2398
              %s2400 = scalar_lea.vmem %s2342, %s2399 [#allocation3]
              %s2401 = smul.u32 4, %s2398
              %s2402 = scalar_lea.vmem %s2354, %s2401
              // While loop
              $region64: #{forward.4} parent=55 // loop_pre_header
                _
              $region65: #{forward.4} parent=55 // loop_header
                %s2404 = sphi 0, %s2406
                %p2405 = scmp.ge.s32.totalorder %s2404, %s2397
                %s2409 = sphi 0, %s2416
                %s2410 = sphi %s2400, %s2419
                %s2411 = sphi %s2402, %s2420
              $region66: #{forward.4} parent=55 // loop_header_branch
                %2408 = sbr.rel (%p2405) target = $region70
              $region67: #{forward.4} parent=55 // loop_body
                %v2412 = vld [vmem:[%s2410] sm:$0xf]
                %2413 = vst [vmem:[%s2411] sm:$0xf] %v2412
                %s2414 = sadd.s32 1, %s2409
                %p2415 = scmp.ge.s32.totalorder %s2414, %s2397
                %s2416 = scalar_select %p2415, 0, %s2414
                %s2417 = smul.u32 %s2416, 4
                %s2418 = smul.u32 %s2416, 4
                %s2419 = scalar_lea.vmem %s2400, %s2417 [#allocation3]
                %s2420 = scalar_lea.vmem %s2402, %s2418
              $region68: #{forward.4} parent=55 // loop_footer
                %s2406 = sadd.s32 %s2404, 1
              $region69: #{forward.4} parent=55 // loop_footer_branch
                %2403 = sbr.rel target = $region65
              $region70: #{forward.4} parent=55 // loop_exit
                _
            $region56: #{forward.4} parent=47 // pred_fallthru
              _
          $region48: #{forward.4} parent=43 // pred_fallthru
            _
          %2482 = vnop
        $region44: #{forward.4} parent=31 // pred_fallthru
          _
      $region32: #{forward.4} parent=5 // pred_fallthru
        _
      %p2483 = scmp.le.s32.totalorder 2, %s9
      // Predicated region
      $region89: #{forward.4} parent=5 // pred_check
        %p2484 = pneg %p2483
      $region90: #{forward.4} parent=5 // pred_check_branch
        %2486 = sbr.rel (%p2484) target = $region92
      $region91: #{forward.4} parent=5 // pred_region
        %s2487 = ssub.s32 %s9, 2
        // Predicated region
        $region93: #{forward.4} parent=91 // pred_check
          %p2488 = pneg %p141
        $region94: #{forward.4} parent=91 // pred_check_branch
          %2490 = sbr.rel (%p2488) target = $region96
        $region95: #{forward.4} parent=91 // pred_region
          %s2491 = sand.u32 %s126, 1
          %s2492 = sand.u32 %s126, 1
          %s2493 = smul.addr %s2492, 32
          %s2494 = scalar_lea.vmem [#allocation3], %s2493
        $region96: #{forward.4} parent=91 // pred_fallthru
          _
      $region92: #{forward.4} parent=5 // pred_fallthru
        _
    $region6: #{forward.4} parent=1 // loop_footer
      %s13 = sadd.s32 1, %s9
    $region7: #{forward.4} parent=1 // loop_footer_branch
      %8 = sbr.rel target = $region3
    $region8: #{forward.4} parent=1 // loop_exit
      _

// kernel: forward.5
$region0: #{forward.5}
  #allocation0 [shape = 'u32[]', space=smem, size = 0x4, offset = 0x4, fixed_abs, tag = 'smem constant byte address 0x4 - core index']
  #allocation1 [shape = 'u32[144,128]{1,0:T(1,128)}', space=vmem, size = 0x12000, scoped, tag = 'internal scratch']
  #allocation2 [shape = 'f32[48,128]{1,0:T(8,128)}', space=vmem, size = 0x6000, scoped, tag = 'scratch operand']
  %s0 = inlined_call_operand.vmem [shape: bf16[72,2048], index: 0, kind: input, shape index: {}]
  %s1 = inlined_call_operand.vmem [shape: bf16[2048,128], index: 1, kind: input, shape index: {}]
  %s2 = inlined_call_operand.vmem [shape: f32[1,128], index: 2, kind: input, shape index: {}]
  %s3 = inlined_call_operand.vmem [shape: f32[72,128], index: 3, kind: output, shape index: {}]
  %s4 = sld [smem:[#allocation0]]
  $region101: #{forward.5} parent=0
    _
  %s6 = ssub.s32 1, %s4
  %s7 = scalar_select 0, %s6, %s4
  $region1: #{forward.5} parent=0
    #allocation3 [shape = 'u8[49152]{0}', space=vmem, size = 0xc000, scoped, tag = 'output window, operand 0']
    loop: start=0, step=1, limit=4
    $region2: #{forward.5} parent=1 // loop_pre_header
      _
    $region3: #{forward.5} parent=1 // loop_header
      %s9 = sphi 0, %s13
      %p10 = scmp.ge.s32.totalorder %s9, 4
      %s16 = sphi 0, %s35
      %s17 = sphi 0, %s31
      %s18 = sphi 0, %s27
      %s19 = sphi 0, %s16
      %s20 = sphi 0, %s17
      %s21 = sphi 0, %s18
      %s22 = sphi 0, %s19
      %s23 = sphi 0, %s20
      %s24 = sphi 0, %s21
      %s40 = sphi 0, %s42
      %s43 = sphi 0, %s40
      %s44 = sphi 0, %s43
      %s60 = sphi 0, %s44
      %s68 = sphi 0, %s70
      %s71 = sphi 0, %s68
      %s72 = sphi 0, %s71
      %s88 = sphi 0, %s72
      %s94 = sphi 0, %s96
      %s97 = sphi 0, %s94
      %s98 = sphi 0, %s97
      %s114 = sphi 0, %s98
      %s122 = sphi 0, %s124
      %s125 = sphi 0, %s122
      %s126 = sphi 0, %s125
      %s142 = sphi 0, %s126
    $region4: #{forward.5} parent=1 // loop_header_branch
      %12 = sbr.rel (%p10) target = $region8
    $region5: #{forward.5} parent=1 // loop_body
      %s14 = ssub.s32 %s9, 1
      %s15 = ssub.s32 %s9, 2
      %s25 = sadd.s32 1, %s18
      %p26 = scmp.ge.s32.totalorder %s25, 1
      %s27 = scalar_select %p26, 0, %s25
      %s28 = sadd.s32 1, %s17
      %s29 = scalar_select %p26, %s28, %s17
      %p30 = scmp.ge.s32.totalorder %s29, 1
      %s31 = scalar_select %p30, 0, %s29
      %s32 = sadd.s32 1, %s16
      %s33 = scalar_select %p30, %s32, %s16
      %p34 = scmp.ge.s32.totalorder %s33, 2
      %s35 = scalar_select %p34, 0, %s33
      %s36 = ssub.s32 %s16, %s35
      %s37 = ssub.s32 %s18, %s27
      %s38 = sor.u32 %s36, %s37
      %p39 = scmp.eq.s32.totalorder %s38, 0
      %s41 = sadd.s32 %s40, 1
      %s42 = scalar_select %p39, %s40, %s41
      %p45 = pneg %p39
      %p46 = scmp.eq.s32.totalorder %s9, 1
      %p47 = por %p45, %p46
      %p48 = scmp.ne.s32.totalorder %s40, %s43
      %p49 = scmp.eq.s32.totalorder %s9, 0
      %p50 = por %p48, %p49
      %p51 = scmp.ne.s32.totalorder %s40, %s43
      %p52 = scmp.eq.s32.totalorder %s14, 1
      %p53 = por %p51, %p52
      %p54 = scmp.ne.s32.totalorder %s43, %s44
      %p55 = scmp.eq.s32.totalorder %s14, 0
      %p56 = por %p54, %p55
      %p57 = scmp.ne.s32.totalorder %s43, %s44
      %p58 = scmp.eq.s32.totalorder %s15, 1
      %p59 = por %p57, %p58
      %p61 = scmp.ne.s32.totalorder %s44, %s60
      %p62 = scmp.eq.s32.totalorder %s15, 0
      %p63 = por %p61, %p62
      %s64 = ssub.s32 %s18, %s27
      %s65 = ssub.s32 %s17, %s31
      %s66 = sor.u32 %s64, %s65
      %p67 = scmp.eq.s32.totalorder %s66, 0
      %s69 = sadd.s32 %s68, 1
      %s70 = scalar_select %p67, %s68, %s69
      %p73 = pneg %p67
      %p74 = scmp.eq.s32.totalorder %s9, 1
      %p75 = por %p73, %p74
      %p76 = scmp.ne.s32.totalorder %s68, %s71
      %p77 = scmp.eq.s32.totalorder %s9, 0
      %p78 = por %p76, %p77
      %p79 = scmp.ne.s32.totalorder %s68, %s71
      %p80 = scmp.eq.s32.totalorder %s14, 1
      %p81 = por %p79, %p80
      %p82 = scmp.ne.s32.totalorder %s71, %s72
      %p83 = scmp.eq.s32.totalorder %s14, 0
      %p84 = por %p82, %p83
      %p85 = scmp.ne.s32.totalorder %s71, %s72
      %p86 = scmp.eq.s32.totalorder %s15, 1
      %p87 = por %p85, %p86
      %p89 = scmp.ne.s32.totalorder %s72, %s88
      %p90 = scmp.eq.s32.totalorder %s15, 0
      %p91 = por %p89, %p90
      %s92 = ssub.s32 %s17, %s31
      %p93 = scmp.eq.s32.totalorder %s92, 0
      %s95 = sadd.s32 %s94, 1
      %s96 = scalar_select %p93, %s94, %s95
      %p99 = pneg %p93
      %p100 = scmp.eq.s32.totalorder %s9, 1
      %p101 = por %p99, %p100
      %p102 = scmp.ne.s32.totalorder %s94, %s97
      %p103 = scmp.eq.s32.totalorder %s9, 0
      %p104 = por %p102, %p103
      %p105 = scmp.ne.s32.totalorder %s94, %s97
      %p106 = scmp.eq.s32.totalorder %s14, 1
      %p107 = por %p105, %p106
      %p108 = scmp.ne.s32.totalorder %s97, %s98
      %p109 = scmp.eq.s32.totalorder %s14, 0
      %p110 = por %p108, %p109
      %p111 = scmp.ne.s32.totalorder %s97, %s98
      %p112 = scmp.eq.s32.totalorder %s15, 1
      %p113 = por %p111, %p112
      %p115 = scmp.ne.s32.totalorder %s98, %s114
      %p116 = scmp.eq.s32.totalorder %s15, 0
      %p117 = por %p115, %p116
      %s118 = ssub.s32 %s16, %s35
      %s119 = ssub.s32 %s17, %s31
      %s120 = sor.u32 %s118, %s119
      %p121 = scmp.eq.s32.totalorder %s120, 0
      %s123 = sadd.s32 %s122, 1
      %s124 = scalar_select %p121, %s122, %s123
      %p127 = pneg %p121
      %p128 = scmp.eq.s32.totalorder %s9, 1
      %p129 = por %p127, %p128
      %p130 = scmp.ne.s32.totalorder %s122, %s125
      %p131 = scmp.eq.s32.totalorder %s9, 0
      %p132 = por %p130, %p131
      %p133 = scmp.ne.s32.totalorder %s122, %s125
      %p134 = scmp.eq.s32.totalorder %s14, 1
      %p135 = por %p133, %p134
      %p136 = scmp.ne.s32.totalorder %s125, %s126
      %p137 = scmp.eq.s32.totalorder %s14, 0
      %p138 = por %p136, %p137
      %p139 = scmp.ne.s32.totalorder %s125, %s126
      %p140 = scmp.eq.s32.totalorder %s15, 1
      %p141 = por %p139, %p140
      %p143 = scmp.ne.s32.totalorder %s126, %s142
      %p144 = scmp.eq.s32.totalorder %s15, 0
      %p145 = por %p143, %p144
      %p146 = scmp.le.s32.totalorder 1, %s9
      %p147 = scmp.lt.s32.totalorder %s9, 3
      %p148 = pnand %p146, %p147
      %p149 = pneg %p148
      // Predicated region
      $region9: #{forward.5} parent=5 // pred_check
        _
      $region10: #{forward.5} parent=5 // pred_check_branch
        %151 = sbr.rel (%p148) target = $region12
      $region11: #{forward.5} parent=5 // pred_region
        %s152 = ssub.s32 %s9, 1
        // Predicated region
        $region13: #{forward.5} parent=11 // pred_check
          %p153 = pneg %p84
        $region14: #{forward.5} parent=11 // pred_check_branch
          %155 = sbr.rel (%p153) target = $region16
        $region15: #{forward.5} parent=11 // pred_region
          %s156 = smul.u32 256, %s21
          %p157 = scmp.lt.s32.totalorder %s156, 255
          %s158 = scalar_select %p157, %s156, 255
          %p159 = scmp.lt.s32.totalorder %s20, 0
          %s160 = scalar_select %p159, %s20, 0
          %s161 = sadd.s32 %s160, %s158
          %s162 = smul.addr %s161, 4
          %s163 = scalar_lea.vmem %s1, %s162
          %s164 = smul.u32 256, %s21
        $region16: #{forward.5} parent=11 // pred_fallthru
          _
        // Predicated region
        $region17: #{forward.5} parent=11 // pred_check
          %p165 = pneg %p110
        $region18: #{forward.5} parent=11 // pred_check_branch
          %167 = sbr.rel (%p165) target = $region20
        $region19: #{forward.5} parent=11 // pred_region
          %p168 = scmp.lt.s32.totalorder %s20, 0
          %s169 = scalar_select %p168, %s20, 0
          %s170 = scalar_lea.vmem %s2, %s169
        $region20: #{forward.5} parent=11 // pred_fallthru
          _
      $region12: #{forward.5} parent=5 // pred_fallthru
        _
      %p171 = scmp.lt.s32.totalorder %s9, 2
      // Predicated region
      $region21: #{forward.5} parent=5 // pred_check
        %p172 = pneg %p171
      $region22: #{forward.5} parent=5 // pred_check_branch
        %174 = sbr.rel (%p172) target = $region24
      $region23: #{forward.5} parent=5 // pred_region
        // Predicated region
        $region25: #{forward.5} parent=23 // pred_check
          %p175 = pneg %p50
        $region26: #{forward.5} parent=23 // pred_check_branch
          %177 = sbr.rel (%p175) target = $region28
        $region27: #{forward.5} parent=23 // pred_region
          %s178 = smul.u32 6, %s16
          %s179 = smul.u32 16, %s18
          %s180 = ssub.s32 9, %s178
          %p181 = scmp.lt.s32.totalorder %s180, 6
          %s182 = scalar_select %p181, %s180, 6
          %s183 = smul.u32 64, %s182
          %s184 = smul.u32 %s183, 16
          %p185 = scmp.lt.s32.totalorder %s178, 8
          %s186 = scalar_select %p185, %s178, 8
          %p187 = scmp.lt.s32.totalorder %s179, 15
          %s188 = scalar_select %p187, %s179, 15
          %s189 = smul.addr %s186, 16
          %s190 = sadd.s32 %s188, %s189
          %s191 = smul.addr %s190, 4
          %s192 = scalar_lea.vmem %s0, %s191
          %s193 = smul.u32 6, %s16
          %s194 = smul.u32 16, %s18
          %s195 = ssub.s32 9, %s193
          %p196 = scmp.lt.s32.totalorder %s195, 6
          %s197 = scalar_select %p196, %s195, 6
          %s198 = smul.u32 64, %s197
          %s199 = smul.u32 %s198, 16
        $region28: #{forward.5} parent=23 // pred_fallthru
          _
      $region24: #{forward.5} parent=5 // pred_fallthru
        _
      %p200 = scmp.le.s32.totalorder 1, %s9
      %p201 = scmp.lt.s32.totalorder %s9, 3
      %p202 = pnand %p200, %p201
      %p203 = pneg %p202
      // Predicated region
      $region29: #{forward.5} parent=5 // pred_check
        _
      $region30: #{forward.5} parent=5 // pred_check_branch
        %205 = sbr.rel (%p202) target = $region32
      $region31: #{forward.5} parent=5 // pred_region
        %s206 = ssub.s32 %s9, 1
        %s207 = smul.u32 6, %s19
        %s208 = smul.u32 16, %s21
        %s209 = ssub.s32 9, %s207
        %p210 = scmp.lt.s32.totalorder %s209, 6
        %s211 = scalar_select %p210, %s209, 6
        %s212 = smul.u32 64, %s211
        %s213 = smul.u32 %s212, 16
        %p214 = scmp.lt.s32.totalorder %s207, 8
        %s215 = scalar_select %p214, %s207, 8
        %p216 = scmp.lt.s32.totalorder %s208, 15
        %s217 = scalar_select %p216, %s208, 15
        %s218 = smul.addr %s215, 16
        %s219 = sadd.s32 %s217, %s218
        %s220 = smul.addr %s219, 4
        %s221 = scalar_lea.vmem %s0, %s220
        %p222 = pneg %p56
        %p223 = pneg %p53
        %s224 = smul.u32 256, %s21
        %p225 = scmp.lt.s32.totalorder %s224, 255
        %s226 = scalar_select %p225, %s224, 255
        %p227 = scmp.lt.s32.totalorder %s20, 0
        %s228 = scalar_select %p227, %s20, 0
        %s229 = sadd.s32 %s228, %s226
        %s230 = smul.addr %s229, 4
        %s231 = scalar_lea.vmem %s1, %s230
        %p232 = pneg %p84
        %p233 = pneg %p81
        %p234 = scmp.lt.s32.totalorder %s20, 0
        %s235 = scalar_select %p234, %s20, 0
        %s236 = scalar_lea.vmem %s2, %s235
        %p237 = pneg %p110
        %p238 = pneg %p107
        %p239 = pneg %p138
        %p240 = pneg %p135
        %s241 = sand.u32 %s125, 1
        %s242 = sand.u32 %s125, 1
        %s243 = smul.addr %s242, 48
        %s244 = scalar_lea.vmem [#allocation3], %s243
        %s245 = smul.u32 6, %s19
        %s246 = smul.u32 16, %s21
        %s247 = ssub.s32 9, %s245
        %p248 = scmp.lt.s32.totalorder %s247, 6
        %s249 = scalar_select %p248, %s247, 6
        %s250 = smul.u32 64, %s249
        %s251 = smul.u32 %s250, 16
        %p252 = scmp.lt.s32.totalorder %s245, 8
        %s253 = scalar_select %p252, %s245, 8
        %p254 = scmp.lt.s32.totalorder %s246, 15
        %s255 = scalar_select %p254, %s246, 15
        %s256 = smul.addr %s253, 16
        %s257 = sadd.s32 %s255, %s256
        %s258 = smul.addr %s257, 4
        %s259 = scalar_lea.vmem %s0, %s258
        %s260 = smul.u32 6, %s19
        %s261 = smul.u32 16, %s21
        %s262 = ssub.s32 9, %s260
        %p263 = scmp.lt.s32.totalorder %s262, 6
        %s264 = scalar_select %p263, %s262, 6
        %s265 = smul.u32 64, %s264
        %s266 = smul.u32 %s265, 16
        %s267 = smul.u32 256, %s21
        %p268 = scmp.lt.s32.totalorder %s267, 255
        %s269 = scalar_select %p268, %s267, 255
        %p270 = scmp.lt.s32.totalorder %s20, 0
        %s271 = scalar_select %p270, %s20, 0
        %s272 = sadd.s32 %s271, %s269
        %s273 = smul.addr %s272, 4
        %s274 = scalar_lea.vmem %s1, %s273
        %s275 = smul.u32 256, %s21
        %p276 = scmp.lt.s32.totalorder %s20, 0
        %s277 = scalar_select %p276, %s20, 0
        %s278 = scalar_lea.vmem %s2, %s277
        %s279 = smul.u32 6, %s19
        %s280 = ssub.s32 9, %s279
        %p281 = scmp.lt.s32.totalorder %s280, 6
        %s282 = scalar_select %p281, %s280, 6
        %s283 = smul.u32 128, %s282
        %p285 = scmp.eq.s32.totalorder %s21, 0
        // Predicated region
        $region33: #{forward.5} parent=31 // pred_check
          %p286 = pneg %p285
        $region34: #{forward.5} parent=31 // pred_check_branch
          %288 = sbr.rel (%p286) target = $region36
        $region35: #{forward.5} parent=31 // pred_region
          %289 = vst [vmem:[#allocation2] sm:$0xff] 0.0
          %290 = vst [vmem:[#allocation2 + $0x8] sm:$0xff] 0.0
          %291 = vst [vmem:[#allocation2 + $0x10] sm:$0xff] 0.0
          %292 = vst [vmem:[#allocation2 + $0x18] sm:$0xff] 0.0
          %293 = vst [vmem:[#allocation2 + $0x20] sm:$0xff] 0.0
          %294 = vst [vmem:[#allocation2 + $0x28] sm:$0xff] 0.0
        $region36: #{forward.5} parent=31 // pred_fallthru
          _
        %v295 = vld [vmem:[#allocation2] sm:$0xff]
        %v296 = vld [vmem:[#allocation2 + $0x8] sm:$0xff]
        %v297 = vld [vmem:[#allocation2 + $0x10] sm:$0xff]
        %v298 = vld [vmem:[#allocation2 + $0x18] sm:$0xff]
        %v299 = vld [vmem:[#allocation2 + $0x20] sm:$0xff]
        %v300 = vld [vmem:[#allocation2 + $0x28] sm:$0xff]
        %v301 = vld [vmem:[%s259] sm:$0xff]
        %v302 = vld [vmem:[%s259 + $0x8] sm:$0xff]
        %v303 = vld [vmem:[%s259 + $0x10] sm:$0xff]
        %v304 = vld [vmem:[%s259 + $0x18] sm:$0xff]
        %v305 = vld [vmem:[%s259 + $0x20] sm:$0xff]
        %v306 = vld [vmem:[%s259 + $0x28] sm:$0xff]
        %v307 = vld [vmem:[%s259 + $0x30] sm:$0xff]
        %v308 = vld [vmem:[%s259 + $0x38] sm:$0xff]
        %v309 = vld [vmem:[%s259 + $0x40] sm:$0xff]
        %v310 = vld [vmem:[%s259 + $0x48] sm:$0xff]
        %v311 = vld [vmem:[%s259 + $0x50] sm:$0xff]
        %v312 = vld [vmem:[%s259 + $0x58] sm:$0xff]
        %v313 = vld [vmem:[%s259 + $0x60] sm:$0xff]
        %v314 = vld [vmem:[%s259 + $0x68] sm:$0xff]
        %v315 = vld [vmem:[%s259 + $0x70] sm:$0xff]
        %v316 = vld [vmem:[%s259 + $0x78] sm:$0xff]
        %v317 = vld [vmem:[%s259 + $0x80] sm:$0xff]
        %v318 = vld [vmem:[%s259 + $0x88] sm:$0xff]
        %v319 = vld [vmem:[%s259 + $0x90] sm:$0xff]
        %v320 = vld [vmem:[%s259 + $0x98] sm:$0xff]
        %v321 = vld [vmem:[%s259 + $0xa0] sm:$0xff]
        %v322 = vld [vmem:[%s259 + $0xa8] sm:$0xff]
        %v323 = vld [vmem:[%s259 + $0xb0] sm:$0xff]
        %v324 = vld [vmem:[%s259 + $0xb8] sm:$0xff]
        %v325 = vld [vmem:[%s259 + $0xc0] sm:$0xff]
        %v326 = vld [vmem:[%s259 + $0xc8] sm:$0xff]
        %v327 = vld [vmem:[%s259 + $0xd0] sm:$0xff]
        %v328 = vld [vmem:[%s259 + $0xd8] sm:$0xff]
        %v329 = vld [vmem:[%s259 + $0xe0] sm:$0xff]
        %v330 = vld [vmem:[%s259 + $0xe8] sm:$0xff]
        %v331 = vld [vmem:[%s259 + $0xf0] sm:$0xff]
        %v332 = vld [vmem:[%s259 + $0xf8] sm:$0xff]
        %v333 = vld [vmem:[%s259 + $0x100] sm:$0xff]
        %v334 = vld [vmem:[%s259 + $0x108] sm:$0xff]
        %v335 = vld [vmem:[%s259 + $0x110] sm:$0xff]
        %v336 = vld [vmem:[%s259 + $0x118] sm:$0xff]
        %v337 = vld [vmem:[%s259 + $0x120] sm:$0xff]
        %v338 = vld [vmem:[%s259 + $0x128] sm:$0xff]
        %v339 = vld [vmem:[%s259 + $0x130] sm:$0xff]
        %v340 = vld [vmem:[%s259 + $0x138] sm:$0xff]
        %v341 = vld [vmem:[%s259 + $0x140] sm:$0xff]
        %v342 = vld [vmem:[%s259 + $0x148] sm:$0xff]
        %v343 = vld [vmem:[%s259 + $0x150] sm:$0xff]
        %v344 = vld [vmem:[%s259 + $0x158] sm:$0xff]
        %v345 = vld [vmem:[%s259 + $0x160] sm:$0xff]
        %v346 = vld [vmem:[%s259 + $0x168] sm:$0xff]
        %v347 = vld [vmem:[%s259 + $0x170] sm:$0xff]
        %v348 = vld [vmem:[%s259 + $0x178] sm:$0xff]
        %v349 = vld [vmem:[%s274] sm:$0xf]
        %v350 = vld [vmem:[%s274 + $0x4] sm:$0xf]
        %v351 = vld [vmem:[%s274 + $0x8] sm:$0xf]
        %v352 = vld [vmem:[%s274 + $0xc] sm:$0xf]
        %v353 = vld [vmem:[%s274 + $0x10] sm:$0xf]
        %v354 = vld [vmem:[%s274 + $0x14] sm:$0xf]
        %v355 = vld [vmem:[%s274 + $0x18] sm:$0xf]
        %v356 = vld [vmem:[%s274 + $0x1c] sm:$0xf]
        %v357 = vld [vmem:[%s274 + $0x20] sm:$0xf]
        %v358 = vld [vmem:[%s274 + $0x24] sm:$0xf]
        %v359 = vld [vmem:[%s274 + $0x28] sm:$0xf]
        %v360 = vld [vmem:[%s274 + $0x2c] sm:$0xf]
        %v361 = vld [vmem:[%s274 + $0x30] sm:$0xf]
        %v362 = vld [vmem:[%s274 + $0x34] sm:$0xf]
        %v363 = vld [vmem:[%s274 + $0x38] sm:$0xf]
        %v364 = vld [vmem:[%s274 + $0x3c] sm:$0xf]
        %v365 = vld [vmem:[%s274 + $0x40] sm:$0xf]
        %v366 = vld [vmem:[%s274 + $0x44] sm:$0xf]
        %v367 = vld [vmem:[%s274 + $0x48] sm:$0xf]
        %v368 = vld [vmem:[%s274 + $0x4c] sm:$0xf]
        %v369 = vld [vmem:[%s274 + $0x50] sm:$0xf]
        %v370 = vld [vmem:[%s274 + $0x54] sm:$0xf]
        %v371 = vld [vmem:[%s274 + $0x58] sm:$0xf]
        %v372 = vld [vmem:[%s274 + $0x5c] sm:$0xf]
        %v373 = vld [vmem:[%s274 + $0x60] sm:$0xf]
        %v374 = vld [vmem:[%s274 + $0x64] sm:$0xf]
        %v375 = vld [vmem:[%s274 + $0x68] sm:$0xf]
        %v376 = vld [vmem:[%s274 + $0x6c] sm:$0xf]
        %v377 = vld [vmem:[%s274 + $0x70] sm:$0xf]
        %v378 = vld [vmem:[%s274 + $0x74] sm:$0xf]
        %v379 = vld [vmem:[%s274 + $0x78] sm:$0xf]
        %v380 = vld [vmem:[%s274 + $0x7c] sm:$0xf]
        %v381 = vld [vmem:[%s274 + $0x80] sm:$0xf]
        %v382 = vld [vmem:[%s274 + $0x84] sm:$0xf]
        %v383 = vld [vmem:[%s274 + $0x88] sm:$0xf]
        %v384 = vld [vmem:[%s274 + $0x8c] sm:$0xf]
        %v385 = vld [vmem:[%s274 + $0x90] sm:$0xf]
        %v386 = vld [vmem:[%s274 + $0x94] sm:$0xf]
        %v387 = vld [vmem:[%s274 + $0x98] sm:$0xf]
        %v388 = vld [vmem:[%s274 + $0x9c] sm:$0xf]
        %v389 = vld [vmem:[%s274 + $0xa0] sm:$0xf]
        %v390 = vld [vmem:[%s274 + $0xa4] sm:$0xf]
        %v391 = vld [vmem:[%s274 + $0xa8] sm:$0xf]
        %v392 = vld [vmem:[%s274 + $0xac] sm:$0xf]
        %v393 = vld [vmem:[%s274 + $0xb0] sm:$0xf]
        %v394 = vld [vmem:[%s274 + $0xb4] sm:$0xf]
        %v395 = vld [vmem:[%s274 + $0xb8] sm:$0xf]
        %v396 = vld [vmem:[%s274 + $0xbc] sm:$0xf]
        %v397 = vld [vmem:[%s274 + $0xc0] sm:$0xf]
        %v398 = vld [vmem:[%s274 + $0xc4] sm:$0xf]
        %v399 = vld [vmem:[%s274 + $0xc8] sm:$0xf]
        %v400 = vld [vmem:[%s274 + $0xcc] sm:$0xf]
        %v401 = vld [vmem:[%s274 + $0xd0] sm:$0xf]
        %v402 = vld [vmem:[%s274 + $0xd4] sm:$0xf]
        %v403 = vld [vmem:[%s274 + $0xd8] sm:$0xf]
        %v404 = vld [vmem:[%s274 + $0xdc] sm:$0xf]
        %v405 = vld [vmem:[%s274 + $0xe0] sm:$0xf]
        %v406 = vld [vmem:[%s274 + $0xe4] sm:$0xf]
        %v407 = vld [vmem:[%s274 + $0xe8] sm:$0xf]
        %v408 = vld [vmem:[%s274 + $0xec] sm:$0xf]
        %v409 = vld [vmem:[%s274 + $0xf0] sm:$0xf]
        %v410 = vld [vmem:[%s274 + $0xf4] sm:$0xf]
        %v411 = vld [vmem:[%s274 + $0xf8] sm:$0xf]
        %v412 = vld [vmem:[%s274 + $0xfc] sm:$0xf]
        %v413 = vld [vmem:[%s274 + $0x100] sm:$0xf]
        %v414 = vld [vmem:[%s274 + $0x104] sm:$0xf]
        %v415 = vld [vmem:[%s274 + $0x108] sm:$0xf]
        %v416 = vld [vmem:[%s274 + $0x10c] sm:$0xf]
        %v417 = vld [vmem:[%s274 + $0x110] sm:$0xf]
        %v418 = vld [vmem:[%s274 + $0x114] sm:$0xf]
        %v419 = vld [vmem:[%s274 + $0x118] sm:$0xf]
        %v420 = vld [vmem:[%s274 + $0x11c] sm:$0xf]
        %v421 = vld [vmem:[%s274 + $0x120] sm:$0xf]
        %v422 = vld [vmem:[%s274 + $0x124] sm:$0xf]
        %v423 = vld [vmem:[%s274 + $0x128] sm:$0xf]
        %v424 = vld [vmem:[%s274 + $0x12c] sm:$0xf]
        %v425 = vld [vmem:[%s274 + $0x130] sm:$0xf]
        %v426 = vld [vmem:[%s274 + $0x134] sm:$0xf]
        %v427 = vld [vmem:[%s274 + $0x138] sm:$0xf]
        %v428 = vld [vmem:[%s274 + $0x13c] sm:$0xf]
        %v429 = vld [vmem:[%s274 + $0x140] sm:$0xf]
        %v430 = vld [vmem:[%s274 + $0x144] sm:$0xf]
        %v431 = vld [vmem:[%s274 + $0x148] sm:$0xf]
        %v432 = vld [vmem:[%s274 + $0x14c] sm:$0xf]
        %v433 = vld [vmem:[%s274 + $0x150] sm:$0xf]
        %v434 = vld [vmem:[%s274 + $0x154] sm:$0xf]
        %v435 = vld [vmem:[%s274 + $0x158] sm:$0xf]
        %v436 = vld [vmem:[%s274 + $0x15c] sm:$0xf]
        %v437 = vld [vmem:[%s274 + $0x160] sm:$0xf]
        %v438 = vld [vmem:[%s274 + $0x164] sm:$0xf]
        %v439 = vld [vmem:[%s274 + $0x168] sm:$0xf]
        %v440 = vld [vmem:[%s274 + $0x16c] sm:$0xf]
        %v441 = vld [vmem:[%s274 + $0x170] sm:$0xf]
        %v442 = vld [vmem:[%s274 + $0x174] sm:$0xf]
        %v443 = vld [vmem:[%s274 + $0x178] sm:$0xf]
        %v444 = vld [vmem:[%s274 + $0x17c] sm:$0xf]
        %v445 = vld [vmem:[%s274 + $0x180] sm:$0xf]
        %v446 = vld [vmem:[%s274 + $0x184] sm:$0xf]
        %v447 = vld [vmem:[%s274 + $0x188] sm:$0xf]
        %v448 = vld [vmem:[%s274 + $0x18c] sm:$0xf]
        %v449 = vld [vmem:[%s274 + $0x190] sm:$0xf]
        %v450 = vld [vmem:[%s274 + $0x194] sm:$0xf]
        %v451 = vld [vmem:[%s274 + $0x198] sm:$0xf]
        %v452 = vld [vmem:[%s274 + $0x19c] sm:$0xf]
        %v453 = vld [vmem:[%s274 + $0x1a0] sm:$0xf]
        %v454 = vld [vmem:[%s274 + $0x1a4] sm:$0xf]
        %v455 = vld [vmem:[%s274 + $0x1a8] sm:$0xf]
        %v456 = vld [vmem:[%s274 + $0x1ac] sm:$0xf]
        %v457 = vld [vmem:[%s274 + $0x1b0] sm:$0xf]
        %v458 = vld [vmem:[%s274 + $0x1b4] sm:$0xf]
        %v459 = vld [vmem:[%s274 + $0x1b8] sm:$0xf]
        %v460 = vld [vmem:[%s274 + $0x1bc] sm:$0xf]
        %v461 = vld [vmem:[%s274 + $0x1c0] sm:$0xf]
        %v462 = vld [vmem:[%s274 + $0x1c4] sm:$0xf]
        %v463 = vld [vmem:[%s274 + $0x1c8] sm:$0xf]
        %v464 = vld [vmem:[%s274 + $0x1cc] sm:$0xf]
        %v465 = vld [vmem:[%s274 + $0x1d0] sm:$0xf]
        %v466 = vld [vmem:[%s274 + $0x1d4] sm:$0xf]
        %v467 = vld [vmem:[%s274 + $0x1d8] sm:$0xf]
        %v468 = vld [vmem:[%s274 + $0x1dc] sm:$0xf]
        %v469 = vld [vmem:[%s274 + $0x1e0] sm:$0xf]
        %v470 = vld [vmem:[%s274 + $0x1e4] sm:$0xf]
        %v471 = vld [vmem:[%s274 + $0x1e8] sm:$0xf]
        %v472 = vld [vmem:[%s274 + $0x1ec] sm:$0xf]
        %v473 = vld [vmem:[%s274 + $0x1f0] sm:$0xf]
        %v474 = vld [vmem:[%s274 + $0x1f4] sm:$0xf]
        %v475 = vld [vmem:[%s274 + $0x1f8] sm:$0xf]
        %v476 = vld [vmem:[%s274 + $0x1fc] sm:$0xf]
        %v477 = vld [vmem:[%s274 + $0x200] sm:$0xf]
        %v478 = vld [vmem:[%s274 + $0x204] sm:$0xf]
        %v479 = vld [vmem:[%s274 + $0x208] sm:$0xf]
        %v480 = vld [vmem:[%s274 + $0x20c] sm:$0xf]
        %v481 = vld [vmem:[%s274 + $0x210] sm:$0xf]
        %v482 = vld [vmem:[%s274 + $0x214] sm:$0xf]
        %v483 = vld [vmem:[%s274 + $0x218] sm:$0xf]
        %v484 = vld [vmem:[%s274 + $0x21c] sm:$0xf]
        %v485 = vld [vmem:[%s274 + $0x220] sm:$0xf]
        %v486 = vld [vmem:[%s274 + $0x224] sm:$0xf]
        %v487 = vld [vmem:[%s274 + $0x228] sm:$0xf]
        %v488 = vld [vmem:[%s274 + $0x22c] sm:$0xf]
        %v489 = vld [vmem:[%s274 + $0x230] sm:$0xf]
        %v490 = vld [vmem:[%s274 + $0x234] sm:$0xf]
        %v491 = vld [vmem:[%s274 + $0x238] sm:$0xf]
        %v492 = vld [vmem:[%s274 + $0x23c] sm:$0xf]
        %v493 = vld [vmem:[%s274 + $0x240] sm:$0xf]
        %v494 = vld [vmem:[%s274 + $0x244] sm:$0xf]
        %v495 = vld [vmem:[%s274 + $0x248] sm:$0xf]
        %v496 = vld [vmem:[%s274 + $0x24c] sm:$0xf]
        %v497 = vld [vmem:[%s274 + $0x250] sm:$0xf]
        %v498 = vld [vmem:[%s274 + $0x254] sm:$0xf]
        %v499 = vld [vmem:[%s274 + $0x258] sm:$0xf]
        %v500 = vld [vmem:[%s274 + $0x25c] sm:$0xf]
        %v501 = vld [vmem:[%s274 + $0x260] sm:$0xf]
        %v502 = vld [vmem:[%s274 + $0x264] sm:$0xf]
        %v503 = vld [vmem:[%s274 + $0x268] sm:$0xf]
        %v504 = vld [vmem:[%s274 + $0x26c] sm:$0xf]
        %v505 = vld [vmem:[%s274 + $0x270] sm:$0xf]
        %v506 = vld [vmem:[%s274 + $0x274] sm:$0xf]
        %v507 = vld [vmem:[%s274 + $0x278] sm:$0xf]
        %v508 = vld [vmem:[%s274 + $0x27c] sm:$0xf]
        %v509 = vld [vmem:[%s274 + $0x280] sm:$0xf]
        %v510 = vld [vmem:[%s274 + $0x284] sm:$0xf]
        %v511 = vld [vmem:[%s274 + $0x288] sm:$0xf]
        %v512 = vld [vmem:[%s274 + $0x28c] sm:$0xf]
        %v513 = vld [vmem:[%s274 + $0x290] sm:$0xf]
        %v514 = vld [vmem:[%s274 + $0x294] sm:$0xf]
        %v515 = vld [vmem:[%s274 + $0x298] sm:$0xf]
        %v516 = vld [vmem:[%s274 + $0x29c] sm:$0xf]
        %v517 = vld [vmem:[%s274 + $0x2a0] sm:$0xf]
        %v518 = vld [vmem:[%s274 + $0x2a4] sm:$0xf]
        %v519 = vld [vmem:[%s274 + $0x2a8] sm:$0xf]
        %v520 = vld [vmem:[%s274 + $0x2ac] sm:$0xf]
        %v521 = vld [vmem:[%s274 + $0x2b0] sm:$0xf]
        %v522 = vld [vmem:[%s274 + $0x2b4] sm:$0xf]
        %v523 = vld [vmem:[%s274 + $0x2b8] sm:$0xf]
        %v524 = vld [vmem:[%s274 + $0x2bc] sm:$0xf]
        %v525 = vld [vmem:[%s274 + $0x2c0] sm:$0xf]
        %v526 = vld [vmem:[%s274 + $0x2c4] sm:$0xf]
        %v527 = vld [vmem:[%s274 + $0x2c8] sm:$0xf]
        %v528 = vld [vmem:[%s274 + $0x2cc] sm:$0xf]
        %v529 = vld [vmem:[%s274 + $0x2d0] sm:$0xf]
        %v530 = vld [vmem:[%s274 + $0x2d4] sm:$0xf]
        %v531 = vld [vmem:[%s274 + $0x2d8] sm:$0xf]
        %v532 = vld [vmem:[%s274 + $0x2dc] sm:$0xf]
        %v533 = vld [vmem:[%s274 + $0x2e0] sm:$0xf]
        %v534 = vld [vmem:[%s274 + $0x2e4] sm:$0xf]
        %v535 = vld [vmem:[%s274 + $0x2e8] sm:$0xf]
        %v536 = vld [vmem:[%s274 + $0x2ec] sm:$0xf]
        %v537 = vld [vmem:[%s274 + $0x2f0] sm:$0xf]
        %v538 = vld [vmem:[%s274 + $0x2f4] sm:$0xf]
        %v539 = vld [vmem:[%s274 + $0x2f8] sm:$0xf]
        %v540 = vld [vmem:[%s274 + $0x2fc] sm:$0xf]
        %v541 = vld [vmem:[%s274 + $0x300] sm:$0xf]
        %v542 = vld [vmem:[%s274 + $0x304] sm:$0xf]
        %v543 = vld [vmem:[%s274 + $0x308] sm:$0xf]
        %v544 = vld [vmem:[%s274 + $0x30c] sm:$0xf]
        %v545 = vld [vmem:[%s274 + $0x310] sm:$0xf]
        %v546 = vld [vmem:[%s274 + $0x314] sm:$0xf]
        %v547 = vld [vmem:[%s274 + $0x318] sm:$0xf]
        %v548 = vld [vmem:[%s274 + $0x31c] sm:$0xf]
        %v549 = vld [vmem:[%s274 + $0x320] sm:$0xf]
        %v550 = vld [vmem:[%s274 + $0x324] sm:$0xf]
        %v551 = vld [vmem:[%s274 + $0x328] sm:$0xf]
        %v552 = vld [vmem:[%s274 + $0x32c] sm:$0xf]
        %v553 = vld [vmem:[%s274 + $0x330] sm:$0xf]
        %v554 = vld [vmem:[%s274 + $0x334] sm:$0xf]
        %v555 = vld [vmem:[%s274 + $0x338] sm:$0xf]
        %v556 = vld [vmem:[%s274 + $0x33c] sm:$0xf]
        %v557 = vld [vmem:[%s274 + $0x340] sm:$0xf]
        %v558 = vld [vmem:[%s274 + $0x344] sm:$0xf]
        %v559 = vld [vmem:[%s274 + $0x348] sm:$0xf]
        %v560 = vld [vmem:[%s274 + $0x34c] sm:$0xf]
        %v561 = vld [vmem:[%s274 + $0x350] sm:$0xf]
        %v562 = vld [vmem:[%s274 + $0x354] sm:$0xf]
        %v563 = vld [vmem:[%s274 + $0x358] sm:$0xf]
        %v564 = vld [vmem:[%s274 + $0x35c] sm:$0xf]
        %v565 = vld [vmem:[%s274 + $0x360] sm:$0xf]
        %v566 = vld [vmem:[%s274 + $0x364] sm:$0xf]
        %v567 = vld [vmem:[%s274 + $0x368] sm:$0xf]
        %v568 = vld [vmem:[%s274 + $0x36c] sm:$0xf]
        %v569 = vld [vmem:[%s274 + $0x370] sm:$0xf]
        %v570 = vld [vmem:[%s274 + $0x374] sm:$0xf]
        %v571 = vld [vmem:[%s274 + $0x378] sm:$0xf]
        %v572 = vld [vmem:[%s274 + $0x37c] sm:$0xf]
        %v573 = vld [vmem:[%s274 + $0x380] sm:$0xf]
        %v574 = vld [vmem:[%s274 + $0x384] sm:$0xf]
        %v575 = vld [vmem:[%s274 + $0x388] sm:$0xf]
        %v576 = vld [vmem:[%s274 + $0x38c] sm:$0xf]
        %v577 = vld [vmem:[%s274 + $0x390] sm:$0xf]
        %v578 = vld [vmem:[%s274 + $0x394] sm:$0xf]
        %v579 = vld [vmem:[%s274 + $0x398] sm:$0xf]
        %v580 = vld [vmem:[%s274 + $0x39c] sm:$0xf]
        %v581 = vld [vmem:[%s274 + $0x3a0] sm:$0xf]
        %v582 = vld [vmem:[%s274 + $0x3a4] sm:$0xf]
        %v583 = vld [vmem:[%s274 + $0x3a8] sm:$0xf]
        %v584 = vld [vmem:[%s274 + $0x3ac] sm:$0xf]
        %v585 = vld [vmem:[%s274 + $0x3b0] sm:$0xf]
        %v586 = vld [vmem:[%s274 + $0x3b4] sm:$0xf]
        %v587 = vld [vmem:[%s274 + $0x3b8] sm:$0xf]
        %v588 = vld [vmem:[%s274 + $0x3bc] sm:$0xf]
        %v589 = vld [vmem:[%s274 + $0x3c0] sm:$0xf]
        %v590 = vld [vmem:[%s274 + $0x3c4] sm:$0xf]
        %v591 = vld [vmem:[%s274 + $0x3c8] sm:$0xf]
        %v592 = vld [vmem:[%s274 + $0x3cc] sm:$0xf]
        %v593 = vld [vmem:[%s274 + $0x3d0] sm:$0xf]
        %v594 = vld [vmem:[%s274 + $0x3d4] sm:$0xf]
        %v595 = vld [vmem:[%s274 + $0x3d8] sm:$0xf]
        %v596 = vld [vmem:[%s274 + $0x3dc] sm:$0xf]
        %v597 = vld [vmem:[%s274 + $0x3e0] sm:$0xf]
        %v598 = vld [vmem:[%s274 + $0x3e4] sm:$0xf]
        %v599 = vld [vmem:[%s274 + $0x3e8] sm:$0xf]
        %v600 = vld [vmem:[%s274 + $0x3ec] sm:$0xf]
        %v601 = vld [vmem:[%s274 + $0x3f0] sm:$0xf]
        %v602 = vld [vmem:[%s274 + $0x3f4] sm:$0xf]
        %v603 = vld [vmem:[%s274 + $0x3f8] sm:$0xf]
        %v604 = vld [vmem:[%s274 + $0x3fc] sm:$0xf]
        %v653 = vunpack.c.l.b16 %v301
        %v654 = vunpack.c.h.b16 %v301
        %v655 = vunpack.c.l.b16 %v302
        %v656 = vunpack.c.h.b16 %v302
        %v657 = vunpack.c.l.b16 %v303
        %v658 = vunpack.c.h.b16 %v303
        %v659 = vunpack.c.l.b16 %v304
        %v660 = vunpack.c.h.b16 %v304
        %v661 = vunpack.c.l.b16 %v305
        %v662 = vunpack.c.h.b16 %v305
        %v663 = vunpack.c.l.b16 %v306
        %v664 = vunpack.c.h.b16 %v306
        %v665 = vunpack.c.l.b16 %v307
        %v666 = vunpack.c.h.b16 %v307
        %v667 = vunpack.c.l.b16 %v308
        %v668 = vunpack.c.h.b16 %v308
        %v669 = vunpack.c.l.b16 %v309
        %v670 = vunpack.c.h.b16 %v309
        %v671 = vunpack.c.l.b16 %v310
        %v672 = vunpack.c.h.b16 %v310
        %v673 = vunpack.c.l.b16 %v311
        %v674 = vunpack.c.h.b16 %v311
        %v675 = vunpack.c.l.b16 %v312
        %v676 = vunpack.c.h.b16 %v312
        %v677 = vunpack.c.l.b16 %v313
        %v678 = vunpack.c.h.b16 %v313
        %v679 = vunpack.c.l.b16 %v314
        %v680 = vunpack.c.h.b16 %v314
        %v681 = vunpack.c.l.b16 %v315
        %v682 = vunpack.c.h.b16 %v315
        %v683 = vunpack.c.l.b16 %v316
        %v684 = vunpack.c.h.b16 %v316
        %v685 = vunpack.c.l.b16 %v317
        %v686 = vunpack.c.h.b16 %v317
        %v687 = vunpack.c.l.b16 %v318
        %v688 = vunpack.c.h.b16 %v318
        %v689 = vunpack.c.l.b16 %v319
        %v690 = vunpack.c.h.b16 %v319
        %v691 = vunpack.c.l.b16 %v320
        %v692 = vunpack.c.h.b16 %v320
        %v693 = vunpack.c.l.b16 %v321
        %v694 = vunpack.c.h.b16 %v321
        %v695 = vunpack.c.l.b16 %v322
        %v696 = vunpack.c.h.b16 %v322
        %v697 = vunpack.c.l.b16 %v323
        %v698 = vunpack.c.h.b16 %v323
        %v699 = vunpack.c.l.b16 %v324
        %v700 = vunpack.c.h.b16 %v324
        %v701 = vunpack.c.l.b16 %v325
        %v702 = vunpack.c.h.b16 %v325
        %v703 = vunpack.c.l.b16 %v326
        %v704 = vunpack.c.h.b16 %v326
        %v705 = vunpack.c.l.b16 %v327
        %v706 = vunpack.c.h.b16 %v327
        %v707 = vunpack.c.l.b16 %v328
        %v708 = vunpack.c.h.b16 %v328
        %v709 = vunpack.c.l.b16 %v329
        %v710 = vunpack.c.h.b16 %v329
        %v711 = vunpack.c.l.b16 %v330
        %v712 = vunpack.c.h.b16 %v330
        %v713 = vunpack.c.l.b16 %v331
        %v714 = vunpack.c.h.b16 %v331
        %v715 = vunpack.c.l.b16 %v332
        %v716 = vunpack.c.h.b16 %v332
        %v717 = vunpack.c.l.b16 %v333
        %v718 = vunpack.c.h.b16 %v333
        %v719 = vunpack.c.l.b16 %v334
        %v720 = vunpack.c.h.b16 %v334
        %v721 = vunpack.c.l.b16 %v335
        %v722 = vunpack.c.h.b16 %v335
        %v723 = vunpack.c.l.b16 %v336
        %v724 = vunpack.c.h.b16 %v336
        %v725 = vunpack.c.l.b16 %v337
        %v726 = vunpack.c.h.b16 %v337
        %v727 = vunpack.c.l.b16 %v338
        %v728 = vunpack.c.h.b16 %v338
        %v729 = vunpack.c.l.b16 %v339
        %v730 = vunpack.c.h.b16 %v339
        %v731 = vunpack.c.l.b16 %v340
        %v732 = vunpack.c.h.b16 %v340
        %v733 = vunpack.c.l.b16 %v341
        %v734 = vunpack.c.h.b16 %v341
        %v735 = vunpack.c.l.b16 %v342
        %v736 = vunpack.c.h.b16 %v342
        %v737 = vunpack.c.l.b16 %v343
        %v738 = vunpack.c.h.b16 %v343
        %v739 = vunpack.c.l.b16 %v344
        %v740 = vunpack.c.h.b16 %v344
        %v741 = vunpack.c.l.b16 %v345
        %v742 = vunpack.c.h.b16 %v345
        %v743 = vunpack.c.l.b16 %v346
        %v744 = vunpack.c.h.b16 %v346
        %v745 = vunpack.c.l.b16 %v347
        %v746 = vunpack.c.h.b16 %v347
        %v747 = vunpack.c.l.b16 %v348
        %v748 = vunpack.c.h.b16 %v348
        %v749 = vpack.c.b16 %v669, %v653
        %v750 = vpack.c.b16 %v670, %v654
        %v751 = vpack.c.b16 %v671, %v655
        %v752 = vpack.c.b16 %v672, %v656
        %v753 = vpack.c.b16 %v673, %v657
        %v754 = vpack.c.b16 %v674, %v658
        %v755 = vpack.c.b16 %v675, %v659
        %v756 = vpack.c.b16 %v676, %v660
        %v757 = vpack.c.b16 %v677, %v661
        %v758 = vpack.c.b16 %v678, %v662
        %v759 = vpack.c.b16 %v679, %v663
        %v760 = vpack.c.b16 %v680, %v664
        %v761 = vpack.c.b16 %v681, %v665
        %v762 = vpack.c.b16 %v682, %v666
        %v763 = vpack.c.b16 %v683, %v667
        %v764 = vpack.c.b16 %v684, %v668
        %v765 = vpack.c.b16 %v701, %v685
        %v766 = vpack.c.b16 %v702, %v686
        %v767 = vpack.c.b16 %v703, %v687
        %v768 = vpack.c.b16 %v704, %v688
        %v769 = vpack.c.b16 %v705, %v689
        %v770 = vpack.c.b16 %v706, %v690
        %v771 = vpack.c.b16 %v707, %v691
        %v772 = vpack.c.b16 %v708, %v692
        %v773 = vpack.c.b16 %v709, %v693
        %v774 = vpack.c.b16 %v710, %v694
        %v775 = vpack.c.b16 %v711, %v695
        %v776 = vpack.c.b16 %v712, %v696
        %v777 = vpack.c.b16 %v713, %v697
        %v778 = vpack.c.b16 %v714, %v698
        %v779 = vpack.c.b16 %v715, %v699
        %v780 = vpack.c.b16 %v716, %v700
        %v781 = vpack.c.b16 %v733, %v717
        %v782 = vpack.c.b16 %v734, %v718
        %v783 = vpack.c.b16 %v735, %v719
        %v784 = vpack.c.b16 %v736, %v720
        %v785 = vpack.c.b16 %v737, %v721
        %v786 = vpack.c.b16 %v738, %v722
        %v787 = vpack.c.b16 %v739, %v723
        %v788 = vpack.c.b16 %v740, %v724
        %v789 = vpack.c.b16 %v741, %v725
        %v790 = vpack.c.b16 %v742, %v726
        %v791 = vpack.c.b16 %v743, %v727
        %v792 = vpack.c.b16 %v744, %v728
        %v793 = vpack.c.b16 %v745, %v729
        %v794 = vpack.c.b16 %v746, %v730
        %v795 = vpack.c.b16 %v747, %v731
        %v796 = vpack.c.b16 %v748, %v732
        %v1101 = vunpack.c.l.b16 %v349
        %v1102 = vunpack.c.l.b16 %v350
        %v1103 = vunpack.c.l.b16 %v351
        %v1104 = vunpack.c.l.b16 %v352
        %v1105 = vunpack.c.l.b16 %v353
        %v1106 = vunpack.c.l.b16 %v354
        %v1107 = vunpack.c.l.b16 %v355
        %v1108 = vunpack.c.l.b16 %v356
        %v1109 = vunpack.c.l.b16 %v357
        %v1110 = vunpack.c.l.b16 %v358
        %v1111 = vunpack.c.l.b16 %v359
        %v1112 = vunpack.c.l.b16 %v360
        %v1113 = vunpack.c.l.b16 %v361
        %v1114 = vunpack.c.l.b16 %v362
        %v1115 = vunpack.c.l.b16 %v363
        %v1116 = vunpack.c.l.b16 %v364
        %v1117 = vunpack.c.l.b16 %v365
        %v1118 = vunpack.c.l.b16 %v366
        %v1119 = vunpack.c.l.b16 %v367
        %v1120 = vunpack.c.l.b16 %v368
        %v1121 = vunpack.c.l.b16 %v369
        %v1122 = vunpack.c.l.b16 %v370
        %v1123 = vunpack.c.l.b16 %v371
        %v1124 = vunpack.c.l.b16 %v372
        %v1125 = vunpack.c.l.b16 %v373
        %v1126 = vunpack.c.l.b16 %v374
        %v1127 = vunpack.c.l.b16 %v375
        %v1128 = vunpack.c.l.b16 %v376
        %v1129 = vunpack.c.l.b16 %v377
        %v1130 = vunpack.c.l.b16 %v378
        %v1131 = vunpack.c.l.b16 %v379
        %v1132 = vunpack.c.l.b16 %v380
        %v1133 = vunpack.c.l.b16 %v381
        %v1134 = vunpack.c.l.b16 %v382
        %v1135 = vunpack.c.l.b16 %v383
        %v1136 = vunpack.c.l.b16 %v384
        %v1137 = vunpack.c.l.b16 %v385
        %v1138 = vunpack.c.l.b16 %v386
        %v1139 = vunpack.c.l.b16 %v387
        %v1140 = vunpack.c.l.b16 %v388
        %v1141 = vunpack.c.l.b16 %v389
        %v1142 = vunpack.c.l.b16 %v390
        %v1143 = vunpack.c.l.b16 %v391
        %v1144 = vunpack.c.l.b16 %v392
        %v1145 = vunpack.c.l.b16 %v393
        %v1146 = vunpack.c.l.b16 %v394
        %v1147 = vunpack.c.l.b16 %v395
        %v1148 = vunpack.c.l.b16 %v396
        %v1149 = vunpack.c.l.b16 %v397
        %v1150 = vunpack.c.l.b16 %v398
        %v1151 = vunpack.c.l.b16 %v399
        %v1152 = vunpack.c.l.b16 %v400
        %v1153 = vunpack.c.l.b16 %v401
        %v1154 = vunpack.c.l.b16 %v402
        %v1155 = vunpack.c.l.b16 %v403
        %v1156 = vunpack.c.l.b16 %v404
        %v1157 = vunpack.c.l.b16 %v405
        %v1158 = vunpack.c.l.b16 %v406
        %v1159 = vunpack.c.l.b16 %v407
        %v1160 = vunpack.c.l.b16 %v408
        %v1161 = vunpack.c.l.b16 %v409
        %v1162 = vunpack.c.l.b16 %v410
        %v1163 = vunpack.c.l.b16 %v411
        %v1164 = vunpack.c.l.b16 %v412
        %v1165 = vunpack.c.l.b16 %v413
        %v1166 = vunpack.c.l.b16 %v414
        %v1167 = vunpack.c.l.b16 %v415
        %v1168 = vunpack.c.l.b16 %v416
        %v1169 = vunpack.c.l.b16 %v417
        %v1170 = vunpack.c.l.b16 %v418
        %v1171 = vunpack.c.l.b16 %v419
        %v1172 = vunpack.c.l.b16 %v420
        %v1173 = vunpack.c.l.b16 %v421
        %v1174 = vunpack.c.l.b16 %v422
        %v1175 = vunpack.c.l.b16 %v423
        %v1176 = vunpack.c.l.b16 %v424
        %v1177 = vunpack.c.l.b16 %v425
        %v1178 = vunpack.c.l.b16 %v426
        %v1179 = vunpack.c.l.b16 %v427
        %v1180 = vunpack.c.l.b16 %v428
        %v1181 = vunpack.c.l.b16 %v429
        %v1182 = vunpack.c.l.b16 %v430
        %v1183 = vunpack.c.l.b16 %v431
        %v1184 = vunpack.c.l.b16 %v432
        %v1185 = vunpack.c.l.b16 %v433
        %v1186 = vunpack.c.l.b16 %v434
        %v1187 = vunpack.c.l.b16 %v435
        %v1188 = vunpack.c.l.b16 %v436
        %v1189 = vunpack.c.l.b16 %v437
        %v1190 = vunpack.c.l.b16 %v438
        %v1191 = vunpack.c.l.b16 %v439
        %v1192 = vunpack.c.l.b16 %v440
        %v1193 = vunpack.c.l.b16 %v441
        %v1194 = vunpack.c.l.b16 %v442
        %v1195 = vunpack.c.l.b16 %v443
        %v1196 = vunpack.c.l.b16 %v444
        %v1197 = vunpack.c.l.b16 %v445
        %v1198 = vunpack.c.l.b16 %v446
        %v1199 = vunpack.c.l.b16 %v447
        %v1200 = vunpack.c.l.b16 %v448
        %v1201 = vunpack.c.l.b16 %v449
        %v1202 = vunpack.c.l.b16 %v450
        %v1203 = vunpack.c.l.b16 %v451
        %v1204 = vunpack.c.l.b16 %v452
        %v1205 = vunpack.c.l.b16 %v453
        %v1206 = vunpack.c.l.b16 %v454
        %v1207 = vunpack.c.l.b16 %v455
        %v1208 = vunpack.c.l.b16 %v456
        %v1209 = vunpack.c.l.b16 %v457
        %v1210 = vunpack.c.l.b16 %v458
        %v1211 = vunpack.c.l.b16 %v459
        %v1212 = vunpack.c.l.b16 %v460
        %v1213 = vunpack.c.l.b16 %v461
        %v1214 = vunpack.c.l.b16 %v462
        %v1215 = vunpack.c.l.b16 %v463
        %v1216 = vunpack.c.l.b16 %v464
        %v1217 = vunpack.c.l.b16 %v465
        %v1218 = vunpack.c.l.b16 %v466
        %v1219 = vunpack.c.l.b16 %v467
        %v1220 = vunpack.c.l.b16 %v468
        %v1221 = vunpack.c.l.b16 %v469
        %v1222 = vunpack.c.l.b16 %v470
        %v1223 = vunpack.c.l.b16 %v471
        %v1224 = vunpack.c.l.b16 %v472
        %v1225 = vunpack.c.l.b16 %v473
        %v1226 = vunpack.c.l.b16 %v474
        %v1227 = vunpack.c.l.b16 %v475
        %v1228 = vunpack.c.l.b16 %v476
        %v1229 = vunpack.c.l.b16 %v477
        %v1230 = vunpack.c.l.b16 %v478
        %v1231 = vunpack.c.l.b16 %v479
        %v1232 = vunpack.c.l.b16 %v480
        %v1233 = vunpack.c.l.b16 %v481
        %v1234 = vunpack.c.l.b16 %v482
        %v1235 = vunpack.c.l.b16 %v483
        %v1236 = vunpack.c.l.b16 %v484
        %v1237 = vunpack.c.l.b16 %v485
        %v1238 = vunpack.c.l.b16 %v486
        %v1239 = vunpack.c.l.b16 %v487
        %v1240 = vunpack.c.l.b16 %v488
        %v1241 = vunpack.c.l.b16 %v489
        %v1242 = vunpack.c.l.b16 %v490
        %v1243 = vunpack.c.l.b16 %v491
        %v1244 = vunpack.c.l.b16 %v492
        %v1245 = vunpack.c.l.b16 %v493
        %v1246 = vunpack.c.l.b16 %v494
        %v1247 = vunpack.c.l.b16 %v495
        %v1248 = vunpack.c.l.b16 %v496
        %v1249 = vunpack.c.l.b16 %v497
        %v1250 = vunpack.c.l.b16 %v498
        %v1251 = vunpack.c.l.b16 %v499
        %v1252 = vunpack.c.l.b16 %v500
        %v1253 = vunpack.c.l.b16 %v501
        %v1254 = vunpack.c.l.b16 %v502
        %v1255 = vunpack.c.l.b16 %v503
        %v1256 = vunpack.c.l.b16 %v504
        %v1257 = vunpack.c.l.b16 %v505
        %v1258 = vunpack.c.l.b16 %v506
        %v1259 = vunpack.c.l.b16 %v507
        %v1260 = vunpack.c.l.b16 %v508
        %v1261 = vunpack.c.l.b16 %v509
        %v1262 = vunpack.c.l.b16 %v510
        %v1263 = vunpack.c.l.b16 %v511
        %v1264 = vunpack.c.l.b16 %v512
        %v1265 = vunpack.c.l.b16 %v513
        %v1266 = vunpack.c.l.b16 %v514
        %v1267 = vunpack.c.l.b16 %v515
        %v1268 = vunpack.c.l.b16 %v516
        %v1269 = vunpack.c.l.b16 %v517
        %v1270 = vunpack.c.l.b16 %v518
        %v1271 = vunpack.c.l.b16 %v519
        %v1272 = vunpack.c.l.b16 %v520
        %v1273 = vunpack.c.l.b16 %v521
        %v1274 = vunpack.c.l.b16 %v522
        %v1275 = vunpack.c.l.b16 %v523
        %v1276 = vunpack.c.l.b16 %v524
        %v1277 = vunpack.c.l.b16 %v525
        %v1278 = vunpack.c.l.b16 %v526
        %v1279 = vunpack.c.l.b16 %v527
        %v1280 = vunpack.c.l.b16 %v528
        %v1281 = vunpack.c.l.b16 %v529
        %v1282 = vunpack.c.l.b16 %v530
        %v1283 = vunpack.c.l.b16 %v531
        %v1284 = vunpack.c.l.b16 %v532
        %v1285 = vunpack.c.l.b16 %v533
        %v1286 = vunpack.c.l.b16 %v534
        %v1287 = vunpack.c.l.b16 %v535
        %v1288 = vunpack.c.l.b16 %v536
        %v1289 = vunpack.c.l.b16 %v537
        %v1290 = vunpack.c.l.b16 %v538
        %v1291 = vunpack.c.l.b16 %v539
        %v1292 = vunpack.c.l.b16 %v540
        %v1293 = vunpack.c.l.b16 %v541
        %v1294 = vunpack.c.l.b16 %v542
        %v1295 = vunpack.c.l.b16 %v543
        %v1296 = vunpack.c.l.b16 %v544
        %v1297 = vunpack.c.l.b16 %v545
        %v1298 = vunpack.c.l.b16 %v546
        %v1299 = vunpack.c.l.b16 %v547
        %v1300 = vunpack.c.l.b16 %v548
        %v1301 = vunpack.c.l.b16 %v549
        %v1302 = vunpack.c.l.b16 %v550
        %v1303 = vunpack.c.l.b16 %v551
        %v1304 = vunpack.c.l.b16 %v552
        %v1305 = vunpack.c.l.b16 %v553
        %v1306 = vunpack.c.l.b16 %v554
        %v1307 = vunpack.c.l.b16 %v555
        %v1308 = vunpack.c.l.b16 %v556
        %v1309 = vunpack.c.l.b16 %v557
        %v1310 = vunpack.c.l.b16 %v558
        %v1311 = vunpack.c.l.b16 %v559
        %v1312 = vunpack.c.l.b16 %v560
        %v1313 = vunpack.c.l.b16 %v561
        %v1314 = vunpack.c.l.b16 %v562
        %v1315 = vunpack.c.l.b16 %v563
        %v1316 = vunpack.c.l.b16 %v564
        %v1317 = vunpack.c.l.b16 %v565
        %v1318 = vunpack.c.l.b16 %v566
        %v1319 = vunpack.c.l.b16 %v567
        %v1320 = vunpack.c.l.b16 %v568
        %v1321 = vunpack.c.l.b16 %v569
        %v1322 = vunpack.c.l.b16 %v570
        %v1323 = vunpack.c.l.b16 %v571
        %v1324 = vunpack.c.l.b16 %v572
        %v1325 = vunpack.c.l.b16 %v573
        %v1326 = vunpack.c.l.b16 %v574
        %v1327 = vunpack.c.l.b16 %v575
        %v1328 = vunpack.c.l.b16 %v576
        %v1329 = vunpack.c.l.b16 %v577
        %v1330 = vunpack.c.l.b16 %v578
        %v1331 = vunpack.c.l.b16 %v579
        %v1332 = vunpack.c.l.b16 %v580
        %v1333 = vunpack.c.l.b16 %v581
        %v1334 = vunpack.c.l.b16 %v582
        %v1335 = vunpack.c.l.b16 %v583
        %v1336 = vunpack.c.l.b16 %v584
        %v1337 = vunpack.c.l.b16 %v585
        %v1338 = vunpack.c.l.b16 %v586
        %v1339 = vunpack.c.l.b16 %v587
        %v1340 = vunpack.c.l.b16 %v588
        %v1341 = vunpack.c.l.b16 %v589
        %v1342 = vunpack.c.l.b16 %v590
        %v1343 = vunpack.c.l.b16 %v591
        %v1344 = vunpack.c.l.b16 %v592
        %v1345 = vunpack.c.l.b16 %v593
        %v1346 = vunpack.c.l.b16 %v594
        %v1347 = vunpack.c.l.b16 %v595
        %v1348 = vunpack.c.l.b16 %v596
        %v1349 = vunpack.c.l.b16 %v597
        %v1350 = vunpack.c.l.b16 %v598
        %v1351 = vunpack.c.l.b16 %v599
        %v1352 = vunpack.c.l.b16 %v600
        %v1353 = vunpack.c.l.b16 %v601
        %v1354 = vunpack.c.l.b16 %v602
        %v1355 = vunpack.c.l.b16 %v603
        %v1356 = vunpack.c.l.b16 %v604
        %v1357 = vpack.c.b16 %v1102, %v1101
        %v1358 = vpack.c.b16 %v1104, %v1103
        %v1359 = vpack.c.b16 %v1106, %v1105
        %v1360 = vpack.c.b16 %v1108, %v1107
        %v1361 = vpack.c.b16 %v1110, %v1109
        %v1362 = vpack.c.b16 %v1112, %v1111
        %v1363 = vpack.c.b16 %v1114, %v1113
        %v1364 = vpack.c.b16 %v1116, %v1115
        %v1365 = vpack.c.b16 %v1118, %v1117
        %v1366 = vpack.c.b16 %v1120, %v1119
        %v1367 = vpack.c.b16 %v1122, %v1121
        %v1368 = vpack.c.b16 %v1124, %v1123
        %v1369 = vpack.c.b16 %v1126, %v1125
        %v1370 = vpack.c.b16 %v1128, %v1127
        %v1371 = vpack.c.b16 %v1130, %v1129
        %v1372 = vpack.c.b16 %v1132, %v1131
        %v1373 = vpack.c.b16 %v1134, %v1133
        %v1374 = vpack.c.b16 %v1136, %v1135
        %v1375 = vpack.c.b16 %v1138, %v1137
        %v1376 = vpack.c.b16 %v1140, %v1139
        %v1377 = vpack.c.b16 %v1142, %v1141
        %v1378 = vpack.c.b16 %v1144, %v1143
        %v1379 = vpack.c.b16 %v1146, %v1145
        %v1380 = vpack.c.b16 %v1148, %v1147
        %v1381 = vpack.c.b16 %v1150, %v1149
        %v1382 = vpack.c.b16 %v1152, %v1151
        %v1383 = vpack.c.b16 %v1154, %v1153
        %v1384 = vpack.c.b16 %v1156, %v1155
        %v1385 = vpack.c.b16 %v1158, %v1157
        %v1386 = vpack.c.b16 %v1160, %v1159
        %v1387 = vpack.c.b16 %v1162, %v1161
        %v1388 = vpack.c.b16 %v1164, %v1163
        %v1389 = vpack.c.b16 %v1166, %v1165
        %v1390 = vpack.c.b16 %v1168, %v1167
        %v1391 = vpack.c.b16 %v1170, %v1169
        %v1392 = vpack.c.b16 %v1172, %v1171
        %v1393 = vpack.c.b16 %v1174, %v1173
        %v1394 = vpack.c.b16 %v1176, %v1175
        %v1395 = vpack.c.b16 %v1178, %v1177
        %v1396 = vpack.c.b16 %v1180, %v1179
        %v1397 = vpack.c.b16 %v1182, %v1181
        %v1398 = vpack.c.b16 %v1184, %v1183
        %v1399 = vpack.c.b16 %v1186, %v1185
        %v1400 = vpack.c.b16 %v1188, %v1187
        %v1401 = vpack.c.b16 %v1190, %v1189
        %v1402 = vpack.c.b16 %v1192, %v1191
        %v1403 = vpack.c.b16 %v1194, %v1193
        %v1404 = vpack.c.b16 %v1196, %v1195
        %v1405 = vpack.c.b16 %v1198, %v1197
        %v1406 = vpack.c.b16 %v1200, %v1199
        %v1407 = vpack.c.b16 %v1202, %v1201
        %v1408 = vpack.c.b16 %v1204, %v1203
        %v1409 = vpack.c.b16 %v1206, %v1205
        %v1410 = vpack.c.b16 %v1208, %v1207
        %v1411 = vpack.c.b16 %v1210, %v1209
        %v1412 = vpack.c.b16 %v1212, %v1211
        %v1413 = vpack.c.b16 %v1214, %v1213
        %v1414 = vpack.c.b16 %v1216, %v1215
        %v1415 = vpack.c.b16 %v1218, %v1217
        %v1416 = vpack.c.b16 %v1220, %v1219
        %v1417 = vpack.c.b16 %v1222, %v1221
        %v1418 = vpack.c.b16 %v1224, %v1223
        %v1419 = vpack.c.b16 %v1226, %v1225
        %v1420 = vpack.c.b16 %v1228, %v1227
        %v1421 = vpack.c.b16 %v1230, %v1229
        %v1422 = vpack.c.b16 %v1232, %v1231
        %v1423 = vpack.c.b16 %v1234, %v1233
        %v1424 = vpack.c.b16 %v1236, %v1235
        %v1425 = vpack.c.b16 %v1238, %v1237
        %v1426 = vpack.c.b16 %v1240, %v1239
        %v1427 = vpack.c.b16 %v1242, %v1241
        %v1428 = vpack.c.b16 %v1244, %v1243
        %v1429 = vpack.c.b16 %v1246, %v1245
        %v1430 = vpack.c.b16 %v1248, %v1247
        %v1431 = vpack.c.b16 %v1250, %v1249
        %v1432 = vpack.c.b16 %v1252, %v1251
        %v1433 = vpack.c.b16 %v1254, %v1253
        %v1434 = vpack.c.b16 %v1256, %v1255
        %v1435 = vpack.c.b16 %v1258, %v1257
        %v1436 = vpack.c.b16 %v1260, %v1259
        %v1437 = vpack.c.b16 %v1262, %v1261
        %v1438 = vpack.c.b16 %v1264, %v1263
        %v1439 = vpack.c.b16 %v1266, %v1265
        %v1440 = vpack.c.b16 %v1268, %v1267
        %v1441 = vpack.c.b16 %v1270, %v1269
        %v1442 = vpack.c.b16 %v1272, %v1271
        %v1443 = vpack.c.b16 %v1274, %v1273
        %v1444 = vpack.c.b16 %v1276, %v1275
        %v1445 = vpack.c.b16 %v1278, %v1277
        %v1446 = vpack.c.b16 %v1280, %v1279
        %v1447 = vpack.c.b16 %v1282, %v1281
        %v1448 = vpack.c.b16 %v1284, %v1283
        %v1449 = vpack.c.b16 %v1286, %v1285
        %v1450 = vpack.c.b16 %v1288, %v1287
        %v1451 = vpack.c.b16 %v1290, %v1289
        %v1452 = vpack.c.b16 %v1292, %v1291
        %v1453 = vpack.c.b16 %v1294, %v1293
        %v1454 = vpack.c.b16 %v1296, %v1295
        %v1455 = vpack.c.b16 %v1298, %v1297
        %v1456 = vpack.c.b16 %v1300, %v1299
        %v1457 = vpack.c.b16 %v1302, %v1301
        %v1458 = vpack.c.b16 %v1304, %v1303
        %v1459 = vpack.c.b16 %v1306, %v1305
        %v1460 = vpack.c.b16 %v1308, %v1307
        %v1461 = vpack.c.b16 %v1310, %v1309
        %v1462 = vpack.c.b16 %v1312, %v1311
        %v1463 = vpack.c.b16 %v1314, %v1313
        %v1464 = vpack.c.b16 %v1316, %v1315
        %v1465 = vpack.c.b16 %v1318, %v1317
        %v1466 = vpack.c.b16 %v1320, %v1319
        %v1467 = vpack.c.b16 %v1322, %v1321
        %v1468 = vpack.c.b16 %v1324, %v1323
        %v1469 = vpack.c.b16 %v1326, %v1325
        %v1470 = vpack.c.b16 %v1328, %v1327
        %v1471 = vpack.c.b16 %v1330, %v1329
        %v1472 = vpack.c.b16 %v1332, %v1331
        %v1473 = vpack.c.b16 %v1334, %v1333
        %v1474 = vpack.c.b16 %v1336, %v1335
        %v1475 = vpack.c.b16 %v1338, %v1337
        %v1476 = vpack.c.b16 %v1340, %v1339
        %v1477 = vpack.c.b16 %v1342, %v1341
        %v1478 = vpack.c.b16 %v1344, %v1343
        %v1479 = vpack.c.b16 %v1346, %v1345
        %v1480 = vpack.c.b16 %v1348, %v1347
        %v1481 = vpack.c.b16 %v1350, %v1349
        %v1482 = vpack.c.b16 %v1352, %v1351
        %v1483 = vpack.c.b16 %v1354, %v1353
        %v1484 = vpack.c.b16 %v1356, %v1355
        %1613 = vmatprep.subr.bf16.mxu0 0
        %1614 = vmatpush1.bf16.msra.mxu0 %v1357
        %1615 = vmatprep.subr.bf16.mxu0 0
        %1616 = vmatpush1.bf16.msra.mxu0 %v1358
        %1617 = vmatprep.subr.bf16.mxu0 0
        %1618 = vmatpush1.bf16.msra.mxu0 %v1359
        %1619 = vmatprep.subr.bf16.mxu0 0
        %1620 = vmatpush1.bf16.msra.mxu0 %v1360
        %1621 = vmatprep.subr.bf16.mxu0 0
        %1622 = vmatpush1.bf16.msra.mxu0 %v1361
        %1623 = vmatprep.subr.bf16.mxu0 0
        %1624 = vmatpush1.bf16.msra.mxu0 %v1362
        %1625 = vmatprep.subr.bf16.mxu0 0
        %1626 = vmatpush1.bf16.msra.mxu0 %v1363
        %1627 = vmatprep.subr.bf16.mxu0 0
        %1628 = vmatpush1.bf16.msra.mxu0 %v1364
        %1629 = vmatprep.subr.bf16.mxu0 0
        %1630 = vmatpush1.bf16.msra.mxu0 %v1365
        %1631 = vmatprep.subr.bf16.mxu0 0
        %1632 = vmatpush1.bf16.msra.mxu0 %v1366
        %1633 = vmatprep.subr.bf16.mxu0 0
        %1634 = vmatpush1.bf16.msra.mxu0 %v1367
        %1635 = vmatprep.subr.bf16.mxu0 0
        %1636 = vmatpush1.bf16.msra.mxu0 %v1368
        %1637 = vmatprep.subr.bf16.mxu0 0
        %1638 = vmatpush1.bf16.msra.mxu0 %v1369
        %1639 = vmatprep.subr.bf16.mxu0 0
        %1640 = vmatpush1.bf16.msra.mxu0 %v1370
        %1641 = vmatprep.subr.bf16.mxu0 0
        %1642 = vmatpush1.bf16.msra.mxu0 %v1371
        %1643 = vmatprep.subr.bf16.mxu0 0
        %1644 = vmatpush1.bf16.msra.mxu0 %v1372
        %1645 = vmatprep.mubr.bf16.mxu0 %v750
        %1646 = vmatmul.mubr.bf16.gmra.mrb[0].mxu0 %v749
        %v1647 = vpop.f32.mrb[0].mxu0
        %v1648 = vadd.f32 0.0, %v1647
        %v1649 = vpop.f32.mrb[0].mxu0
        %v1650 = vpop.f32.mrb[0].mxu0
        %v1651 = vadd.f32 0.0, %v1650
        %v1652 = vpop.f32.mrb[0].mxu0
        %1653 = vmatprep.mubr.bf16.mxu0 %v766
        %1654 = vmatmul.mubr.bf16.gmra.mrb[0].mxu0 %v765
        %v1655 = vpop.f32.mrb[0].mxu0
        %v1656 = vadd.f32 0.0, %v1655
        %v1657 = vpop.f32.mrb[0].mxu0
        %v1658 = vpop.f32.mrb[0].mxu0
        %v1659 = vadd.f32 0.0, %v1658
        %v1660 = vpop.f32.mrb[0].mxu0
        %1661 = vmatprep.mubr.bf16.mxu0 %v782
        %1662 = vmatmul.mubr.bf16.gmra.mrb[0].mxu0 %v781
        %v1663 = vpop.f32.mrb[0].mxu0
        %v1664 = vadd.f32 0.0, %v1663
        %v1665 = vpop.f32.mrb[0].mxu0
        %v1666 = vpop.f32.mrb[0].mxu0
        %v1667 = vadd.f32 0.0, %v1666
        %v1668 = vpop.f32.mrb[0].mxu0
        %1669 = vdwg.mxu0
        %1670 = vmatprep.subr.bf16.mxu0 0
        %1671 = vmatpush1.bf16.msra.mxu0 %v1373
        %1672 = vmatprep.subr.bf16.mxu0 0
        %1673 = vmatpush1.bf16.msra.mxu0 %v1374
        %1674 = vmatprep.subr.bf16.mxu0 0
        %1675 = vmatpush1.bf16.msra.mxu0 %v1375
        %1676 = vmatprep.subr.bf16.mxu0 0
        %1677 = vmatpush1.bf16.msra.mxu0 %v1376
        %1678 = vmatprep.subr.bf16.mxu0 0
        %1679 = vmatpush1.bf16.msra.mxu0 %v1377
        %1680 = vmatprep.subr.bf16.mxu0 0
        %1681 = vmatpush1.bf16.msra.mxu0 %v1378
        %1682 = vmatprep.subr.bf16.mxu0 0
        %1683 = vmatpush1.bf16.msra.mxu0 %v1379
        %1684 = vmatprep.subr.bf16.mxu0 0
        %1685 = vmatpush1.bf16.msra.mxu0 %v1380
        %1686 = vmatprep.subr.bf16.mxu0 0
        %1687 = vmatpush1.bf16.msra.mxu0 %v1381
        %1688 = vmatprep.subr.bf16.mxu0 0
        %1689 = vmatpush1.bf16.msra.mxu0 %v1382
        %1690 = vmatprep.subr.bf16.mxu0 0
        %1691 = vmatpush1.bf16.msra.mxu0 %v1383
        %1692 = vmatprep.subr.bf16.mxu0 0
        %1693 = vmatpush1.bf16.msra.mxu0 %v1384
        %1694 = vmatprep.subr.bf16.mxu0 0
        %1695 = vmatpush1.bf16.msra.mxu0 %v1385
        %1696 = vmatprep.subr.bf16.mxu0 0
        %1697 = vmatpush1.bf16.msra.mxu0 %v1386
        %1698 = vmatprep.subr.bf16.mxu0 0
        %1699 = vmatpush1.bf16.msra.mxu0 %v1387
        %1700 = vmatprep.subr.bf16.mxu0 0
        %1701 = vmatpush1.bf16.msra.mxu0 %v1388
        %1702 = vmatprep.mubr.bf16.mxu0 %v752
        %1703 = vmatmul.mubr.bf16.gmra.mrb[0].mxu0 %v751
        %v1704 = vpop.f32.mrb[0].mxu0
        %v1705 = vadd.f32 %v1648, %v1704
        %v1706 = vpop.f32.mrb[0].mxu0
        %v1707 = vpop.f32.mrb[0].mxu0
        %v1708 = vadd.f32 %v1651, %v1707
        %v1709 = vpop.f32.mrb[0].mxu0
        %1710 = vmatprep.mubr.bf16.mxu0 %v768
        %1711 = vmatmul.mubr.bf16.gmra.mrb[0].mxu0 %v767
        %v1712 = vpop.f32.mrb[0].mxu0
        %v1713 = vadd.f32 %v1656, %v1712
        %v1714 = vpop.f32.mrb[0].mxu0
        %v1715 = vpop.f32.mrb[0].mxu0
        %v1716 = vadd.f32 %v1659, %v1715
        %v1717 = vpop.f32.mrb[0].mxu0
        %1718 = vmatprep.mubr.bf16.mxu0 %v784
        %1719 = vmatmul.mubr.bf16.gmra.mrb[0].mxu0 %v783
        %v1720 = vpop.f32.mrb[0].mxu0
        %v1721 = vadd.f32 %v1664, %v1720
        %v1722 = vpop.f32.mrb[0].mxu0
        %v1723 = vpop.f32.mrb[0].mxu0
        %v1724 = vadd.f32 %v1667, %v1723
        %v1725 = vpop.f32.mrb[0].mxu0
        %1726 = vdwg.mxu0
        %1727 = vmatprep.subr.bf16.mxu0 0
        %1728 = vmatpush1.bf16.msra.mxu0 %v1389
        %1729 = vmatprep.subr.bf16.mxu0 0
        %1730 = vmatpush1.bf16.msra.mxu0 %v1390
        %1731 = vmatprep.subr.bf16.mxu0 0
        %1732 = vmatpush1.bf16.msra.mxu0 %v1391
        %1733 = vmatprep.subr.bf16.mxu0 0
        %1734 = vmatpush1.bf16.msra.mxu0 %v1392
        %1735 = vmatprep.subr.bf16.mxu0 0
        %1736 = vmatpush1.bf16.msra.mxu0 %v1393
        %1737 = vmatprep.subr.bf16.mxu0 0
        %1738 = vmatpush1.bf16.msra.mxu0 %v1394
        %1739 = vmatprep.subr.bf16.mxu0 0
        %1740 = vmatpush1.bf16.msra.mxu0 %v1395
        %1741 = vmatprep.subr.bf16.mxu0 0
        %1742 = vmatpush1.bf16.msra.mxu0 %v1396
        %1743 = vmatprep.subr.bf16.mxu0 0
        %1744 = vmatpush1.bf16.msra.mxu0 %v1397
        %1745 = vmatprep.subr.bf16.mxu0 0
        %1746 = vmatpush1.bf16.msra.mxu0 %v1398
        %1747 = vmatprep.subr.bf16.mxu0 0
        %1748 = vmatpush1.bf16.msra.mxu0 %v1399
        %1749 = vmatprep.subr.bf16.mxu0 0
        %1750 = vmatpush1.bf16.msra.mxu0 %v1400
        %1751 = vmatprep.subr.bf16.mxu0 0
        %1752 = vmatpush1.bf16.msra.mxu0 %v1401
        %1753 = vmatprep.subr.bf16.mxu0 0
        %1754 = vmatpush1.bf16.msra.mxu0 %v1402
        %1755 = vmatprep.subr.bf16.mxu0 0
        %1756 = vmatpush1.bf16.msra.mxu0 %v1403
        %1757 = vmatprep.subr.bf16.mxu0 0
        %1758 = vmatpush1.bf16.msra.mxu0 %v1404
        %1759 = vmatprep.mubr.bf16.mxu0 %v754
        %1760 = vmatmul.mubr.bf16.gmra.mrb[0].mxu0 %v753
        %v1761 = vpop.f32.mrb[0].mxu0
        %v1762 = vadd.f32 %v1705, %v1761
        %v1763 = vpop.f32.mrb[0].mxu0
        %v1764 = vpop.f32.mrb[0].mxu0
        %v1765 = vadd.f32 %v1708, %v1764
        %v1766 = vpop.f32.mrb[0].mxu0
        %1767 = vmatprep.mubr.bf16.mxu0 %v770
        %1768 = vmatmul.mubr.bf16.gmra.mrb[0].mxu0 %v769
        %v1769 = vpop.f32.mrb[0].mxu0
        %v1770 = vadd.f32 %v1713, %v1769
        %v1771 = vpop.f32.mrb[0].mxu0
        %v1772 = vpop.f32.mrb[0].mxu0
        %v1773 = vadd.f32 %v1716, %v1772
        %v1774 = vpop.f32.mrb[0].mxu0
        %1775 = vmatprep.mubr.bf16.mxu0 %v786
        %1776 = vmatmul.mubr.bf16.gmra.mrb[0].mxu0 %v785
        %v1777 = vpop.f32.mrb[0].mxu0
        %v1778 = vadd.f32 %v1721, %v1777
        %v1779 = vpop.f32.mrb[0].mxu0
        %v1780 = vpop.f32.mrb[0].mxu0
        %v1781 = vadd.f32 %v1724, %v1780
        %v1782 = vpop.f32.mrb[0].mxu0
        %1783 = vdwg.mxu0
        %1784 = vmatprep.subr.bf16.mxu0 0
        %1785 = vmatpush1.bf16.msra.mxu0 %v1405
        %1786 = vmatprep.subr.bf16.mxu0 0
        %1787 = vmatpush1.bf16.msra.mxu0 %v1406
        %1788 = vmatprep.subr.bf16.mxu0 0
        %1789 = vmatpush1.bf16.msra.mxu0 %v1407
        %1790 = vmatprep.subr.bf16.mxu0 0
        %1791 = vmatpush1.bf16.msra.mxu0 %v1408
        %1792 = vmatprep.subr.bf16.mxu0 0
        %1793 = vmatpush1.bf16.msra.mxu0 %v1409
        %1794 = vmatprep.subr.bf16.mxu0 0
        %1795 = vmatpush1.bf16.msra.mxu0 %v1410
        %1796 = vmatprep.subr.bf16.mxu0 0
        %1797 = vmatpush1.bf16.msra.mxu0 %v1411
        %1798 = vmatprep.subr.bf16.mxu0 0
        %1799 = vmatpush1.bf16.msra.mxu0 %v1412
        %1800 = vmatprep.subr.bf16.mxu0 0
        %1801 = vmatpush1.bf16.msra.mxu0 %v1413
        %1802 = vmatprep.subr.bf16.mxu0 0
        %1803 = vmatpush1.bf16.msra.mxu0 %v1414
        %1804 = vmatprep.subr.bf16.mxu0 0
        %1805 = vmatpush1.bf16.msra.mxu0 %v1415
        %1806 = vmatprep.subr.bf16.mxu0 0
        %1807 = vmatpush1.bf16.msra.mxu0 %v1416
        %1808 = vmatprep.subr.bf16.mxu0 0
        %1809 = vmatpush1.bf16.msra.mxu0 %v1417
        %1810 = vmatprep.subr.bf16.mxu0 0
        %1811 = vmatpush1.bf16.msra.mxu0 %v1418
        %1812 = vmatprep.subr.bf16.mxu0 0
        %1813 = vmatpush1.bf16.msra.mxu0 %v1419
        %1814 = vmatprep.subr.bf16.mxu0 0
        %1815 = vmatpush1.bf16.msra.mxu0 %v1420
        %1816 = vmatprep.mubr.bf16.mxu0 %v756
        %1817 = vmatmul.mubr.bf16.gmra.mrb[0].mxu0 %v755
        %v1818 = vpop.f32.mrb[0].mxu0
        %v1819 = vadd.f32 %v1762, %v1818
        %v1820 = vpop.f32.mrb[0].mxu0
        %v1821 = vpop.f32.mrb[0].mxu0
        %v1822 = vadd.f32 %v1765, %v1821
        %v1823 = vpop.f32.mrb[0].mxu0
        %1824 = vmatprep.mubr.bf16.mxu0 %v772
        %1825 = vmatmul.mubr.bf16.gmra.mrb[0].mxu0 %v771
        %v1826 = vpop.f32.mrb[0].mxu0
        %v1827 = vadd.f32 %v1770, %v1826
        %v1828 = vpop.f32.mrb[0].mxu0
        %v1829 = vpop.f32.mrb[0].mxu0
        %v1830 = vadd.f32 %v1773, %v1829
        %v1831 = vpop.f32.mrb[0].mxu0
        %1832 = vmatprep.mubr.bf16.mxu0 %v788
        %1833 = vmatmul.mubr.bf16.gmra.mrb[0].mxu0 %v787
        %v1834 = vpop.f32.mrb[0].mxu0
        %v1835 = vadd.f32 %v1778, %v1834
        %v1836 = vpop.f32.mrb[0].mxu0
        %v1837 = vpop.f32.mrb[0].mxu0
        %v1838 = vadd.f32 %v1781, %v1837
        %v1839 = vpop.f32.mrb[0].mxu0
        %1840 = vdwg.mxu0
        %1841 = vmatprep.subr.bf16.mxu0 0
        %1842 = vmatpush1.bf16.msra.mxu0 %v1421
        %1843 = vmatprep.subr.bf16.mxu0 0
        %1844 = vmatpush1.bf16.msra.mxu0 %v1422
        %1845 = vmatprep.subr.bf16.mxu0 0
        %1846 = vmatpush1.bf16.msra.mxu0 %v1423
        %1847 = vmatprep.subr.bf16.mxu0 0
        %1848 = vmatpush1.bf16.msra.mxu0 %v1424
        %1849 = vmatprep.subr.bf16.mxu0 0
        %1850 = vmatpush1.bf16.msra.mxu0 %v1425
        %1851 = vmatprep.subr.bf16.mxu0 0
        %1852 = vmatpush1.bf16.msra.mxu0 %v1426
        %1853 = vmatprep.subr.bf16.mxu0 0
        %1854 = vmatpush1.bf16.msra.mxu0 %v1427
        %1855 = vmatprep.subr.bf16.mxu0 0
        %1856 = vmatpush1.bf16.msra.mxu0 %v1428
        %1857 = vmatprep.subr.bf16.mxu0 0
        %1858 = vmatpush1.bf16.msra.mxu0 %v1429
        %1859 = vmatprep.subr.bf16.mxu0 0
        %1860 = vmatpush1.bf16.msra.mxu0 %v1430
        %1861 = vmatprep.subr.bf16.mxu0 0
        %1862 = vmatpush1.bf16.msra.mxu0 %v1431
        %1863 = vmatprep.subr.bf16.mxu0 0
        %1864 = vmatpush1.bf16.msra.mxu0 %v1432
        %1865 = vmatprep.subr.bf16.mxu0 0
        %1866 = vmatpush1.bf16.msra.mxu0 %v1433
        %1867 = vmatprep.subr.bf16.mxu0 0
        %1868 = vmatpush1.bf16.msra.mxu0 %v1434
        %1869 = vmatprep.subr.bf16.mxu0 0
        %1870 = vmatpush1.bf16.msra.mxu0 %v1435
        %1871 = vmatprep.subr.bf16.mxu0 0
        %1872 = vmatpush1.bf16.msra.mxu0 %v1436
        %1873 = vmatprep.mubr.bf16.mxu0 %v758
        %1874 = vmatmul.mubr.bf16.gmra.mrb[0].mxu0 %v757
        %v1875 = vpop.f32.mrb[0].mxu0
        %v1876 = vadd.f32 %v1819, %v1875
        %v1877 = vpop.f32.mrb[0].mxu0
        %v1878 = vpop.f32.mrb[0].mxu0
        %v1879 = vadd.f32 %v1822, %v1878
        %v1880 = vpop.f32.mrb[0].mxu0
        %1881 = vmatprep.mubr.bf16.mxu0 %v774
        %1882 = vmatmul.mubr.bf16.gmra.mrb[0].mxu0 %v773
        %v1883 = vpop.f32.mrb[0].mxu0
        %v1884 = vadd.f32 %v1827, %v1883
        %v1885 = vpop.f32.mrb[0].mxu0
        %v1886 = vpop.f32.mrb[0].mxu0
        %v1887 = vadd.f32 %v1830, %v1886
        %v1888 = vpop.f32.mrb[0].mxu0
        %1889 = vmatprep.mubr.bf16.mxu0 %v790
        %1890 = vmatmul.mubr.bf16.gmra.mrb[0].mxu0 %v789
        %v1891 = vpop.f32.mrb[0].mxu0
        %v1892 = vadd.f32 %v1835, %v1891
        %v1893 = vpop.f32.mrb[0].mxu0
        %v1894 = vpop.f32.mrb[0].mxu0
        %v1895 = vadd.f32 %v1838, %v1894
        %v1896 = vpop.f32.mrb[0].mxu0
        %1897 = vdwg.mxu0
        %1898 = vmatprep.subr.bf16.mxu0 0
        %1899 = vmatpush1.bf16.msra.mxu0 %v1437
        %1900 = vmatprep.subr.bf16.mxu0 0
        %1901 = vmatpush1.bf16.msra.mxu0 %v1438
        %1902 = vmatprep.subr.bf16.mxu0 0
        %1903 = vmatpush1.bf16.msra.mxu0 %v1439
        %1904 = vmatprep.subr.bf16.mxu0 0
        %1905 = vmatpush1.bf16.msra.mxu0 %v1440
        %1906 = vmatprep.subr.bf16.mxu0 0
        %1907 = vmatpush1.bf16.msra.mxu0 %v1441
        %1908 = vmatprep.subr.bf16.mxu0 0
        %1909 = vmatpush1.bf16.msra.mxu0 %v1442
        %1910 = vmatprep.subr.bf16.mxu0 0
        %1911 = vmatpush1.bf16.msra.mxu0 %v1443
        %1912 = vmatprep.subr.bf16.mxu0 0
        %1913 = vmatpush1.bf16.msra.mxu0 %v1444
        %1914 = vmatprep.subr.bf16.mxu0 0
        %1915 = vmatpush1.bf16.msra.mxu0 %v1445
        %1916 = vmatprep.subr.bf16.mxu0 0
        %1917 = vmatpush1.bf16.msra.mxu0 %v1446
        %1918 = vmatprep.subr.bf16.mxu0 0
        %1919 = vmatpush1.bf16.msra.mxu0 %v1447
        %1920 = vmatprep.subr.bf16.mxu0 0
        %1921 = vmatpush1.bf16.msra.mxu0 %v1448
        %1922 = vmatprep.subr.bf16.mxu0 0
        %1923 = vmatpush1.bf16.msra.mxu0 %v1449
        %1924 = vmatprep.subr.bf16.mxu0 0
        %1925 = vmatpush1.bf16.msra.mxu0 %v1450
        %1926 = vmatprep.subr.bf16.mxu0 0
        %1927 = vmatpush1.bf16.msra.mxu0 %v1451
        %1928 = vmatprep.subr.bf16.mxu0 0
        %1929 = vmatpush1.bf16.msra.mxu0 %v1452
        %1930 = vmatprep.mubr.bf16.mxu0 %v760
        %1931 = vmatmul.mubr.bf16.gmra.mrb[0].mxu0 %v759
        %v1932 = vpop.f32.mrb[0].mxu0
        %v1933 = vadd.f32 %v1876, %v1932
        %v1934 = vpop.f32.mrb[0].mxu0
        %v1935 = vpop.f32.mrb[0].mxu0
        %v1936 = vadd.f32 %v1879, %v1935
        %v1937 = vpop.f32.mrb[0].mxu0
        %1938 = vmatprep.mubr.bf16.mxu0 %v776
        %1939 = vmatmul.mubr.bf16.gmra.mrb[0].mxu0 %v775
        %v1940 = vpop.f32.mrb[0].mxu0
        %v1941 = vadd.f32 %v1884, %v1940
        %v1942 = vpop.f32.mrb[0].mxu0
        %v1943 = vpop.f32.mrb[0].mxu0
        %v1944 = vadd.f32 %v1887, %v1943
        %v1945 = vpop.f32.mrb[0].mxu0
        %1946 = vmatprep.mubr.bf16.mxu0 %v792
        %1947 = vmatmul.mubr.bf16.gmra.mrb[0].mxu0 %v791
        %v1948 = vpop.f32.mrb[0].mxu0
        %v1949 = vadd.f32 %v1892, %v1948
        %v1950 = vpop.f32.mrb[0].mxu0
        %v1951 = vpop.f32.mrb[0].mxu0
        %v1952 = vadd.f32 %v1895, %v1951
        %v1953 = vpop.f32.mrb[0].mxu0
        %1954 = vdwg.mxu0
        %1955 = vmatprep.subr.bf16.mxu0 0
        %1956 = vmatpush1.bf16.msra.mxu0 %v1453
        %1957 = vmatprep.subr.bf16.mxu0 0
        %1958 = vmatpush1.bf16.msra.mxu0 %v1454
        %1959 = vmatprep.subr.bf16.mxu0 0
        %1960 = vmatpush1.bf16.msra.mxu0 %v1455
        %1961 = vmatprep.subr.bf16.mxu0 0
        %1962 = vmatpush1.bf16.msra.mxu0 %v1456
        %1963 = vmatprep.subr.bf16.mxu0 0
        %1964 = vmatpush1.bf16.msra.mxu0 %v1457
        %1965 = vmatprep.subr.bf16.mxu0 0
        %1966 = vmatpush1.bf16.msra.mxu0 %v1458
        %1967 = vmatprep.subr.bf16.mxu0 0
        %1968 = vmatpush1.bf16.msra.mxu0 %v1459
        %1969 = vmatprep.subr.bf16.mxu0 0
        %1970 = vmatpush1.bf16.msra.mxu0 %v1460
        %1971 = vmatprep.subr.bf16.mxu0 0
        %1972 = vmatpush1.bf16.msra.mxu0 %v1461
        %1973 = vmatprep.subr.bf16.mxu0 0
        %1974 = vmatpush1.bf16.msra.mxu0 %v1462
        %1975 = vmatprep.subr.bf16.mxu0 0
        %1976 = vmatpush1.bf16.msra.mxu0 %v1463
        %1977 = vmatprep.subr.bf16.mxu0 0
        %1978 = vmatpush1.bf16.msra.mxu0 %v1464
        %1979 = vmatprep.subr.bf16.mxu0 0
        %1980 = vmatpush1.bf16.msra.mxu0 %v1465
        %1981 = vmatprep.subr.bf16.mxu0 0
        %1982 = vmatpush1.bf16.msra.mxu0 %v1466
        %1983 = vmatprep.subr.bf16.mxu0 0
        %1984 = vmatpush1.bf16.msra.mxu0 %v1467
        %1985 = vmatprep.subr.bf16.mxu0 0
        %1986 = vmatpush1.bf16.msra.mxu0 %v1468
        %1987 = vmatprep.mubr.bf16.mxu0 %v762
        %1988 = vmatmul.mubr.bf16.gmra.mrb[0].mxu0 %v761
        %v1989 = vpop.f32.mrb[0].mxu0
        %v1990 = vadd.f32 %v1933, %v1989
        %v1991 = vpop.f32.mrb[0].mxu0
        %v1992 = vpop.f32.mrb[0].mxu0
        %v1993 = vadd.f32 %v1936, %v1992
        %v1994 = vpop.f32.mrb[0].mxu0
        %1995 = vmatprep.mubr.bf16.mxu0 %v778
        %1996 = vmatmul.mubr.bf16.gmra.mrb[0].mxu0 %v777
        %v1997 = vpop.f32.mrb[0].mxu0
        %v1998 = vadd.f32 %v1941, %v1997
        %v1999 = vpop.f32.mrb[0].mxu0
        %v2000 = vpop.f32.mrb[0].mxu0
        %v2001 = vadd.f32 %v1944, %v2000
        %v2002 = vpop.f32.mrb[0].mxu0
        %2003 = vmatprep.mubr.bf16.mxu0 %v794
        %2004 = vmatmul.mubr.bf16.gmra.mrb[0].mxu0 %v793
        %v2005 = vpop.f32.mrb[0].mxu0
        %v2006 = vadd.f32 %v1949, %v2005
        %v2007 = vpop.f32.mrb[0].mxu0
        %v2008 = vpop.f32.mrb[0].mxu0
        %v2009 = vadd.f32 %v1952, %v2008
        %v2010 = vpop.f32.mrb[0].mxu0
        %2011 = vdwg.mxu0
        %2012 = vmatprep.subr.bf16.mxu0 0
        %2013 = vmatpush1.bf16.msra.mxu0 %v1469
        %2014 = vmatprep.subr.bf16.mxu0 0
        %2015 = vmatpush1.bf16.msra.mxu0 %v1470
        %2016 = vmatprep.subr.bf16.mxu0 0
        %2017 = vmatpush1.bf16.msra.mxu0 %v1471
        %2018 = vmatprep.subr.bf16.mxu0 0
        %2019 = vmatpush1.bf16.msra.mxu0 %v1472
        %2020 = vmatprep.subr.bf16.mxu0 0
        %2021 = vmatpush1.bf16.msra.mxu0 %v1473
        %2022 = vmatprep.subr.bf16.mxu0 0
        %2023 = vmatpush1.bf16.msra.mxu0 %v1474
        %2024 = vmatprep.subr.bf16.mxu0 0
        %2025 = vmatpush1.bf16.msra.mxu0 %v1475
        %2026 = vmatprep.subr.bf16.mxu0 0
        %2027 = vmatpush1.bf16.msra.mxu0 %v1476
        %2028 = vmatprep.subr.bf16.mxu0 0
        %2029 = vmatpush1.bf16.msra.mxu0 %v1477
        %2030 = vmatprep.subr.bf16.mxu0 0
        %2031 = vmatpush1.bf16.msra.mxu0 %v1478
        %2032 = vmatprep.subr.bf16.mxu0 0
        %2033 = vmatpush1.bf16.msra.mxu0 %v1479
        %2034 = vmatprep.subr.bf16.mxu0 0
        %2035 = vmatpush1.bf16.msra.mxu0 %v1480
        %2036 = vmatprep.subr.bf16.mxu0 0
        %2037 = vmatpush1.bf16.msra.mxu0 %v1481
        %2038 = vmatprep.subr.bf16.mxu0 0
        %2039 = vmatpush1.bf16.msra.mxu0 %v1482
        %2040 = vmatprep.subr.bf16.mxu0 0
        %2041 = vmatpush1.bf16.msra.mxu0 %v1483
        %2042 = vmatprep.subr.bf16.mxu0 0
        %2043 = vmatpush1.bf16.msra.mxu0 %v1484
        %2044 = vmatprep.mubr.bf16.mxu0 %v764
        %2045 = vmatmul.mubr.bf16.gmra.mrb[0].mxu0 %v763
        %v2046 = vpop.f32.mrb[0].mxu0
        %v2047 = vadd.f32 %v1990, %v2046
        %v2048 = vpop.f32.mrb[0].mxu0
        %v2049 = vpop.f32.mrb[0].mxu0
        %v2050 = vadd.f32 %v1993, %v2049
        %v2051 = vpop.f32.mrb[0].mxu0
        %2052 = vmatprep.mubr.bf16.mxu0 %v780
        %2053 = vmatmul.mubr.bf16.gmra.mrb[0].mxu0 %v779
        %v2054 = vpop.f32.mrb[0].mxu0
        %v2055 = vadd.f32 %v1998, %v2054
        %v2056 = vpop.f32.mrb[0].mxu0
        %v2057 = vpop.f32.mrb[0].mxu0
        %v2058 = vadd.f32 %v2001, %v2057
        %v2059 = vpop.f32.mrb[0].mxu0
        %2060 = vmatprep.mubr.bf16.mxu0 %v796
        %2061 = vmatmul.mubr.bf16.gmra.mrb[0].mxu0 %v795
        %v2062 = vpop.f32.mrb[0].mxu0
        %v2063 = vadd.f32 %v2006, %v2062
        %v2064 = vpop.f32.mrb[0].mxu0
        %v2065 = vpop.f32.mrb[0].mxu0
        %v2066 = vadd.f32 %v2009, %v2065
        %v2067 = vpop.f32.mrb[0].mxu0
        %2068 = vdwg.mxu0
        %v2069 = vadd.f32 %v295, %v2047
        %v2070 = vadd.f32 %v296, %v2050
        %v2071 = vadd.f32 %v297, %v2055
        %v2072 = vadd.f32 %v298, %v2058
        %v2073 = vadd.f32 %v299, %v2063
        %v2074 = vadd.f32 %v300, %v2066
        %2075 = vst [vmem:[#allocation2] sm:$0xff] %v2069
        %2076 = vst [vmem:[#allocation2 + $0x8] sm:$0xff] %v2070
        %2077 = vst [vmem:[#allocation2 + $0x10] sm:$0xff] %v2071
        %2078 = vst [vmem:[#allocation2 + $0x18] sm:$0xff] %v2072
        %2079 = vst [vmem:[#allocation2 + $0x20] sm:$0xff] %v2073
        %2080 = vst [vmem:[#allocation2 + $0x28] sm:$0xff] %v2074
        // Predicated region
        $region37: #{forward.5} parent=31 // pred_check
          %p2081 = pneg %p285
        $region38: #{forward.5} parent=31 // pred_check_branch
          %2083 = sbr.rel (%p2081) target = $region40
        $region39: #{forward.5} parent=31 // pred_region
          %v2084 = vld [vmem:[#allocation2] sm:$0xff]
          %v2085 = vld [vmem:[#allocation2 + $0x8] sm:$0xff]
          %v2086 = vld [vmem:[#allocation2 + $0x10] sm:$0xff]
          %v2087 = vld [vmem:[#allocation2 + $0x18] sm:$0xff]
          %v2088 = vld [vmem:[#allocation2 + $0x20] sm:$0xff]
          %v2089 = vld [vmem:[#allocation2 + $0x28] sm:$0xff]
          %v2090 = vld [vmem:[%s278] sm:$0x1]
          %v2092 = vlaneseq
          %v2093 = vshrl.u32 %v2092, 7
          %v2094 = vsub.s32 0, %v2093
          %v2095 = vrot.slane %v2090, %v2094
          %v2097 = vadd.f32 %v2084, %v2095
          %v2098 = vadd.f32 %v2085, %v2095
          %v2099 = vadd.f32 %v2086, %v2095
          %v2100 = vadd.f32 %v2087, %v2095
          %v2101 = vadd.f32 %v2088, %v2095
          %v2102 = vadd.f32 %v2089, %v2095
          %2103 = vst [vmem:[%s244] sm:$0xff] %v2097
          %2104 = vst [vmem:[%s244 + $0x8] sm:$0xff] %v2098
          %2105 = vst [vmem:[%s244 + $0x10] sm:$0xff] %v2099
          %2106 = vst [vmem:[%s244 + $0x18] sm:$0xff] %v2100
          %2107 = vst [vmem:[%s244 + $0x20] sm:$0xff] %v2101
          %2108 = vst [vmem:[%s244 + $0x28] sm:$0xff] %v2102
        $region40: #{forward.5} parent=31 // pred_fallthru
          _
        %s2109 = sand.u32 %s125, 1
        %s2110 = sand.u32 %s125, 1
        %s2111 = smul.addr %s2110, 48
        %s2112 = scalar_lea.vmem [#allocation3], %s2111
        // Predicated region
        $region41: #{forward.5} parent=31 // pred_check
          %p2113 = pneg %p135
        $region42: #{forward.5} parent=31 // pred_check_branch
          %2115 = sbr.rel (%p2113) target = $region44
        $region43: #{forward.5} parent=31 // pred_region
          %s2116 = smul.u32 6, %s19
          %s2117 = ssub.s32 9, %s2116
          %p2118 = scmp.lt.s32.totalorder %s2117, 6
          %s2119 = scalar_select %p2118, %s2117, 6
          %s2120 = smul.u32 128, %s2119
          %p2121 = scmp.ne.s32.totalorder 0, %s2120
          %s2122 = sadd.s32 %s20, %s2116
          %s2123 = smul.addr %s2122, 8
          %s2124 = scalar_lea.vmem %s3, %s2123
          // Predicated region
          $region45: #{forward.5} parent=43 // pred_check
            %p2125 = pneg %p2121
          $region46: #{forward.5} parent=43 // pred_check_branch
            %2127 = sbr.rel (%p2125) target = $region48
          $region47: #{forward.5} parent=43 // pred_region
            // Predicated region
            $region49: #{forward.5} parent=47 // pred_check
              _
            $region50: #{forward.5} parent=47 // pred_check_branch
              %2129 = sbr.rel (0) target = $region52
            $region51: #{forward.5} parent=47 // pred_region
              // Predicated region
              $region71: #{forward.5} parent=51 // pred_check
                _
              $region72: #{forward.5} parent=51 // pred_check_branch
                %2189 = sbr.rel (0) target = $region74
              $region73: #{forward.5} parent=51 // pred_region
                %s2190 = sdiv.u32.pop %s2119, 6
                %s2191 = srem.u32.pop %s2119, 6
                // While loop
                $region75: #{forward.5} parent=73 // loop_pre_header
                  _
                $region76: #{forward.5} parent=73 // loop_header
                  %s2193 = sphi 0, %s2195
                  %p2194 = scmp.ge.s32.totalorder %s2193, %s2190
                  %s2198 = sphi 0, %s2215
                  %s2199 = sphi %s2112, %s2218
                  %s2200 = sphi %s2124, %s2219
                $region77: #{forward.5} parent=73 // loop_header_branch
                  %2197 = sbr.rel (%p2194) target = $region81
                $region78: #{forward.5} parent=73 // loop_body
                  %v2201 = vld [vmem:[%s2199] sm:$0xff]
                  %2202 = vst [vmem:[%s2200] sm:$0xff] %v2201
                  %v2203 = vld [vmem:[%s2199 + $0x8] sm:$0xff]
                  %2204 = vst [vmem:[%s2200 + $0x8] sm:$0xff] %v2203
                  %v2205 = vld [vmem:[%s2199 + $0x10] sm:$0xff]
                  %2206 = vst [vmem:[%s2200 + $0x10] sm:$0xff] %v2205
                  %v2207 = vld [vmem:[%s2199 + $0x18] sm:$0xff]
                  %2208 = vst [vmem:[%s2200 + $0x18] sm:$0xff] %v2207
                  %v2209 = vld [vmem:[%s2199 + $0x20] sm:$0xff]
                  %2210 = vst [vmem:[%s2200 + $0x20] sm:$0xff] %v2209
                  %v2211 = vld [vmem:[%s2199 + $0x28] sm:$0xff]
                  %2212 = vst [vmem:[%s2200 + $0x28] sm:$0xff] %v2211
                  %s2213 = sadd.s32 1, %s2198
                  %p2214 = scmp.ge.s32.totalorder %s2213, %s2190
                  %s2215 = scalar_select %p2214, 0, %s2213
                  %s2216 = smul.u32 %s2215, 48
                  %s2217 = smul.u32 %s2215, 48
                  %s2218 = scalar_lea.vmem %s2112, %s2216 [#allocation3]
                  %s2219 = scalar_lea.vmem %s2124, %s2217
                $region79: #{forward.5} parent=73 // loop_footer
                  %s2195 = sadd.s32 %s2193, 1
                $region80: #{forward.5} parent=73 // loop_footer_branch
                  %2192 = sbr.rel target = $region76
                $region81: #{forward.5} parent=73 // loop_exit
                  _
                %s2220 = sdiv.u32.pop %s2119, 6
                %s2221 = srem.u32.pop %s2119, 6
                %s2222 = smul.u32 %s2220, 6
                %s2223 = smul.u32 8, %s2222
                %s2224 = scalar_lea.vmem %s2112, %s2223 [#allocation3]
                %s2225 = smul.u32 8, %s2222
                %s2226 = scalar_lea.vmem %s2124, %s2225
                // While loop
                $region82: #{forward.5} parent=73 // loop_pre_header
                  _
                $region83: #{forward.5} parent=73 // loop_header
                  %s2228 = sphi 0, %s2230
                  %p2229 = scmp.ge.s32.totalorder %s2228, %s2221
                  %s2233 = sphi 0, %s2240
                  %s2234 = sphi %s2224, %s2243
                  %s2235 = sphi %s2226, %s2244
                $region84: #{forward.5} parent=73 // loop_header_branch
                  %2232 = sbr.rel (%p2229) target = $region88
                $region85: #{forward.5} parent=73 // loop_body
                  %v2236 = vld [vmem:[%s2234] sm:$0xff]
                  %2237 = vst [vmem:[%s2235] sm:$0xff] %v2236
                  %s2238 = sadd.s32 1, %s2233
                  %p2239 = scmp.ge.s32.totalorder %s2238, %s2221
                  %s2240 = scalar_select %p2239, 0, %s2238
                  %s2241 = smul.u32 %s2240, 8
                  %s2242 = smul.u32 %s2240, 8
                  %s2243 = scalar_lea.vmem %s2224, %s2241 [#allocation3]
                  %s2244 = scalar_lea.vmem %s2226, %s2242
                $region86: #{forward.5} parent=73 // loop_footer
                  %s2230 = sadd.s32 %s2228, 1
                $region87: #{forward.5} parent=73 // loop_footer_branch
                  %2227 = sbr.rel target = $region83
                $region88: #{forward.5} parent=73 // loop_exit
                  _
              $region74: #{forward.5} parent=51 // pred_fallthru
                _
              // Predicated region
              $region89: #{forward.5} parent=51 // pred_check
                _
              $region90: #{forward.5} parent=51 // pred_check_branch
                %2246 = sbr.rel target = $region92
              $region91: #{forward.5} parent=51 // pred_region
                _
              $region92: #{forward.5} parent=51 // pred_fallthru
                _
            $region52: #{forward.5} parent=47 // pred_fallthru
              _
            // Predicated region
            $region53: #{forward.5} parent=47 // pred_check
              _
            $region54: #{forward.5} parent=47 // pred_check_branch
              %2131 = sbr.rel target = $region56
            $region55: #{forward.5} parent=47 // pred_region
              %s2133 = sdiv.u32.pop %s2119, 6
              %s2134 = srem.u32.pop %s2119, 6
              // While loop
              $region57: #{forward.5} parent=55 // loop_pre_header
                _
              $region58: #{forward.5} parent=55 // loop_header
                %s2136 = sphi 0, %s2138
                %p2137 = scmp.ge.s32.totalorder %s2136, %s2133
                %s2141 = sphi 0, %s2158
                %s2142 = sphi %s2112, %s2161
                %s2143 = sphi %s2124, %s2162
              $region59: #{forward.5} parent=55 // loop_header_branch
                %2140 = sbr.rel (%p2137) target = $region63
              $region60: #{forward.5} parent=55 // loop_body
                %v2144 = vld [vmem:[%s2142] sm:$0xff]
                %2145 = vst [vmem:[%s2143] sm:$0xff] %v2144
                %v2146 = vld [vmem:[%s2142 + $0x8] sm:$0xff]
                %2147 = vst [vmem:[%s2143 + $0x8] sm:$0xff] %v2146
                %v2148 = vld [vmem:[%s2142 + $0x10] sm:$0xff]
                %2149 = vst [vmem:[%s2143 + $0x10] sm:$0xff] %v2148
                %v2150 = vld [vmem:[%s2142 + $0x18] sm:$0xff]
                %2151 = vst [vmem:[%s2143 + $0x18] sm:$0xff] %v2150
                %v2152 = vld [vmem:[%s2142 + $0x20] sm:$0xff]
                %2153 = vst [vmem:[%s2143 + $0x20] sm:$0xff] %v2152
                %v2154 = vld [vmem:[%s2142 + $0x28] sm:$0xff]
                %2155 = vst [vmem:[%s2143 + $0x28] sm:$0xff] %v2154
                %s2156 = sadd.s32 1, %s2141
                %p2157 = scmp.ge.s32.totalorder %s2156, %s2133
                %s2158 = scalar_select %p2157, 0, %s2156
                %s2159 = smul.u32 %s2158, 48
                %s2160 = smul.u32 %s2158, 48
                %s2161 = scalar_lea.vmem %s2112, %s2159 [#allocation3]
                %s2162 = scalar_lea.vmem %s2124, %s2160
              $region61: #{forward.5} parent=55 // loop_footer
                %s2138 = sadd.s32 %s2136, 1
              $region62: #{forward.5} parent=55 // loop_footer_branch
                %2135 = sbr.rel target = $region58
              $region63: #{forward.5} parent=55 // loop_exit
                _
              %s2163 = sdiv.u32.pop %s2119, 6
              %s2164 = srem.u32.pop %s2119, 6
              %s2165 = smul.u32 %s2163, 6
              %s2166 = smul.u32 8, %s2165
              %s2167 = scalar_lea.vmem %s2112, %s2166 [#allocation3]
              %s2168 = smul.u32 8, %s2165
              %s2169 = scalar_lea.vmem %s2124, %s2168
              // While loop
              $region64: #{forward.5} parent=55 // loop_pre_header
                _
              $region65: #{forward.5} parent=55 // loop_header
                %s2171 = sphi 0, %s2173
                %p2172 = scmp.ge.s32.totalorder %s2171, %s2164
                %s2176 = sphi 0, %s2183
                %s2177 = sphi %s2167, %s2186
                %s2178 = sphi %s2169, %s2187
              $region66: #{forward.5} parent=55 // loop_header_branch
                %2175 = sbr.rel (%p2172) target = $region70
              $region67: #{forward.5} parent=55 // loop_body
                %v2179 = vld [vmem:[%s2177] sm:$0xff]
                %2180 = vst [vmem:[%s2178] sm:$0xff] %v2179
                %s2181 = sadd.s32 1, %s2176
                %p2182 = scmp.ge.s32.totalorder %s2181, %s2164
                %s2183 = scalar_select %p2182, 0, %s2181
                %s2184 = smul.u32 %s2183, 8
                %s2185 = smul.u32 %s2183, 8
                %s2186 = scalar_lea.vmem %s2167, %s2184 [#allocation3]
                %s2187 = scalar_lea.vmem %s2169, %s2185
              $region68: #{forward.5} parent=55 // loop_footer
                %s2173 = sadd.s32 %s2171, 1
              $region69: #{forward.5} parent=55 // loop_footer_branch
                %2170 = sbr.rel target = $region65
              $region70: #{forward.5} parent=55 // loop_exit
                _
            $region56: #{forward.5} parent=47 // pred_fallthru
              _
          $region48: #{forward.5} parent=43 // pred_fallthru
            _
          %2247 = vnop
        $region44: #{forward.5} parent=31 // pred_fallthru
          _
      $region32: #{forward.5} parent=5 // pred_fallthru
        _
      %p2248 = scmp.le.s32.totalorder 2, %s9
      // Predicated region
      $region93: #{forward.5} parent=5 // pred_check
        %p2249 = pneg %p2248
      $region94: #{forward.5} parent=5 // pred_check_branch
        %2251 = sbr.rel (%p2249) target = $region96
      $region95: #{forward.5} parent=5 // pred_region
        %s2252 = ssub.s32 %s9, 2
        // Predicated region
        $region97: #{forward.5} parent=95 // pred_check
          %p2253 = pneg %p141
        $region98: #{forward.5} parent=95 // pred_check_branch
          %2255 = sbr.rel (%p2253) target = $region100
        $region99: #{forward.5} parent=95 // pred_region
          %s2256 = sand.u32 %s126, 1
          %s2257 = sand.u32 %s126, 1
          %s2258 = smul.addr %s2257, 48
          %s2259 = scalar_lea.vmem [#allocation3], %s2258
        $region100: #{forward.5} parent=95 // pred_fallthru
          _
      $region96: #{forward.5} parent=5 // pred_fallthru
        _
    $region6: #{forward.5} parent=1 // loop_footer
      %s13 = sadd.s32 1, %s9
    $region7: #{forward.5} parent=1 // loop_footer_branch
      %8 = sbr.rel target = $region3
    $region8: #{forward.5} parent=1 // loop_exit
      _

</llo_original>
